<compile_context>
chip_gen: v7x
topology: tpu7x:2x2x1
jax: 0.10.0
libtpu: 0.0.40
codegen_flags: <defaults>
</compile_context>

<pallas_src>
import jax
import jax.numpy as jnp
from jax.experimental import pallas as pl
from jax.experimental.pallas import tpu as pltpu

_DIMS = (128, 256, 512, 512, 1024, 1024)


def _leaky_relu(x, slope=0.2):
    return jnp.where(x > 0, x, slope * x)


def _round_up(x, m):
    return ((x + m - 1) // m) * m


def generator_kernel(x_ref,
                     w1_ref, b1_ref,
                     w2_ref, b2_ref,
                     w3_ref, b3_ref,
                     w4_ref, b4_ref,
                     w5_ref, b5_ref,
                     o_ref):
    """Fused 5-layer MLP on one (tile_b, 128) activation block.

    All weights are resident in VMEM; matmuls run bf16 x bf16 -> f32 on the
    MXU, non-linearities in f32 on the VPU/EUP.
    """
    def linear(h, w_ref, b_ref):
        acc = jnp.dot(h.astype(w_ref.dtype), w_ref[...],
                      preferred_element_type=jnp.float32)
        return acc + b_ref[...]

    h = x_ref[...].astype(jnp.float32)
    h = _leaky_relu(linear(h, w1_ref, b1_ref))
    h = _leaky_relu(linear(h, w2_ref, b2_ref))
    h = _leaky_relu(linear(h, w3_ref, b3_ref))
    h = _leaky_relu(linear(h, w4_ref, b4_ref))
    h = jnp.tanh(linear(h, w5_ref, b5_ref))
    o_ref[...] = h.astype(o_ref.dtype)


def generator_forward(noises, params, *, tile_b=256,
                      weight_dtype=jnp.bfloat16):
    """noises: (B, 128) float32.  Returns (B, 1024) float32."""
    B, D_in = noises.shape
    assert D_in == _DIMS[0]
    D_out = _DIMS[-1]

    # MXU-friendly M tile: large tiles for real batches, but never inflate a
    # tiny batch past the next sublane multiple.  Pad batch to the tile.
    tile_b = min(tile_b, _round_up(B, 8))
    B_pad = _round_up(B, tile_b)
    if B_pad != B:
        noises = jnp.pad(noises, ((0, B_pad - B), (0, 0)))

    def const_spec(shape):
        # Whole-array block with a grid-invariant index map: fetched once,
        # stays resident across all batch tiles.
        return pl.BlockSpec(shape, lambda i: tuple(0 for _ in shape))

    in_specs = [pl.BlockSpec((tile_b, D_in), lambda i: (i, 0))]
    flat_params = []
    for k in range(1, 6):
        w = params[f"w{k}"].astype(weight_dtype)   # bf16 weights (MXU rate)
        b = params[f"b{k}"].astype(jnp.float32)    # biases stay f32 (tiny)
        in_specs.append(const_spec(w.shape))
        in_specs.append(const_spec(b.shape))
        flat_params += [w, b]

    # Advisory cost estimate so XLA overlaps the one-time weight fetch with
    # surrounding HLO.
    flops = 2 * B_pad * sum(_DIMS[i] * _DIMS[i + 1] for i in range(5))
    bytes_accessed = (
        noises.size * noises.dtype.itemsize
        + B_pad * D_out * 4
        + sum(int(p.size) * p.dtype.itemsize for p in flat_params))
    cost = pl.CostEstimate(flops=flops,
                           transcendentals=B_pad * D_out,
                           bytes_accessed=bytes_accessed)

    out = pl.pallas_call(
        generator_kernel,
        out_shape=jax.ShapeDtypeStruct((B_pad, D_out), jnp.float32),
        grid_spec=pltpu.PrefetchScalarGridSpec(
            num_scalar_prefetch=0,
            grid=(B_pad // tile_b,),
            in_specs=in_specs,
            out_specs=pl.BlockSpec((tile_b, D_out), lambda i: (i, 0)),
        ),
        compiler_params=pltpu.CompilerParams(
            # Batch tiles are independent -> shard across TCs on v7x.
            dimension_semantics=("parallel",),
            # 48 MiB scoped VMEM: bf16 weights + double-buffered activation
            # tiles with headroom on v7x's 64 MiB physical VMEM.
            vmem_limit_bytes=48 << 20,
        ),
        cost_estimate=cost,
    )(noises, *flat_params)
    return out[:B]


def init_params(key):
    """Deterministic init mimicking PyTorch Linear default U[-1/sqrt(fan_in), +]."""
    params = {}
    for idx in range(5):
        fan_in, fan_out = _DIMS[idx], _DIMS[idx + 1]
        key, kw, kb = jax.random.split(key, 3)
        bound = 1.0 / jnp.sqrt(jnp.float32(fan_in))
        # stored as (in, out) == PyTorch weight (out, in) transposed
        params[f"w{idx+1}"] = jax.random.uniform(
            kw, (fan_in, fan_out), jnp.float32, -bound, bound)
        params[f"b{idx+1}"] = jax.random.uniform(
            kb, (1, fan_out), jnp.float32, -bound, bound)
    return params


def reference_forward(noises, params, weight_dtype=jnp.float32):
    """Pure-JAX reference. weight_dtype=bf16 emulates the kernel's casts."""
    h = noises.astype(jnp.float32)
    for k in range(1, 6):
        w = params[f"w{k}"].astype(weight_dtype)
        b = params[f"b{k}"].astype(jnp.float32)
        h = jnp.dot(h.astype(weight_dtype), w,
                    preferred_element_type=jnp.float32) + b
        if k < 5:
            h = jnp.where(h > 0, h, 0.2 * h)
    return jnp.tanh(h)


if __name__ == "__main__":
    key = jax.random.PRNGKey(0)
    key, knoise = jax.random.split(key)
    params = init_params(key)

    # Small deterministic batch consistent with the module (noise dim = 128).
    batch = 16
    noises = jax.random.normal(knoise, (batch, 128), jnp.float32)

    out = jax.block_until_ready(generator_forward(noises, params))
    assert out.shape == (batch, 1024)

    # Logic check vs a reference that applies identical bf16 casts.
    ref_bf16 = reference_forward(noises, params, weight_dtype=jnp.bfloat16)
    assert jnp.allclose(out, ref_bf16, atol=5e-3, rtol=5e-3), \
        "mismatch vs bf16-matched reference"

    # Precision check vs the full-f32 (PyTorch-equivalent) reference; bf16
    # weights/activations are an intentional precision trade-off.
    ref_f32 = reference_forward(noises, params, weight_dtype=jnp.float32)
    assert jnp.allclose(out, ref_f32, atol=5e-2, rtol=5e-2), \
        "mismatch vs f32 reference"

    # Ragged batch: exercises the pad-to-sublane-and-slice path.
    noises_small = jax.random.normal(jax.random.PRNGKey(1), (9, 128), jnp.float32)
    out_small = jax.block_until_ready(generator_forward(noises_small, params))
    ref_small = reference_forward(noises_small, params, weight_dtype=jnp.bfloat16)
    assert out_small.shape == (9, 1024)
    assert jnp.allclose(out_small, ref_small, atol=5e-3, rtol=5e-3), \
        "mismatch vs reference (ragged batch)"

    print("KERNEL_OK")
</pallas_src>

<mosaic_0001>
module attributes {stable_mosaic.version = 11 : i64} {
  func.func @generator_kernel(%arg0: i32, %arg1: memref<16x128xf32, #tpu.memory_space<vmem>>, %arg2: memref<128x256xbf16, #tpu.memory_space<vmem>>, %arg3: memref<1x256xf32, #tpu.memory_space<vmem>>, %arg4: memref<256x512xbf16, #tpu.memory_space<vmem>>, %arg5: memref<1x512xf32, #tpu.memory_space<vmem>>, %arg6: memref<512x512xbf16, #tpu.memory_space<vmem>>, %arg7: memref<1x512xf32, #tpu.memory_space<vmem>>, %arg8: memref<512x1024xbf16, #tpu.memory_space<vmem>>, %arg9: memref<1x1024xf32, #tpu.memory_space<vmem>>, %arg10: memref<1024x1024xbf16, #tpu.memory_space<vmem>>, %arg11: memref<1x1024xf32, #tpu.memory_space<vmem>>, %arg12: memref<16x1024xf32, #tpu.memory_space<vmem>>) attributes {dimension_semantics = [#tpu.dimension_semantics<parallel>], iteration_bounds = array<i64: 1>, scalar_prefetch = 0 : i64, scratch_operands = 0 : i64, tpu.core_type = #tpu.core_type<tc>, window_params = [{transform_indices = @transform_0, window_bounds = array<i64: 16, 128>}, {pipeline_mode = #tpu.pipeline_mode<synchronous>, transform_indices = @transform_1, window_bounds = array<i64: 128, 256>}, {pipeline_mode = #tpu.pipeline_mode<synchronous>, transform_indices = @transform_2, window_bounds = array<i64: 1, 256>}, {pipeline_mode = #tpu.pipeline_mode<synchronous>, transform_indices = @transform_3, window_bounds = array<i64: 256, 512>}, {pipeline_mode = #tpu.pipeline_mode<synchronous>, transform_indices = @transform_4, window_bounds = array<i64: 1, 512>}, {pipeline_mode = #tpu.pipeline_mode<synchronous>, transform_indices = @transform_5, window_bounds = array<i64: 512, 512>}, {pipeline_mode = #tpu.pipeline_mode<synchronous>, transform_indices = @transform_6, window_bounds = array<i64: 1, 512>}, {pipeline_mode = #tpu.pipeline_mode<synchronous>, transform_indices = @transform_7, window_bounds = array<i64: 512, 1024>}, {pipeline_mode = #tpu.pipeline_mode<synchronous>, transform_indices = @transform_8, window_bounds = array<i64: 1, 1024>}, {pipeline_mode = #tpu.pipeline_mode<synchronous>, transform_indices = @transform_9, window_bounds = array<i64: 1024, 1024>}, {pipeline_mode = #tpu.pipeline_mode<synchronous>, transform_indices = @transform_10, window_bounds = array<i64: 1, 1024>}, {transform_indices = @transform_11, window_bounds = array<i64: 16, 1024>}]} {
    %c0 = arith.constant 0 : index
    %c0_0 = arith.constant 0 : index
    %0 = vector.load %arg1[%c0, %c0_0] : memref<16x128xf32, #tpu.memory_space<vmem>>, vector<16x128xf32>
    %1 = arith.truncf %0 : vector<16x128xf32> to vector<16x128xbf16>
    %c0_1 = arith.constant 0 : index
    %c0_2 = arith.constant 0 : index
    %2 = vector.load %arg2[%c0_1, %c0_2] : memref<128x256xbf16, #tpu.memory_space<vmem>>, vector<128x256xbf16>
    %cst = arith.constant dense<0.000000e+00> : vector<16x256xf32>
    %3 = tpu.matmul %1, %2, %cst {dimension_numbers = #tpu.dot_dimension_numbers<[1], [0], [0], [1], [0, 0, 1, 1], [], []>} : vector<16x128xbf16>, vector<128x256xbf16>, vector<16x256xf32> -> vector<16x256xf32>
    %c0_3 = arith.constant 0 : index
    %c0_4 = arith.constant 0 : index
    %4 = vector.load %arg3[%c0_3, %c0_4] : memref<1x256xf32, #tpu.memory_space<vmem>>, vector<1x256xf32>
    %5 = vector.broadcast %4 : vector<1x256xf32> to vector<16x256xf32>
    %6 = arith.addf %3, %5 : vector<16x256xf32>
    %cst_5 = arith.constant 0.000000e+00 : f32
    %7 = vector.broadcast %cst_5 : f32 to vector<16x256xf32>
    %8 = arith.cmpf ogt, %6, %7 : vector<16x256xf32>
    %cst_6 = arith.constant 2.000000e-01 : f32
    %9 = vector.broadcast %cst_6 : f32 to vector<16x256xf32>
    %10 = arith.mulf %9, %6 : vector<16x256xf32>
    %11 = arith.select %8, %6, %10 : vector<16x256xi1>, vector<16x256xf32>
    %12 = arith.truncf %11 : vector<16x256xf32> to vector<16x256xbf16>
    %c0_7 = arith.constant 0 : index
    %c0_8 = arith.constant 0 : index
    %13 = vector.load %arg4[%c0_7, %c0_8] : memref<256x512xbf16, #tpu.memory_space<vmem>>, vector<256x512xbf16>
    %cst_9 = arith.constant dense<0.000000e+00> : vector<16x512xf32>
    %14 = tpu.matmul %12, %13, %cst_9 {dimension_numbers = #tpu.dot_dimension_numbers<[1], [0], [0], [1], [0, 0, 1, 1], [], []>} : vector<16x256xbf16>, vector<256x512xbf16>, vector<16x512xf32> -> vector<16x512xf32>
    %c0_10 = arith.constant 0 : index
    %c0_11 = arith.constant 0 : index
    %15 = vector.load %arg5[%c0_10, %c0_11] : memref<1x512xf32, #tpu.memory_space<vmem>>, vector<1x512xf32>
    %16 = vector.broadcast %15 : vector<1x512xf32> to vector<16x512xf32>
    %17 = arith.addf %14, %16 : vector<16x512xf32>
    %cst_12 = arith.constant 0.000000e+00 : f32
    %18 = vector.broadcast %cst_12 : f32 to vector<16x512xf32>
    %19 = arith.cmpf ogt, %17, %18 : vector<16x512xf32>
    %cst_13 = arith.constant 2.000000e-01 : f32
    %20 = vector.broadcast %cst_13 : f32 to vector<16x512xf32>
    %21 = arith.mulf %20, %17 : vector<16x512xf32>
    %22 = arith.select %19, %17, %21 : vector<16x512xi1>, vector<16x512xf32>
    %23 = arith.truncf %22 : vector<16x512xf32> to vector<16x512xbf16>
    %c0_14 = arith.constant 0 : index
    %c0_15 = arith.constant 0 : index
    %24 = vector.load %arg6[%c0_14, %c0_15] : memref<512x512xbf16, #tpu.memory_space<vmem>>, vector<512x512xbf16>
    %cst_16 = arith.constant dense<0.000000e+00> : vector<16x512xf32>
    %25 = tpu.matmul %23, %24, %cst_16 {dimension_numbers = #tpu.dot_dimension_numbers<[1], [0], [0], [1], [0, 0, 1, 1], [], []>} : vector<16x512xbf16>, vector<512x512xbf16>, vector<16x512xf32> -> vector<16x512xf32>
    %c0_17 = arith.constant 0 : index
    %c0_18 = arith.constant 0 : index
    %26 = vector.load %arg7[%c0_17, %c0_18] : memref<1x512xf32, #tpu.memory_space<vmem>>, vector<1x512xf32>
    %27 = vector.broadcast %26 : vector<1x512xf32> to vector<16x512xf32>
    %28 = arith.addf %25, %27 : vector<16x512xf32>
    %cst_19 = arith.constant 0.000000e+00 : f32
    %29 = vector.broadcast %cst_19 : f32 to vector<16x512xf32>
    %30 = arith.cmpf ogt, %28, %29 : vector<16x512xf32>
    %cst_20 = arith.constant 2.000000e-01 : f32
    %31 = vector.broadcast %cst_20 : f32 to vector<16x512xf32>
    %32 = arith.mulf %31, %28 : vector<16x512xf32>
    %33 = arith.select %30, %28, %32 : vector<16x512xi1>, vector<16x512xf32>
    %34 = arith.truncf %33 : vector<16x512xf32> to vector<16x512xbf16>
    %c0_21 = arith.constant 0 : index
    %c0_22 = arith.constant 0 : index
    %35 = vector.load %arg8[%c0_21, %c0_22] : memref<512x1024xbf16, #tpu.memory_space<vmem>>, vector<512x1024xbf16>
    %cst_23 = arith.constant dense<0.000000e+00> : vector<16x1024xf32>
    %36 = tpu.matmul %34, %35, %cst_23 {dimension_numbers = #tpu.dot_dimension_numbers<[1], [0], [0], [1], [0, 0, 1, 1], [], []>} : vector<16x512xbf16>, vector<512x1024xbf16>, vector<16x1024xf32> -> vector<16x1024xf32>
    %c0_24 = arith.constant 0 : index
    %c0_25 = arith.constant 0 : index
    %37 = vector.load %arg9[%c0_24, %c0_25] : memref<1x1024xf32, #tpu.memory_space<vmem>>, vector<1x1024xf32>
    %38 = vector.broadcast %37 : vector<1x1024xf32> to vector<16x1024xf32>
    %39 = arith.addf %36, %38 : vector<16x1024xf32>
    %cst_26 = arith.constant 0.000000e+00 : f32
    %40 = vector.broadcast %cst_26 : f32 to vector<16x1024xf32>
    %41 = arith.cmpf ogt, %39, %40 : vector<16x1024xf32>
    %cst_27 = arith.constant 2.000000e-01 : f32
    %42 = vector.broadcast %cst_27 : f32 to vector<16x1024xf32>
    %43 = arith.mulf %42, %39 : vector<16x1024xf32>
    %44 = arith.select %41, %39, %43 : vector<16x1024xi1>, vector<16x1024xf32>
    %45 = arith.truncf %44 : vector<16x1024xf32> to vector<16x1024xbf16>
    %c0_28 = arith.constant 0 : index
    %c0_29 = arith.constant 0 : index
    %46 = vector.load %arg10[%c0_28, %c0_29] : memref<1024x1024xbf16, #tpu.memory_space<vmem>>, vector<1024x1024xbf16>
    %cst_30 = arith.constant dense<0.000000e+00> : vector<16x1024xf32>
    %47 = tpu.matmul %45, %46, %cst_30 {dimension_numbers = #tpu.dot_dimension_numbers<[1], [0], [0], [1], [0, 0, 1, 1], [], []>} : vector<16x1024xbf16>, vector<1024x1024xbf16>, vector<16x1024xf32> -> vector<16x1024xf32>
    %c0_31 = arith.constant 0 : index
    %c0_32 = arith.constant 0 : index
    %48 = vector.load %arg11[%c0_31, %c0_32] : memref<1x1024xf32, #tpu.memory_space<vmem>>, vector<1x1024xf32>
    %49 = vector.broadcast %48 : vector<1x1024xf32> to vector<16x1024xf32>
    %50 = arith.addf %47, %49 : vector<16x1024xf32>
    %51 = math.tanh %50 : vector<16x1024xf32>
    %c0_33 = arith.constant 0 : index
    %c0_34 = arith.constant 0 : index
    %52 = vector.load %arg12[%c0_33, %c0_34] : memref<16x1024xf32, #tpu.memory_space<vmem>>, vector<16x1024xf32>
    tpu.vector_store %arg12[%c0_33, %c0_34], %51 {strides = array<i32>} : memref<16x1024xf32, #tpu.memory_space<vmem>>, vector<16x1024xf32>,
    return
  }
  func.func @transform_0(%arg0: i32) -> (i32, i32) {
    %c0_i32 = arith.constant 0 : i32
    %c0_i32_0 = arith.constant 0 : i32
    return %arg0, %c0_i32 : i32, i32
  }
  func.func @transform_1(%arg0: i32) -> (i32, i32) {
    %c0_i32 = arith.constant 0 : i32
    %c0_i32_0 = arith.constant 0 : i32
    %c0_i32_1 = arith.constant 0 : i32
    return %c0_i32, %c0_i32_0 : i32, i32
  }
  func.func @transform_2(%arg0: i32) -> (i32, i32) {
    %c0_i32 = arith.constant 0 : i32
    %c0_i32_0 = arith.constant 0 : i32
    %c0_i32_1 = arith.constant 0 : i32
    return %c0_i32, %c0_i32_0 : i32, i32
  }
  func.func @transform_3(%arg0: i32) -> (i32, i32) {
    %c0_i32 = arith.constant 0 : i32
    %c0_i32_0 = arith.constant 0 : i32
    %c0_i32_1 = arith.constant 0 : i32
    return %c0_i32, %c0_i32_0 : i32, i32
  }
  func.func @transform_4(%arg0: i32) -> (i32, i32) {
    %c0_i32 = arith.constant 0 : i32
    %c0_i32_0 = arith.constant 0 : i32
    %c0_i32_1 = arith.constant 0 : i32
    return %c0_i32, %c0_i32_0 : i32, i32
  }
  func.func @transform_5(%arg0: i32) -> (i32, i32) {
    %c0_i32 = arith.constant 0 : i32
    %c0_i32_0 = arith.constant 0 : i32
    %c0_i32_1 = arith.constant 0 : i32
    return %c0_i32, %c0_i32_0 : i32, i32
  }
  func.func @transform_6(%arg0: i32) -> (i32, i32) {
    %c0_i32 = arith.constant 0 : i32
    %c0_i32_0 = arith.constant 0 : i32
    %c0_i32_1 = arith.constant 0 : i32
    return %c0_i32, %c0_i32_0 : i32, i32
  }
  func.func @transform_7(%arg0: i32) -> (i32, i32) {
    %c0_i32 = arith.constant 0 : i32
    %c0_i32_0 = arith.constant 0 : i32
    %c0_i32_1 = arith.constant 0 : i32
    return %c0_i32, %c0_i32_0 : i32, i32
  }
  func.func @transform_8(%arg0: i32) -> (i32, i32) {
    %c0_i32 = arith.constant 0 : i32
    %c0_i32_0 = arith.constant 0 : i32
    %c0_i32_1 = arith.constant 0 : i32
    return %c0_i32, %c0_i32_0 : i32, i32
  }
  func.func @transform_9(%arg0: i32) -> (i32, i32) {
    %c0_i32 = arith.constant 0 : i32
    %c0_i32_0 = arith.constant 0 : i32
    %c0_i32_1 = arith.constant 0 : i32
    return %c0_i32, %c0_i32_0 : i32, i32
  }
  func.func @transform_10(%arg0: i32) -> (i32, i32) {
    %c0_i32 = arith.constant 0 : i32
    %c0_i32_0 = arith.constant 0 : i32
    %c0_i32_1 = arith.constant 0 : i32
    return %c0_i32, %c0_i32_0 : i32, i32
  }
  func.func @transform_11(%arg0: i32) -> (i32, i32) {
    %c0_i32 = arith.constant 0 : i32
    %c0_i32_0 = arith.constant 0 : i32
    return %arg0, %c0_i32 : i32, i32
  }
}

</mosaic_0001>

<llo_original>
// kernel: tpu_custom_call.1
$region0: #{tpu_custom_call.1}
  #allocation0 [shape = 'u32[]', space=smem, size = 0x4, offset = 0x4, fixed_abs, tag = 'smem constant byte address 0x4 - core index']
  #allocation1 [shape = 'u32[144,128]{1,0:T(1,128)}', space=vmem, size = 0x12000, scoped, tag = 'internal scratch']
  %s0 = inlined_call_operand.hbm [shape: f32[16,128], index: 0, kind: input, shape index: {}]
  %s1 = inlined_call_operand.hbm [shape: bf16[128,256], index: 1, kind: input, shape index: {}]
  %s2 = inlined_call_operand.hbm [shape: f32[1,256], index: 2, kind: input, shape index: {}]
  %s3 = inlined_call_operand.hbm [shape: bf16[256,512], index: 3, kind: input, shape index: {}]
  %s4 = inlined_call_operand.hbm [shape: f32[1,512], index: 4, kind: input, shape index: {}]
  %s5 = inlined_call_operand.hbm [shape: bf16[512,512], index: 5, kind: input, shape index: {}]
  %s6 = inlined_call_operand.hbm [shape: f32[1,512], index: 6, kind: input, shape index: {}]
  %s7 = inlined_call_operand.hbm [shape: bf16[512,1024], index: 7, kind: input, shape index: {}]
  %s8 = inlined_call_operand.hbm [shape: f32[1,1024], index: 8, kind: input, shape index: {}]
  %s9 = inlined_call_operand.hbm [shape: bf16[1024,1024], index: 9, kind: input, shape index: {}]
  %s10 = inlined_call_operand.hbm [shape: f32[1,1024], index: 10, kind: input, shape index: {}]
  %s11 = inlined_call_operand.hbm [shape: f32[16,1024], index: 11, kind: output, shape index: {}]
  %s12 = sld [smem:[#allocation0]]
  $region98: #{tpu_custom_call.1} parent=0
    _
  %s14 = ssub.s32 1, %s12
  %s15 = scalar_select 0, %s14, %s12
  $region1: #{tpu_custom_call.1} parent=0
    #allocation2 [shape = 'u8[8192]{0}', space=vmem, size = 0x2000, scoped, tag = 'input window, operand 0, single buffered']
    #allocation3 [shape = 's32[1]{0}', space=sflag, size = 0x4, scoped, tag = 'scoped memory for tpu_custom_call.1']
    #allocation4 [shape = 's32[1]{0}', space=sflag, size = 0x4, scoped, tag = 'scoped memory for tpu_custom_call.1']
    #allocation5 [shape = 'u8[65536]{0}', space=vmem, size = 0x10000, scoped, tag = 'input window, operand 1, single buffered']
    #allocation6 [shape = 's32[1]{0}', space=sflag, size = 0x4, scoped, tag = 'scoped memory for tpu_custom_call.1']
    #allocation7 [shape = 'u8[1024]{0}', space=vmem, size = 0x400, scoped, tag = 'input window, operand 2, single buffered']
    #allocation8 [shape = 'u8[262144]{0}', space=vmem, size = 0x40000, scoped, tag = 'input window, operand 3, single buffered']
    #allocation9 [shape = 's32[1]{0}', space=sflag, size = 0x4, scoped, tag = 'scoped memory for tpu_custom_call.1']
    #allocation10 [shape = 'u8[2048]{0}', space=vmem, size = 0x800, scoped, tag = 'input window, operand 4, single buffered']
    #allocation11 [shape = 'u8[524288]{0}', space=vmem, size = 0x80000, scoped, tag = 'input window, operand 5, single buffered']
    #allocation12 [shape = 's32[1]{0}', space=sflag, size = 0x4, scoped, tag = 'scoped memory for tpu_custom_call.1']
    #allocation13 [shape = 'u8[2048]{0}', space=vmem, size = 0x800, scoped, tag = 'input window, operand 6, single buffered']
    #allocation14 [shape = 'u8[1048576]{0}', space=vmem, size = 0x100000, scoped, tag = 'input window, operand 7, single buffered']
    #allocation15 [shape = 's32[1]{0}', space=sflag, size = 0x4, scoped, tag = 'scoped memory for tpu_custom_call.1']
    #allocation16 [shape = 'u8[4096]{0}', space=vmem, size = 0x1000, scoped, tag = 'input window, operand 8, single buffered']
    #allocation17 [shape = 'u8[2097152]{0}', space=vmem, size = 0x200000, scoped, tag = 'input window, operand 9, single buffered']
    #allocation18 [shape = 's32[1]{0}', space=sflag, size = 0x4, scoped, tag = 'scoped memory for tpu_custom_call.1']
    #allocation19 [shape = 'u8[4096]{0}', space=vmem, size = 0x1000, scoped, tag = 'input window, operand 10, single buffered']
    #allocation20 [shape = 'u8[65536]{0}', space=vmem, size = 0x10000, scoped, tag = 'output window, operand 0, single buffered']
    %16 = vsyncpa [#allocation3], 0
    %17 = vsyncpa [#allocation6], 0
    %18 = vsyncpa [#allocation9], 0
    %19 = vsyncpa [#allocation12], 0
    %20 = vsyncpa [#allocation15], 0
    %21 = vsyncpa [#allocation18], 0
    %22 = vsyncpa [#allocation4], 0
    // Predicated region
    $region2: #{tpu_custom_call.1} parent=1 // pred_check
      _
    $region3: #{tpu_custom_call.1} parent=1 // pred_check_branch
      %24 = sbr.rel (0) target = $region5
    $region4: #{tpu_custom_call.1} parent=1 // pred_region
      %s26 = ssub.s32 256, 256
      %27 = vsyncadd [#allocation3], %s26
      %s28 = sshll.u32 [#allocation2], 4
      %s29 = int_to_ptr.vmem [resolvable:$true] %s28
      %34 = dma.hbm_to_vmem [thread:$0]  %s0, 256, %s29, [#allocation3], 128, 128, 8
    $region5: #{tpu_custom_call.1} parent=1 // pred_fallthru
      _
    // Predicated region
    $region6: #{tpu_custom_call.1} parent=1 // pred_check
      _
    $region7: #{tpu_custom_call.1} parent=1 // pred_check_branch
      %36 = sbr.rel (0) target = $region9
    $region8: #{tpu_custom_call.1} parent=1 // pred_region
      %s38 = ssub.s32 2048, 2048
      %39 = vsyncadd [#allocation6], %s38
      %s40 = sshll.u32 [#allocation5], 4
      %s41 = int_to_ptr.vmem [resolvable:$true] %s40
      %46 = dma.hbm_to_vmem [thread:$0]  %s1, 2048, %s41, [#allocation6], 128, 128, 8
    $region9: #{tpu_custom_call.1} parent=1 // pred_fallthru
      _
    // Predicated region
    $region10: #{tpu_custom_call.1} parent=1 // pred_check
      _
    $region11: #{tpu_custom_call.1} parent=1 // pred_check_branch
      %48 = sbr.rel (0) target = $region13
    $region12: #{tpu_custom_call.1} parent=1 // pred_region
      %s50 = ssub.s32 32, 32
      %51 = vsyncadd [#allocation6], %s50
      %s53 = sshll.u32 [#allocation7], 4
      %s54 = int_to_ptr.vmem [resolvable:$true] %s53
      %56 = dma.hbm_to_vmem [thread:$0]  %s2, 32, %s54, [#allocation6]
    $region13: #{tpu_custom_call.1} parent=1 // pred_fallthru
      _
    // Predicated region
    $region14: #{tpu_custom_call.1} parent=1 // pred_check
      _
    $region15: #{tpu_custom_call.1} parent=1 // pred_check_branch
      %58 = sbr.rel (0) target = $region17
    $region16: #{tpu_custom_call.1} parent=1 // pred_region
      %s60 = ssub.s32 8192, 8192
      %61 = vsyncadd [#allocation9], %s60
      %s62 = sshll.u32 [#allocation8], 4
      %s63 = int_to_ptr.vmem [resolvable:$true] %s62
      %68 = dma.hbm_to_vmem [thread:$0]  %s3, 8192, %s63, [#allocation9], 256, 256, 16
    $region17: #{tpu_custom_call.1} parent=1 // pred_fallthru
      _
    // Predicated region
    $region18: #{tpu_custom_call.1} parent=1 // pred_check
      _
    $region19: #{tpu_custom_call.1} parent=1 // pred_check_branch
      %70 = sbr.rel (0) target = $region21
    $region20: #{tpu_custom_call.1} parent=1 // pred_region
      %s72 = ssub.s32 64, 64
      %73 = vsyncadd [#allocation9], %s72
      %s75 = sshll.u32 [#allocation10], 4
      %s76 = int_to_ptr.vmem [resolvable:$true] %s75
      %78 = dma.hbm_to_vmem [thread:$0]  %s4, 64, %s76, [#allocation9]
    $region21: #{tpu_custom_call.1} parent=1 // pred_fallthru
      _
    // Predicated region
    $region22: #{tpu_custom_call.1} parent=1 // pred_check
      _
    $region23: #{tpu_custom_call.1} parent=1 // pred_check_branch
      %80 = sbr.rel (0) target = $region25
    $region24: #{tpu_custom_call.1} parent=1 // pred_region
      %s82 = ssub.s32 16384, 16384
      %83 = vsyncadd [#allocation12], %s82
      %s84 = sshll.u32 [#allocation11], 4
      %s85 = int_to_ptr.vmem [resolvable:$true] %s84
      %90 = dma.hbm_to_vmem [thread:$0]  %s5, 16384, %s85, [#allocation12], 256, 256, 16
    $region25: #{tpu_custom_call.1} parent=1 // pred_fallthru
      _
    // Predicated region
    $region26: #{tpu_custom_call.1} parent=1 // pred_check
      _
    $region27: #{tpu_custom_call.1} parent=1 // pred_check_branch
      %92 = sbr.rel (0) target = $region29
    $region28: #{tpu_custom_call.1} parent=1 // pred_region
      %s94 = ssub.s32 64, 64
      %95 = vsyncadd [#allocation12], %s94
      %s97 = sshll.u32 [#allocation13], 4
      %s98 = int_to_ptr.vmem [resolvable:$true] %s97
      %100 = dma.hbm_to_vmem [thread:$0]  %s6, 64, %s98, [#allocation12]
    $region29: #{tpu_custom_call.1} parent=1 // pred_fallthru
      _
    // Predicated region
    $region30: #{tpu_custom_call.1} parent=1 // pred_check
      _
    $region31: #{tpu_custom_call.1} parent=1 // pred_check_branch
      %102 = sbr.rel (0) target = $region33
    $region32: #{tpu_custom_call.1} parent=1 // pred_region
      %s104 = ssub.s32 32768, 32768
      %105 = vsyncadd [#allocation15], %s104
      %s106 = sshll.u32 [#allocation14], 4
      %s107 = int_to_ptr.vmem [resolvable:$true] %s106
      %112 = dma.hbm_to_vmem [thread:$0]  %s7, 32768, %s107, [#allocation15], 512, 512, 32
    $region33: #{tpu_custom_call.1} parent=1 // pred_fallthru
      _
    // Predicated region
    $region34: #{tpu_custom_call.1} parent=1 // pred_check
      _
    $region35: #{tpu_custom_call.1} parent=1 // pred_check_branch
      %114 = sbr.rel (0) target = $region37
    $region36: #{tpu_custom_call.1} parent=1 // pred_region
      %s116 = ssub.s32 128, 128
      %117 = vsyncadd [#allocation15], %s116
      %s119 = sshll.u32 [#allocation16], 4
      %s120 = int_to_ptr.vmem [resolvable:$true] %s119
      %122 = dma.hbm_to_vmem [thread:$0]  %s8, 128, %s120, [#allocation15]
    $region37: #{tpu_custom_call.1} parent=1 // pred_fallthru
      _
    // Predicated region
    $region38: #{tpu_custom_call.1} parent=1 // pred_check
      _
    $region39: #{tpu_custom_call.1} parent=1 // pred_check_branch
      %124 = sbr.rel (0) target = $region41
    $region40: #{tpu_custom_call.1} parent=1 // pred_region
      %s126 = ssub.s32 65536, 65536
      %127 = vsyncadd [#allocation18], %s126
      %s128 = sshll.u32 [#allocation17], 4
      %s129 = int_to_ptr.vmem [resolvable:$true] %s128
      %134 = dma.hbm_to_vmem [thread:$0]  %s9, 65536, %s129, [#allocation18], 512, 512, 32
    $region41: #{tpu_custom_call.1} parent=1 // pred_fallthru
      _
    // Predicated region
    $region42: #{tpu_custom_call.1} parent=1 // pred_check
      _
    $region43: #{tpu_custom_call.1} parent=1 // pred_check_branch
      %136 = sbr.rel (0) target = $region45
    $region44: #{tpu_custom_call.1} parent=1 // pred_region
      %s138 = ssub.s32 128, 128
      %139 = vsyncadd [#allocation18], %s138
      %s141 = sshll.u32 [#allocation19], 4
      %s142 = int_to_ptr.vmem [resolvable:$true] %s141
      %144 = dma.hbm_to_vmem [thread:$0]  %s10, 128, %s142, [#allocation18]
    $region45: #{tpu_custom_call.1} parent=1 // pred_fallthru
      _
    // Predicated region
    $region46: #{tpu_custom_call.1} parent=1 // pred_check
      _
    $region47: #{tpu_custom_call.1} parent=1 // pred_check_branch
      %146 = sbr.rel (0) target = $region49
    $region48: #{tpu_custom_call.1} parent=1 // pred_region
      %147 = dma.done [#allocation3], 256
    $region49: #{tpu_custom_call.1} parent=1 // pred_fallthru
      _
    // Predicated region
    $region50: #{tpu_custom_call.1} parent=1 // pred_check
      _
    $region51: #{tpu_custom_call.1} parent=1 // pred_check_branch
      %149 = sbr.rel (0) target = $region53
    $region52: #{tpu_custom_call.1} parent=1 // pred_region
      %150 = dma.done [#allocation6], 2048
    $region53: #{tpu_custom_call.1} parent=1 // pred_fallthru
      _
    // Predicated region
    $region54: #{tpu_custom_call.1} parent=1 // pred_check
      _
    $region55: #{tpu_custom_call.1} parent=1 // pred_check_branch
      %152 = sbr.rel (0) target = $region57
    $region56: #{tpu_custom_call.1} parent=1 // pred_region
      %153 = dma.done [#allocation6], 32
    $region57: #{tpu_custom_call.1} parent=1 // pred_fallthru
      _
    // Predicated region
    $region58: #{tpu_custom_call.1} parent=1 // pred_check
      _
    $region59: #{tpu_custom_call.1} parent=1 // pred_check_branch
      %155 = sbr.rel (0) target = $region61
    $region60: #{tpu_custom_call.1} parent=1 // pred_region
      %156 = dma.done [#allocation9], 8192
    $region61: #{tpu_custom_call.1} parent=1 // pred_fallthru
      _
    // Predicated region
    $region62: #{tpu_custom_call.1} parent=1 // pred_check
      _
    $region63: #{tpu_custom_call.1} parent=1 // pred_check_branch
      %158 = sbr.rel (0) target = $region65
    $region64: #{tpu_custom_call.1} parent=1 // pred_region
      %159 = dma.done [#allocation9], 64
    $region65: #{tpu_custom_call.1} parent=1 // pred_fallthru
      _
    // Predicated region
    $region66: #{tpu_custom_call.1} parent=1 // pred_check
      _
    $region67: #{tpu_custom_call.1} parent=1 // pred_check_branch
      %161 = sbr.rel (0) target = $region69
    $region68: #{tpu_custom_call.1} parent=1 // pred_region
      %162 = dma.done [#allocation12], 16384
    $region69: #{tpu_custom_call.1} parent=1 // pred_fallthru
      _
    // Predicated region
    $region70: #{tpu_custom_call.1} parent=1 // pred_check
      _
    $region71: #{tpu_custom_call.1} parent=1 // pred_check_branch
      %164 = sbr.rel (0) target = $region73
    $region72: #{tpu_custom_call.1} parent=1 // pred_region
      %165 = dma.done [#allocation12], 64
    $region73: #{tpu_custom_call.1} parent=1 // pred_fallthru
      _
    // Predicated region
    $region74: #{tpu_custom_call.1} parent=1 // pred_check
      _
    $region75: #{tpu_custom_call.1} parent=1 // pred_check_branch
      %167 = sbr.rel (0) target = $region77
    $region76: #{tpu_custom_call.1} parent=1 // pred_region
      %168 = dma.done [#allocation15], 32768
    $region77: #{tpu_custom_call.1} parent=1 // pred_fallthru
      _
    // Predicated region
    $region78: #{tpu_custom_call.1} parent=1 // pred_check
      _
    $region79: #{tpu_custom_call.1} parent=1 // pred_check_branch
      %170 = sbr.rel (0) target = $region81
    $region80: #{tpu_custom_call.1} parent=1 // pred_region
      %171 = dma.done [#allocation15], 128
    $region81: #{tpu_custom_call.1} parent=1 // pred_fallthru
      _
    // Predicated region
    $region82: #{tpu_custom_call.1} parent=1 // pred_check
      _
    $region83: #{tpu_custom_call.1} parent=1 // pred_check_branch
      %173 = sbr.rel (0) target = $region85
    $region84: #{tpu_custom_call.1} parent=1 // pred_region
      %174 = dma.done [#allocation18], 65536
    $region85: #{tpu_custom_call.1} parent=1 // pred_fallthru
      _
    // Predicated region
    $region86: #{tpu_custom_call.1} parent=1 // pred_check
      _
    $region87: #{tpu_custom_call.1} parent=1 // pred_check_branch
      %176 = sbr.rel (0) target = $region89
    $region88: #{tpu_custom_call.1} parent=1 // pred_region
      %177 = dma.done [#allocation18], 128
    $region89: #{tpu_custom_call.1} parent=1 // pred_fallthru
      _
    %v179 = vld [vmem:[#allocation2] sm:$0xff]
    %v180 = vld [vmem:[#allocation2 + $0x8] sm:$0xff]
    %v181 = vpack.c.bf16 %v180, %v179
    %v182 = vld [vmem:[#allocation5] sm:$0xff]
    %v183 = vld [vmem:[#allocation5 + $0x8] sm:$0xff]
    %v184 = vld [vmem:[#allocation5 + $0x10] sm:$0xff]
    %v185 = vld [vmem:[#allocation5 + $0x18] sm:$0xff]
    %v186 = vld [vmem:[#allocation5 + $0x20] sm:$0xff]
    %v187 = vld [vmem:[#allocation5 + $0x28] sm:$0xff]
    %v188 = vld [vmem:[#allocation5 + $0x30] sm:$0xff]
    %v189 = vld [vmem:[#allocation5 + $0x38] sm:$0xff]
    %v190 = vld [vmem:[#allocation5 + $0x40] sm:$0xff]
    %v191 = vld [vmem:[#allocation5 + $0x48] sm:$0xff]
    %v192 = vld [vmem:[#allocation5 + $0x50] sm:$0xff]
    %v193 = vld [vmem:[#allocation5 + $0x58] sm:$0xff]
    %v194 = vld [vmem:[#allocation5 + $0x60] sm:$0xff]
    %v195 = vld [vmem:[#allocation5 + $0x68] sm:$0xff]
    %v196 = vld [vmem:[#allocation5 + $0x70] sm:$0xff]
    %v197 = vld [vmem:[#allocation5 + $0x78] sm:$0xff]
    %v198 = vld [vmem:[#allocation7] sm:$0x3]
    %v200 = vlaneseq
    %v201 = vshrl.u32 %v200, 7
    %v202 = vsub.s32 0, %v201
    %v203 = vrot.slane %v198, %v202
    %v204 = vlaneseq
    %v205 = vshrl.u32 %v204, 7
    %v206 = vsub.s32 1, %v205
    %v207 = vrot.slane %v198, %v206
    %v226 = vunpack.c.l.b16 %v182
    %v227 = vunpack.c.h.b16 %v182
    %v228 = vunpack.c.l.b16 %v183
    %v229 = vunpack.c.h.b16 %v183
    %v230 = vunpack.c.l.b16 %v184
    %v231 = vunpack.c.h.b16 %v184
    %v232 = vunpack.c.l.b16 %v185
    %v233 = vunpack.c.h.b16 %v185
    %v234 = vunpack.c.l.b16 %v186
    %v235 = vunpack.c.h.b16 %v186
    %v236 = vunpack.c.l.b16 %v187
    %v237 = vunpack.c.h.b16 %v187
    %v238 = vunpack.c.l.b16 %v188
    %v239 = vunpack.c.h.b16 %v188
    %v240 = vunpack.c.l.b16 %v189
    %v241 = vunpack.c.h.b16 %v189
    %v242 = vunpack.c.l.b16 %v190
    %v243 = vunpack.c.h.b16 %v190
    %v244 = vunpack.c.l.b16 %v191
    %v245 = vunpack.c.h.b16 %v191
    %v246 = vunpack.c.l.b16 %v192
    %v247 = vunpack.c.h.b16 %v192
    %v248 = vunpack.c.l.b16 %v193
    %v249 = vunpack.c.h.b16 %v193
    %v250 = vunpack.c.l.b16 %v194
    %v251 = vunpack.c.h.b16 %v194
    %v252 = vunpack.c.l.b16 %v195
    %v253 = vunpack.c.h.b16 %v195
    %v254 = vunpack.c.l.b16 %v196
    %v255 = vunpack.c.h.b16 %v196
    %v256 = vunpack.c.l.b16 %v197
    %v257 = vunpack.c.h.b16 %v197
    %v258 = vpack.c.b16 %v228, %v226
    %v259 = vpack.c.b16 %v229, %v227
    %v260 = vpack.c.b16 %v232, %v230
    %v261 = vpack.c.b16 %v233, %v231
    %v262 = vpack.c.b16 %v236, %v234
    %v263 = vpack.c.b16 %v237, %v235
    %v264 = vpack.c.b16 %v240, %v238
    %v265 = vpack.c.b16 %v241, %v239
    %v266 = vpack.c.b16 %v244, %v242
    %v267 = vpack.c.b16 %v245, %v243
    %v268 = vpack.c.b16 %v248, %v246
    %v269 = vpack.c.b16 %v249, %v247
    %v270 = vpack.c.b16 %v252, %v250
    %v271 = vpack.c.b16 %v253, %v251
    %v272 = vpack.c.b16 %v256, %v254
    %v273 = vpack.c.b16 %v257, %v255
    %290 = vmatprep.subr.bf16.mxu0 %v259
    %291 = vmatpush1.bf16.msra.mxu0 %v258
    %292 = vmatprep.subr.bf16.mxu0 %v261
    %293 = vmatpush1.bf16.msra.mxu0 %v260
    %294 = vmatprep.subr.bf16.mxu0 %v263
    %295 = vmatpush1.bf16.msra.mxu0 %v262
    %296 = vmatprep.subr.bf16.mxu0 %v265
    %297 = vmatpush1.bf16.msra.mxu0 %v264
    %298 = vmatprep.subr.bf16.mxu0 %v267
    %299 = vmatpush1.bf16.msra.mxu0 %v266
    %300 = vmatprep.subr.bf16.mxu0 %v269
    %301 = vmatpush1.bf16.msra.mxu0 %v268
    %302 = vmatprep.subr.bf16.mxu0 %v271
    %303 = vmatpush1.bf16.msra.mxu0 %v270
    %304 = vmatprep.subr.bf16.mxu0 %v273
    %305 = vmatpush1.bf16.msra.mxu0 %v272
    %306 = vmatprep.subr.bf16.mxu0 0
    %307 = vmatpush1.bf16.msra.mxu0 0
    %308 = vmatprep.subr.bf16.mxu0 0
    %309 = vmatpush1.bf16.msra.mxu0 0
    %310 = vmatprep.subr.bf16.mxu0 0
    %311 = vmatpush1.bf16.msra.mxu0 0
    %312 = vmatprep.subr.bf16.mxu0 0
    %313 = vmatpush1.bf16.msra.mxu0 0
    %314 = vmatprep.subr.bf16.mxu0 0
    %315 = vmatpush1.bf16.msra.mxu0 0
    %316 = vmatprep.subr.bf16.mxu0 0
    %317 = vmatpush1.bf16.msra.mxu0 0
    %318 = vmatprep.subr.bf16.mxu0 0
    %319 = vmatpush1.bf16.msra.mxu0 0
    %320 = vmatprep.subr.bf16.mxu0 0
    %321 = vmatpush1.bf16.msra.mxu0 0
    %322 = vmatprep.mubr.bf16.mxu0 0
    %323 = vmatmul.mubr.bf16.gmra.mrb[0].mxu0 %v181
    %v324 = vpop.f32.mrb[0].mxu0
    %v325 = vadd.f32 %v203, %v324
    %v326 = vpop.f32.mrb[0].mxu0
    %v327 = vadd.f32 %v207, %v326
    %v328 = vpop.f32.mrb[0].mxu0
    %v329 = vadd.f32 %v203, %v328
    %v330 = vpop.f32.mrb[0].mxu0
    %v331 = vadd.f32 %v207, %v330
    %332 = vdwg.mxu0
    %vm333 = vcmp.gt.f32.partialorder %v325, 0.0
    %vm334 = vcmp.gt.f32.partialorder %v327, 0.0
    %vm335 = vcmp.gt.f32.partialorder %v329, 0.0
    %vm336 = vcmp.gt.f32.partialorder %v331, 0.0
    %v337 = vmul.f32 %v325, 0.2
    %v338 = vmul.f32 %v327, 0.2
    %v339 = vmul.f32 %v329, 0.2
    %v340 = vmul.f32 %v331, 0.2
    %v341 = vsel %vm333, %v325, %v337
    %v342 = vsel %vm334, %v327, %v338
    %v343 = vsel %vm335, %v329, %v339
    %v344 = vsel %vm336, %v331, %v340
    %v345 = vpack.c.bf16 %v343, %v341
    %v346 = vpack.c.bf16 %v344, %v342
    %v347 = vld [vmem:[#allocation8] sm:$0xff]
    %v348 = vld [vmem:[#allocation8 + $0x8] sm:$0xff]
    %v349 = vld [vmem:[#allocation8 + $0x10] sm:$0xff]
    %v350 = vld [vmem:[#allocation8 + $0x18] sm:$0xff]
    %v351 = vld [vmem:[#allocation8 + $0x20] sm:$0xff]
    %v352 = vld [vmem:[#allocation8 + $0x28] sm:$0xff]
    %v353 = vld [vmem:[#allocation8 + $0x30] sm:$0xff]
    %v354 = vld [vmem:[#allocation8 + $0x38] sm:$0xff]
    %v355 = vld [vmem:[#allocation8 + $0x40] sm:$0xff]
    %v356 = vld [vmem:[#allocation8 + $0x48] sm:$0xff]
    %v357 = vld [vmem:[#allocation8 + $0x50] sm:$0xff]
    %v358 = vld [vmem:[#allocation8 + $0x58] sm:$0xff]
    %v359 = vld [vmem:[#allocation8 + $0x60] sm:$0xff]
    %v360 = vld [vmem:[#allocation8 + $0x68] sm:$0xff]
    %v361 = vld [vmem:[#allocation8 + $0x70] sm:$0xff]
    %v362 = vld [vmem:[#allocation8 + $0x78] sm:$0xff]
    %v363 = vld [vmem:[#allocation8 + $0x80] sm:$0xff]
    %v364 = vld [vmem:[#allocation8 + $0x88] sm:$0xff]
    %v365 = vld [vmem:[#allocation8 + $0x90] sm:$0xff]
    %v366 = vld [vmem:[#allocation8 + $0x98] sm:$0xff]
    %v367 = vld [vmem:[#allocation8 + $0xa0] sm:$0xff]
    %v368 = vld [vmem:[#allocation8 + $0xa8] sm:$0xff]
    %v369 = vld [vmem:[#allocation8 + $0xb0] sm:$0xff]
    %v370 = vld [vmem:[#allocation8 + $0xb8] sm:$0xff]
    %v371 = vld [vmem:[#allocation8 + $0xc0] sm:$0xff]
    %v372 = vld [vmem:[#allocation8 + $0xc8] sm:$0xff]
    %v373 = vld [vmem:[#allocation8 + $0xd0] sm:$0xff]
    %v374 = vld [vmem:[#allocation8 + $0xd8] sm:$0xff]
    %v375 = vld [vmem:[#allocation8 + $0xe0] sm:$0xff]
    %v376 = vld [vmem:[#allocation8 + $0xe8] sm:$0xff]
    %v377 = vld [vmem:[#allocation8 + $0xf0] sm:$0xff]
    %v378 = vld [vmem:[#allocation8 + $0xf8] sm:$0xff]
    %v379 = vld [vmem:[#allocation8 + $0x100] sm:$0xff]
    %v380 = vld [vmem:[#allocation8 + $0x108] sm:$0xff]
    %v381 = vld [vmem:[#allocation8 + $0x110] sm:$0xff]
    %v382 = vld [vmem:[#allocation8 + $0x118] sm:$0xff]
    %v383 = vld [vmem:[#allocation8 + $0x120] sm:$0xff]
    %v384 = vld [vmem:[#allocation8 + $0x128] sm:$0xff]
    %v385 = vld [vmem:[#allocation8 + $0x130] sm:$0xff]
    %v386 = vld [vmem:[#allocation8 + $0x138] sm:$0xff]
    %v387 = vld [vmem:[#allocation8 + $0x140] sm:$0xff]
    %v388 = vld [vmem:[#allocation8 + $0x148] sm:$0xff]
    %v389 = vld [vmem:[#allocation8 + $0x150] sm:$0xff]
    %v390 = vld [vmem:[#allocation8 + $0x158] sm:$0xff]
    %v391 = vld [vmem:[#allocation8 + $0x160] sm:$0xff]
    %v392 = vld [vmem:[#allocation8 + $0x168] sm:$0xff]
    %v393 = vld [vmem:[#allocation8 + $0x170] sm:$0xff]
    %v394 = vld [vmem:[#allocation8 + $0x178] sm:$0xff]
    %v395 = vld [vmem:[#allocation8 + $0x180] sm:$0xff]
    %v396 = vld [vmem:[#allocation8 + $0x188] sm:$0xff]
    %v397 = vld [vmem:[#allocation8 + $0x190] sm:$0xff]
    %v398 = vld [vmem:[#allocation8 + $0x198] sm:$0xff]
    %v399 = vld [vmem:[#allocation8 + $0x1a0] sm:$0xff]
    %v400 = vld [vmem:[#allocation8 + $0x1a8] sm:$0xff]
    %v401 = vld [vmem:[#allocation8 + $0x1b0] sm:$0xff]
    %v402 = vld [vmem:[#allocation8 + $0x1b8] sm:$0xff]
    %v403 = vld [vmem:[#allocation8 + $0x1c0] sm:$0xff]
    %v404 = vld [vmem:[#allocation8 + $0x1c8] sm:$0xff]
    %v405 = vld [vmem:[#allocation8 + $0x1d0] sm:$0xff]
    %v406 = vld [vmem:[#allocation8 + $0x1d8] sm:$0xff]
    %v407 = vld [vmem:[#allocation8 + $0x1e0] sm:$0xff]
    %v408 = vld [vmem:[#allocation8 + $0x1e8] sm:$0xff]
    %v409 = vld [vmem:[#allocation8 + $0x1f0] sm:$0xff]
    %v410 = vld [vmem:[#allocation8 + $0x1f8] sm:$0xff]
    %v411 = vld [vmem:[#allocation10] sm:$0xf]
    %v413 = vlaneseq
    %v414 = vshrl.u32 %v413, 7
    %v415 = vsub.s32 0, %v414
    %v416 = vrot.slane %v411, %v415
    %v417 = vlaneseq
    %v418 = vshrl.u32 %v417, 7
    %v419 = vsub.s32 1, %v418
    %v420 = vrot.slane %v411, %v419
    %v421 = vlaneseq
    %v422 = vshrl.u32 %v421, 7
    %v423 = vsub.s32 2, %v422
    %v424 = vrot.slane %v411, %v423
    %v425 = vlaneseq
    %v426 = vshrl.u32 %v425, 7
    %v427 = vsub.s32 3, %v426
    %v428 = vrot.slane %v411, %v427
    %v497 = vunpack.c.l.b16 %v347
    %v498 = vunpack.c.h.b16 %v347
    %v499 = vunpack.c.l.b16 %v348
    %v500 = vunpack.c.h.b16 %v348
    %v501 = vunpack.c.l.b16 %v349
    %v502 = vunpack.c.h.b16 %v349
    %v503 = vunpack.c.l.b16 %v350
    %v504 = vunpack.c.h.b16 %v350
    %v505 = vunpack.c.l.b16 %v351
    %v506 = vunpack.c.h.b16 %v351
    %v507 = vunpack.c.l.b16 %v352
    %v508 = vunpack.c.h.b16 %v352
    %v509 = vunpack.c.l.b16 %v353
    %v510 = vunpack.c.h.b16 %v353
    %v511 = vunpack.c.l.b16 %v354
    %v512 = vunpack.c.h.b16 %v354
    %v513 = vunpack.c.l.b16 %v355
    %v514 = vunpack.c.h.b16 %v355
    %v515 = vunpack.c.l.b16 %v356
    %v516 = vunpack.c.h.b16 %v356
    %v517 = vunpack.c.l.b16 %v357
    %v518 = vunpack.c.h.b16 %v357
    %v519 = vunpack.c.l.b16 %v358
    %v520 = vunpack.c.h.b16 %v358
    %v521 = vunpack.c.l.b16 %v359
    %v522 = vunpack.c.h.b16 %v359
    %v523 = vunpack.c.l.b16 %v360
    %v524 = vunpack.c.h.b16 %v360
    %v525 = vunpack.c.l.b16 %v361
    %v526 = vunpack.c.h.b16 %v361
    %v527 = vunpack.c.l.b16 %v362
    %v528 = vunpack.c.h.b16 %v362
    %v529 = vunpack.c.l.b16 %v363
    %v530 = vunpack.c.h.b16 %v363
    %v531 = vunpack.c.l.b16 %v364
    %v532 = vunpack.c.h.b16 %v364
    %v533 = vunpack.c.l.b16 %v365
    %v534 = vunpack.c.h.b16 %v365
    %v535 = vunpack.c.l.b16 %v366
    %v536 = vunpack.c.h.b16 %v366
    %v537 = vunpack.c.l.b16 %v367
    %v538 = vunpack.c.h.b16 %v367
    %v539 = vunpack.c.l.b16 %v368
    %v540 = vunpack.c.h.b16 %v368
    %v541 = vunpack.c.l.b16 %v369
    %v542 = vunpack.c.h.b16 %v369
    %v543 = vunpack.c.l.b16 %v370
    %v544 = vunpack.c.h.b16 %v370
    %v545 = vunpack.c.l.b16 %v371
    %v546 = vunpack.c.h.b16 %v371
    %v547 = vunpack.c.l.b16 %v372
    %v548 = vunpack.c.h.b16 %v372
    %v549 = vunpack.c.l.b16 %v373
    %v550 = vunpack.c.h.b16 %v373
    %v551 = vunpack.c.l.b16 %v374
    %v552 = vunpack.c.h.b16 %v374
    %v553 = vunpack.c.l.b16 %v375
    %v554 = vunpack.c.h.b16 %v375
    %v555 = vunpack.c.l.b16 %v376
    %v556 = vunpack.c.h.b16 %v376
    %v557 = vunpack.c.l.b16 %v377
    %v558 = vunpack.c.h.b16 %v377
    %v559 = vunpack.c.l.b16 %v378
    %v560 = vunpack.c.h.b16 %v378
    %v561 = vunpack.c.l.b16 %v379
    %v562 = vunpack.c.h.b16 %v379
    %v563 = vunpack.c.l.b16 %v380
    %v564 = vunpack.c.h.b16 %v380
    %v565 = vunpack.c.l.b16 %v381
    %v566 = vunpack.c.h.b16 %v381
    %v567 = vunpack.c.l.b16 %v382
    %v568 = vunpack.c.h.b16 %v382
    %v569 = vunpack.c.l.b16 %v383
    %v570 = vunpack.c.h.b16 %v383
    %v571 = vunpack.c.l.b16 %v384
    %v572 = vunpack.c.h.b16 %v384
    %v573 = vunpack.c.l.b16 %v385
    %v574 = vunpack.c.h.b16 %v385
    %v575 = vunpack.c.l.b16 %v386
    %v576 = vunpack.c.h.b16 %v386
    %v577 = vunpack.c.l.b16 %v387
    %v578 = vunpack.c.h.b16 %v387
    %v579 = vunpack.c.l.b16 %v388
    %v580 = vunpack.c.h.b16 %v388
    %v581 = vunpack.c.l.b16 %v389
    %v582 = vunpack.c.h.b16 %v389
    %v583 = vunpack.c.l.b16 %v390
    %v584 = vunpack.c.h.b16 %v390
    %v585 = vunpack.c.l.b16 %v391
    %v586 = vunpack.c.h.b16 %v391
    %v587 = vunpack.c.l.b16 %v392
    %v588 = vunpack.c.h.b16 %v392
    %v589 = vunpack.c.l.b16 %v393
    %v590 = vunpack.c.h.b16 %v393
    %v591 = vunpack.c.l.b16 %v394
    %v592 = vunpack.c.h.b16 %v394
    %v593 = vunpack.c.l.b16 %v395
    %v594 = vunpack.c.h.b16 %v395
    %v595 = vunpack.c.l.b16 %v396
    %v596 = vunpack.c.h.b16 %v396
    %v597 = vunpack.c.l.b16 %v397
    %v598 = vunpack.c.h.b16 %v397
    %v599 = vunpack.c.l.b16 %v398
    %v600 = vunpack.c.h.b16 %v398
    %v601 = vunpack.c.l.b16 %v399
    %v602 = vunpack.c.h.b16 %v399
    %v603 = vunpack.c.l.b16 %v400
    %v604 = vunpack.c.h.b16 %v400
    %v605 = vunpack.c.l.b16 %v401
    %v606 = vunpack.c.h.b16 %v401
    %v607 = vunpack.c.l.b16 %v402
    %v608 = vunpack.c.h.b16 %v402
    %v609 = vunpack.c.l.b16 %v403
    %v610 = vunpack.c.h.b16 %v403
    %v611 = vunpack.c.l.b16 %v404
    %v612 = vunpack.c.h.b16 %v404
    %v613 = vunpack.c.l.b16 %v405
    %v614 = vunpack.c.h.b16 %v405
    %v615 = vunpack.c.l.b16 %v406
    %v616 = vunpack.c.h.b16 %v406
    %v617 = vunpack.c.l.b16 %v407
    %v618 = vunpack.c.h.b16 %v407
    %v619 = vunpack.c.l.b16 %v408
    %v620 = vunpack.c.h.b16 %v408
    %v621 = vunpack.c.l.b16 %v409
    %v622 = vunpack.c.h.b16 %v409
    %v623 = vunpack.c.l.b16 %v410
    %v624 = vunpack.c.h.b16 %v410
    %v625 = vpack.c.b16 %v501, %v497
    %v626 = vpack.c.b16 %v502, %v498
    %v627 = vpack.c.b16 %v503, %v499
    %v628 = vpack.c.b16 %v504, %v500
    %v629 = vpack.c.b16 %v509, %v505
    %v630 = vpack.c.b16 %v510, %v506
    %v631 = vpack.c.b16 %v511, %v507
    %v632 = vpack.c.b16 %v512, %v508
    %v633 = vpack.c.b16 %v517, %v513
    %v634 = vpack.c.b16 %v518, %v514
    %v635 = vpack.c.b16 %v519, %v515
    %v636 = vpack.c.b16 %v520, %v516
    %v637 = vpack.c.b16 %v525, %v521
    %v638 = vpack.c.b16 %v526, %v522
    %v639 = vpack.c.b16 %v527, %v523
    %v640 = vpack.c.b16 %v528, %v524
    %v641 = vpack.c.b16 %v533, %v529
    %v642 = vpack.c.b16 %v534, %v530
    %v643 = vpack.c.b16 %v535, %v531
    %v644 = vpack.c.b16 %v536, %v532
    %v645 = vpack.c.b16 %v541, %v537
    %v646 = vpack.c.b16 %v542, %v538
    %v647 = vpack.c.b16 %v543, %v539
    %v648 = vpack.c.b16 %v544, %v540
    %v649 = vpack.c.b16 %v549, %v545
    %v650 = vpack.c.b16 %v550, %v546
    %v651 = vpack.c.b16 %v551, %v547
    %v652 = vpack.c.b16 %v552, %v548
    %v653 = vpack.c.b16 %v557, %v553
    %v654 = vpack.c.b16 %v558, %v554
    %v655 = vpack.c.b16 %v559, %v555
    %v656 = vpack.c.b16 %v560, %v556
    %v657 = vpack.c.b16 %v565, %v561
    %v658 = vpack.c.b16 %v566, %v562
    %v659 = vpack.c.b16 %v567, %v563
    %v660 = vpack.c.b16 %v568, %v564
    %v661 = vpack.c.b16 %v573, %v569
    %v662 = vpack.c.b16 %v574, %v570
    %v663 = vpack.c.b16 %v575, %v571
    %v664 = vpack.c.b16 %v576, %v572
    %v665 = vpack.c.b16 %v581, %v577
    %v666 = vpack.c.b16 %v582, %v578
    %v667 = vpack.c.b16 %v583, %v579
    %v668 = vpack.c.b16 %v584, %v580
    %v669 = vpack.c.b16 %v589, %v585
    %v670 = vpack.c.b16 %v590, %v586
    %v671 = vpack.c.b16 %v591, %v587
    %v672 = vpack.c.b16 %v592, %v588
    %v673 = vpack.c.b16 %v597, %v593
    %v674 = vpack.c.b16 %v598, %v594
    %v675 = vpack.c.b16 %v599, %v595
    %v676 = vpack.c.b16 %v600, %v596
    %v677 = vpack.c.b16 %v605, %v601
    %v678 = vpack.c.b16 %v606, %v602
    %v679 = vpack.c.b16 %v607, %v603
    %v680 = vpack.c.b16 %v608, %v604
    %v681 = vpack.c.b16 %v613, %v609
    %v682 = vpack.c.b16 %v614, %v610
    %v683 = vpack.c.b16 %v615, %v611
    %v684 = vpack.c.b16 %v616, %v612
    %v685 = vpack.c.b16 %v621, %v617
    %v686 = vpack.c.b16 %v622, %v618
    %v687 = vpack.c.b16 %v623, %v619
    %v688 = vpack.c.b16 %v624, %v620
    %753 = vmatprep.subr.bf16.mxu0 %v626
    %754 = vmatpush1.bf16.msra.mxu0 %v625
    %755 = vmatprep.subr.bf16.mxu0 %v630
    %756 = vmatpush1.bf16.msra.mxu0 %v629
    %757 = vmatprep.subr.bf16.mxu0 %v634
    %758 = vmatpush1.bf16.msra.mxu0 %v633
    %759 = vmatprep.subr.bf16.mxu0 %v638
    %760 = vmatpush1.bf16.msra.mxu0 %v637
    %761 = vmatprep.subr.bf16.mxu0 %v642
    %762 = vmatpush1.bf16.msra.mxu0 %v641
    %763 = vmatprep.subr.bf16.mxu0 %v646
    %764 = vmatpush1.bf16.msra.mxu0 %v645
    %765 = vmatprep.subr.bf16.mxu0 %v650
    %766 = vmatpush1.bf16.msra.mxu0 %v649
    %767 = vmatprep.subr.bf16.mxu0 %v654
    %768 = vmatpush1.bf16.msra.mxu0 %v653
    %769 = vmatprep.subr.bf16.mxu0 %v658
    %770 = vmatpush1.bf16.msra.mxu0 %v657
    %771 = vmatprep.subr.bf16.mxu0 %v662
    %772 = vmatpush1.bf16.msra.mxu0 %v661
    %773 = vmatprep.subr.bf16.mxu0 %v666
    %774 = vmatpush1.bf16.msra.mxu0 %v665
    %775 = vmatprep.subr.bf16.mxu0 %v670
    %776 = vmatpush1.bf16.msra.mxu0 %v669
    %777 = vmatprep.subr.bf16.mxu0 %v674
    %778 = vmatpush1.bf16.msra.mxu0 %v673
    %779 = vmatprep.subr.bf16.mxu0 %v678
    %780 = vmatpush1.bf16.msra.mxu0 %v677
    %781 = vmatprep.subr.bf16.mxu0 %v682
    %782 = vmatpush1.bf16.msra.mxu0 %v681
    %783 = vmatprep.subr.bf16.mxu0 %v686
    %784 = vmatpush1.bf16.msra.mxu0 %v685
    %785 = vmatprep.mubr.bf16.mxu0 %v346
    %786 = vmatmul.mubr.bf16.gmra.mrb[0].mxu0 %v345
    %v787 = vpop.f32.mrb[0].mxu0
    %v788 = vadd.f32 %v416, %v787
    %v789 = vpop.f32.mrb[0].mxu0
    %v790 = vadd.f32 %v420, %v789
    %v791 = vpop.f32.mrb[0].mxu0
    %v792 = vadd.f32 %v416, %v791
    %v793 = vpop.f32.mrb[0].mxu0
    %v794 = vadd.f32 %v420, %v793
    %795 = vdwg.mxu0
    %796 = vmatprep.subr.bf16.mxu0 %v628
    %797 = vmatpush1.bf16.msra.mxu0 %v627
    %798 = vmatprep.subr.bf16.mxu0 %v632
    %799 = vmatpush1.bf16.msra.mxu0 %v631
    %800 = vmatprep.subr.bf16.mxu0 %v636
    %801 = vmatpush1.bf16.msra.mxu0 %v635
    %802 = vmatprep.subr.bf16.mxu0 %v640
    %803 = vmatpush1.bf16.msra.mxu0 %v639
    %804 = vmatprep.subr.bf16.mxu0 %v644
    %805 = vmatpush1.bf16.msra.mxu0 %v643
    %806 = vmatprep.subr.bf16.mxu0 %v648
    %807 = vmatpush1.bf16.msra.mxu0 %v647
    %808 = vmatprep.subr.bf16.mxu0 %v652
    %809 = vmatpush1.bf16.msra.mxu0 %v651
    %810 = vmatprep.subr.bf16.mxu0 %v656
    %811 = vmatpush1.bf16.msra.mxu0 %v655
    %812 = vmatprep.subr.bf16.mxu0 %v660
    %813 = vmatpush1.bf16.msra.mxu0 %v659
    %814 = vmatprep.subr.bf16.mxu0 %v664
    %815 = vmatpush1.bf16.msra.mxu0 %v663
    %816 = vmatprep.subr.bf16.mxu0 %v668
    %817 = vmatpush1.bf16.msra.mxu0 %v667
    %818 = vmatprep.subr.bf16.mxu0 %v672
    %819 = vmatpush1.bf16.msra.mxu0 %v671
    %820 = vmatprep.subr.bf16.mxu0 %v676
    %821 = vmatpush1.bf16.msra.mxu0 %v675
    %822 = vmatprep.subr.bf16.mxu0 %v680
    %823 = vmatpush1.bf16.msra.mxu0 %v679
    %824 = vmatprep.subr.bf16.mxu0 %v684
    %825 = vmatpush1.bf16.msra.mxu0 %v683
    %826 = vmatprep.subr.bf16.mxu0 %v688
    %827 = vmatpush1.bf16.msra.mxu0 %v687
    %828 = vmatprep.mubr.bf16.mxu0 %v346
    %829 = vmatmul.mubr.bf16.gmra.mrb[0].mxu0 %v345
    %v830 = vpop.f32.mrb[0].mxu0
    %v831 = vadd.f32 %v424, %v830
    %v832 = vpop.f32.mrb[0].mxu0
    %v833 = vadd.f32 %v428, %v832
    %v834 = vpop.f32.mrb[0].mxu0
    %v835 = vadd.f32 %v424, %v834
    %v836 = vpop.f32.mrb[0].mxu0
    %v837 = vadd.f32 %v428, %v836
    %838 = vdwg.mxu0
    %vm839 = vcmp.gt.f32.partialorder %v788, 0.0
    %vm840 = vcmp.gt.f32.partialorder %v790, 0.0
    %vm841 = vcmp.gt.f32.partialorder %v831, 0.0
    %vm842 = vcmp.gt.f32.partialorder %v833, 0.0
    %vm843 = vcmp.gt.f32.partialorder %v792, 0.0
    %vm844 = vcmp.gt.f32.partialorder %v794, 0.0
    %vm845 = vcmp.gt.f32.partialorder %v835, 0.0
    %vm846 = vcmp.gt.f32.partialorder %v837, 0.0
    %v847 = vmul.f32 %v788, 0.2
    %v848 = vmul.f32 %v790, 0.2
    %v849 = vmul.f32 %v831, 0.2
    %v850 = vmul.f32 %v833, 0.2
    %v851 = vmul.f32 %v792, 0.2
    %v852 = vmul.f32 %v794, 0.2
    %v853 = vmul.f32 %v835, 0.2
    %v854 = vmul.f32 %v837, 0.2
    %v855 = vsel %vm839, %v788, %v847
    %v856 = vsel %vm840, %v790, %v848
    %v857 = vsel %vm841, %v831, %v849
    %v858 = vsel %vm842, %v833, %v850
    %v859 = vsel %vm843, %v792, %v851
    %v860 = vsel %vm844, %v794, %v852
    %v861 = vsel %vm845, %v835, %v853
    %v862 = vsel %vm846, %v837, %v854
    %v863 = vpack.c.bf16 %v859, %v855
    %v864 = vpack.c.bf16 %v860, %v856
    %v865 = vpack.c.bf16 %v861, %v857
    %v866 = vpack.c.bf16 %v862, %v858
    %v867 = vld [vmem:[#allocation11] sm:$0xff]
    %v868 = vld [vmem:[#allocation11 + $0x8] sm:$0xff]
    %v869 = vld [vmem:[#allocation11 + $0x10] sm:$0xff]
    %v870 = vld [vmem:[#allocation11 + $0x18] sm:$0xff]
    %v871 = vld [vmem:[#allocation11 + $0x20] sm:$0xff]
    %v872 = vld [vmem:[#allocation11 + $0x28] sm:$0xff]
    %v873 = vld [vmem:[#allocation11 + $0x30] sm:$0xff]
    %v874 = vld [vmem:[#allocation11 + $0x38] sm:$0xff]
    %v875 = vld [vmem:[#allocation11 + $0x40] sm:$0xff]
    %v876 = vld [vmem:[#allocation11 + $0x48] sm:$0xff]
    %v877 = vld [vmem:[#allocation11 + $0x50] sm:$0xff]
    %v878 = vld [vmem:[#allocation11 + $0x58] sm:$0xff]
    %v879 = vld [vmem:[#allocation11 + $0x60] sm:$0xff]
    %v880 = vld [vmem:[#allocation11 + $0x68] sm:$0xff]
    %v881 = vld [vmem:[#allocation11 + $0x70] sm:$0xff]
    %v882 = vld [vmem:[#allocation11 + $0x78] sm:$0xff]
    %v883 = vld [vmem:[#allocation11 + $0x80] sm:$0xff]
    %v884 = vld [vmem:[#allocation11 + $0x88] sm:$0xff]
    %v885 = vld [vmem:[#allocation11 + $0x90] sm:$0xff]
    %v886 = vld [vmem:[#allocation11 + $0x98] sm:$0xff]
    %v887 = vld [vmem:[#allocation11 + $0xa0] sm:$0xff]
    %v888 = vld [vmem:[#allocation11 + $0xa8] sm:$0xff]
    %v889 = vld [vmem:[#allocation11 + $0xb0] sm:$0xff]
    %v890 = vld [vmem:[#allocation11 + $0xb8] sm:$0xff]
    %v891 = vld [vmem:[#allocation11 + $0xc0] sm:$0xff]
    %v892 = vld [vmem:[#allocation11 + $0xc8] sm:$0xff]
    %v893 = vld [vmem:[#allocation11 + $0xd0] sm:$0xff]
    %v894 = vld [vmem:[#allocation11 + $0xd8] sm:$0xff]
    %v895 = vld [vmem:[#allocation11 + $0xe0] sm:$0xff]
    %v896 = vld [vmem:[#allocation11 + $0xe8] sm:$0xff]
    %v897 = vld [vmem:[#allocation11 + $0xf0] sm:$0xff]
    %v898 = vld [vmem:[#allocation11 + $0xf8] sm:$0xff]
    %v899 = vld [vmem:[#allocation11 + $0x100] sm:$0xff]
    %v900 = vld [vmem:[#allocation11 + $0x108] sm:$0xff]
    %v901 = vld [vmem:[#allocation11 + $0x110] sm:$0xff]
    %v902 = vld [vmem:[#allocation11 + $0x118] sm:$0xff]
    %v903 = vld [vmem:[#allocation11 + $0x120] sm:$0xff]
    %v904 = vld [vmem:[#allocation11 + $0x128] sm:$0xff]
    %v905 = vld [vmem:[#allocation11 + $0x130] sm:$0xff]
    %v906 = vld [vmem:[#allocation11 + $0x138] sm:$0xff]
    %v907 = vld [vmem:[#allocation11 + $0x140] sm:$0xff]
    %v908 = vld [vmem:[#allocation11 + $0x148] sm:$0xff]
    %v909 = vld [vmem:[#allocation11 + $0x150] sm:$0xff]
    %v910 = vld [vmem:[#allocation11 + $0x158] sm:$0xff]
    %v911 = vld [vmem:[#allocation11 + $0x160] sm:$0xff]
    %v912 = vld [vmem:[#allocation11 + $0x168] sm:$0xff]
    %v913 = vld [vmem:[#allocation11 + $0x170] sm:$0xff]
    %v914 = vld [vmem:[#allocation11 + $0x178] sm:$0xff]
    %v915 = vld [vmem:[#allocation11 + $0x180] sm:$0xff]
    %v916 = vld [vmem:[#allocation11 + $0x188] sm:$0xff]
    %v917 = vld [vmem:[#allocation11 + $0x190] sm:$0xff]
    %v918 = vld [vmem:[#allocation11 + $0x198] sm:$0xff]
    %v919 = vld [vmem:[#allocation11 + $0x1a0] sm:$0xff]
    %v920 = vld [vmem:[#allocation11 + $0x1a8] sm:$0xff]
    %v921 = vld [vmem:[#allocation11 + $0x1b0] sm:$0xff]
    %v922 = vld [vmem:[#allocation11 + $0x1b8] sm:$0xff]
    %v923 = vld [vmem:[#allocation11 + $0x1c0] sm:$0xff]
    %v924 = vld [vmem:[#allocation11 + $0x1c8] sm:$0xff]
    %v925 = vld [vmem:[#allocation11 + $0x1d0] sm:$0xff]
    %v926 = vld [vmem:[#allocation11 + $0x1d8] sm:$0xff]
    %v927 = vld [vmem:[#allocation11 + $0x1e0] sm:$0xff]
    %v928 = vld [vmem:[#allocation11 + $0x1e8] sm:$0xff]
    %v929 = vld [vmem:[#allocation11 + $0x1f0] sm:$0xff]
    %v930 = vld [vmem:[#allocation11 + $0x1f8] sm:$0xff]
    %v931 = vld [vmem:[#allocation11 + $0x200] sm:$0xff]
    %v932 = vld [vmem:[#allocation11 + $0x208] sm:$0xff]
    %v933 = vld [vmem:[#allocation11 + $0x210] sm:$0xff]
    %v934 = vld [vmem:[#allocation11 + $0x218] sm:$0xff]
    %v935 = vld [vmem:[#allocation11 + $0x220] sm:$0xff]
    %v936 = vld [vmem:[#allocation11 + $0x228] sm:$0xff]
    %v937 = vld [vmem:[#allocation11 + $0x230] sm:$0xff]
    %v938 = vld [vmem:[#allocation11 + $0x238] sm:$0xff]
    %v939 = vld [vmem:[#allocation11 + $0x240] sm:$0xff]
    %v940 = vld [vmem:[#allocation11 + $0x248] sm:$0xff]
    %v941 = vld [vmem:[#allocation11 + $0x250] sm:$0xff]
    %v942 = vld [vmem:[#allocation11 + $0x258] sm:$0xff]
    %v943 = vld [vmem:[#allocation11 + $0x260] sm:$0xff]
    %v944 = vld [vmem:[#allocation11 + $0x268] sm:$0xff]
    %v945 = vld [vmem:[#allocation11 + $0x270] sm:$0xff]
    %v946 = vld [vmem:[#allocation11 + $0x278] sm:$0xff]
    %v947 = vld [vmem:[#allocation11 + $0x280] sm:$0xff]
    %v948 = vld [vmem:[#allocation11 + $0x288] sm:$0xff]
    %v949 = vld [vmem:[#allocation11 + $0x290] sm:$0xff]
    %v950 = vld [vmem:[#allocation11 + $0x298] sm:$0xff]
    %v951 = vld [vmem:[#allocation11 + $0x2a0] sm:$0xff]
    %v952 = vld [vmem:[#allocation11 + $0x2a8] sm:$0xff]
    %v953 = vld [vmem:[#allocation11 + $0x2b0] sm:$0xff]
    %v954 = vld [vmem:[#allocation11 + $0x2b8] sm:$0xff]
    %v955 = vld [vmem:[#allocation11 + $0x2c0] sm:$0xff]
    %v956 = vld [vmem:[#allocation11 + $0x2c8] sm:$0xff]
    %v957 = vld [vmem:[#allocation11 + $0x2d0] sm:$0xff]
    %v958 = vld [vmem:[#allocation11 + $0x2d8] sm:$0xff]
    %v959 = vld [vmem:[#allocation11 + $0x2e0] sm:$0xff]
    %v960 = vld [vmem:[#allocation11 + $0x2e8] sm:$0xff]
    %v961 = vld [vmem:[#allocation11 + $0x2f0] sm:$0xff]
    %v962 = vld [vmem:[#allocation11 + $0x2f8] sm:$0xff]
    %v963 = vld [vmem:[#allocation11 + $0x300] sm:$0xff]
    %v964 = vld [vmem:[#allocation11 + $0x308] sm:$0xff]
    %v965 = vld [vmem:[#allocation11 + $0x310] sm:$0xff]
    %v966 = vld [vmem:[#allocation11 + $0x318] sm:$0xff]
    %v967 = vld [vmem:[#allocation11 + $0x320] sm:$0xff]
    %v968 = vld [vmem:[#allocation11 + $0x328] sm:$0xff]
    %v969 = vld [vmem:[#allocation11 + $0x330] sm:$0xff]
    %v970 = vld [vmem:[#allocation11 + $0x338] sm:$0xff]
    %v971 = vld [vmem:[#allocation11 + $0x340] sm:$0xff]
    %v972 = vld [vmem:[#allocation11 + $0x348] sm:$0xff]
    %v973 = vld [vmem:[#allocation11 + $0x350] sm:$0xff]
    %v974 = vld [vmem:[#allocation11 + $0x358] sm:$0xff]
    %v975 = vld [vmem:[#allocation11 + $0x360] sm:$0xff]
    %v976 = vld [vmem:[#allocation11 + $0x368] sm:$0xff]
    %v977 = vld [vmem:[#allocation11 + $0x370] sm:$0xff]
    %v978 = vld [vmem:[#allocation11 + $0x378] sm:$0xff]
    %v979 = vld [vmem:[#allocation11 + $0x380] sm:$0xff]
    %v980 = vld [vmem:[#allocation11 + $0x388] sm:$0xff]
    %v981 = vld [vmem:[#allocation11 + $0x390] sm:$0xff]
    %v982 = vld [vmem:[#allocation11 + $0x398] sm:$0xff]
    %v983 = vld [vmem:[#allocation11 + $0x3a0] sm:$0xff]
    %v984 = vld [vmem:[#allocation11 + $0x3a8] sm:$0xff]
    %v985 = vld [vmem:[#allocation11 + $0x3b0] sm:$0xff]
    %v986 = vld [vmem:[#allocation11 + $0x3b8] sm:$0xff]
    %v987 = vld [vmem:[#allocation11 + $0x3c0] sm:$0xff]
    %v988 = vld [vmem:[#allocation11 + $0x3c8] sm:$0xff]
    %v989 = vld [vmem:[#allocation11 + $0x3d0] sm:$0xff]
    %v990 = vld [vmem:[#allocation11 + $0x3d8] sm:$0xff]
    %v991 = vld [vmem:[#allocation11 + $0x3e0] sm:$0xff]
    %v992 = vld [vmem:[#allocation11 + $0x3e8] sm:$0xff]
    %v993 = vld [vmem:[#allocation11 + $0x3f0] sm:$0xff]
    %v994 = vld [vmem:[#allocation11 + $0x3f8] sm:$0xff]
    %v995 = vld [vmem:[#allocation13] sm:$0xf]
    %v997 = vlaneseq
    %v998 = vshrl.u32 %v997, 7
    %v999 = vsub.s32 0, %v998
    %v1000 = vrot.slane %v995, %v999
    %v1001 = vlaneseq
    %v1002 = vshrl.u32 %v1001, 7
    %v1003 = vsub.s32 1, %v1002
    %v1004 = vrot.slane %v995, %v1003
    %v1005 = vlaneseq
    %v1006 = vshrl.u32 %v1005, 7
    %v1007 = vsub.s32 2, %v1006
    %v1008 = vrot.slane %v995, %v1007
    %v1009 = vlaneseq
    %v1010 = vshrl.u32 %v1009, 7
    %v1011 = vsub.s32 3, %v1010
    %v1012 = vrot.slane %v995, %v1011
    %v1145 = vunpack.c.l.b16 %v867
    %v1146 = vunpack.c.h.b16 %v867
    %v1147 = vunpack.c.l.b16 %v868
    %v1148 = vunpack.c.h.b16 %v868
    %v1149 = vunpack.c.l.b16 %v869
    %v1150 = vunpack.c.h.b16 %v869
    %v1151 = vunpack.c.l.b16 %v870
    %v1152 = vunpack.c.h.b16 %v870
    %v1153 = vunpack.c.l.b16 %v871
    %v1154 = vunpack.c.h.b16 %v871
    %v1155 = vunpack.c.l.b16 %v872
    %v1156 = vunpack.c.h.b16 %v872
    %v1157 = vunpack.c.l.b16 %v873
    %v1158 = vunpack.c.h.b16 %v873
    %v1159 = vunpack.c.l.b16 %v874
    %v1160 = vunpack.c.h.b16 %v874
    %v1161 = vunpack.c.l.b16 %v875
    %v1162 = vunpack.c.h.b16 %v875
    %v1163 = vunpack.c.l.b16 %v876
    %v1164 = vunpack.c.h.b16 %v876
    %v1165 = vunpack.c.l.b16 %v877
    %v1166 = vunpack.c.h.b16 %v877
    %v1167 = vunpack.c.l.b16 %v878
    %v1168 = vunpack.c.h.b16 %v878
    %v1169 = vunpack.c.l.b16 %v879
    %v1170 = vunpack.c.h.b16 %v879
    %v1171 = vunpack.c.l.b16 %v880
    %v1172 = vunpack.c.h.b16 %v880
    %v1173 = vunpack.c.l.b16 %v881
    %v1174 = vunpack.c.h.b16 %v881
    %v1175 = vunpack.c.l.b16 %v882
    %v1176 = vunpack.c.h.b16 %v882
    %v1177 = vunpack.c.l.b16 %v883
    %v1178 = vunpack.c.h.b16 %v883
    %v1179 = vunpack.c.l.b16 %v884
    %v1180 = vunpack.c.h.b16 %v884
    %v1181 = vunpack.c.l.b16 %v885
    %v1182 = vunpack.c.h.b16 %v885
    %v1183 = vunpack.c.l.b16 %v886
    %v1184 = vunpack.c.h.b16 %v886
    %v1185 = vunpack.c.l.b16 %v887
    %v1186 = vunpack.c.h.b16 %v887
    %v1187 = vunpack.c.l.b16 %v888
    %v1188 = vunpack.c.h.b16 %v888
    %v1189 = vunpack.c.l.b16 %v889
    %v1190 = vunpack.c.h.b16 %v889
    %v1191 = vunpack.c.l.b16 %v890
    %v1192 = vunpack.c.h.b16 %v890
    %v1193 = vunpack.c.l.b16 %v891
    %v1194 = vunpack.c.h.b16 %v891
    %v1195 = vunpack.c.l.b16 %v892
    %v1196 = vunpack.c.h.b16 %v892
    %v1197 = vunpack.c.l.b16 %v893
    %v1198 = vunpack.c.h.b16 %v893
    %v1199 = vunpack.c.l.b16 %v894
    %v1200 = vunpack.c.h.b16 %v894
    %v1201 = vunpack.c.l.b16 %v895
    %v1202 = vunpack.c.h.b16 %v895
    %v1203 = vunpack.c.l.b16 %v896
    %v1204 = vunpack.c.h.b16 %v896
    %v1205 = vunpack.c.l.b16 %v897
    %v1206 = vunpack.c.h.b16 %v897
    %v1207 = vunpack.c.l.b16 %v898
    %v1208 = vunpack.c.h.b16 %v898
    %v1209 = vunpack.c.l.b16 %v899
    %v1210 = vunpack.c.h.b16 %v899
    %v1211 = vunpack.c.l.b16 %v900
    %v1212 = vunpack.c.h.b16 %v900
    %v1213 = vunpack.c.l.b16 %v901
    %v1214 = vunpack.c.h.b16 %v901
    %v1215 = vunpack.c.l.b16 %v902
    %v1216 = vunpack.c.h.b16 %v902
    %v1217 = vunpack.c.l.b16 %v903
    %v1218 = vunpack.c.h.b16 %v903
    %v1219 = vunpack.c.l.b16 %v904
    %v1220 = vunpack.c.h.b16 %v904
    %v1221 = vunpack.c.l.b16 %v905
    %v1222 = vunpack.c.h.b16 %v905
    %v1223 = vunpack.c.l.b16 %v906
    %v1224 = vunpack.c.h.b16 %v906
    %v1225 = vunpack.c.l.b16 %v907
    %v1226 = vunpack.c.h.b16 %v907
    %v1227 = vunpack.c.l.b16 %v908
    %v1228 = vunpack.c.h.b16 %v908
    %v1229 = vunpack.c.l.b16 %v909
    %v1230 = vunpack.c.h.b16 %v909
    %v1231 = vunpack.c.l.b16 %v910
    %v1232 = vunpack.c.h.b16 %v910
    %v1233 = vunpack.c.l.b16 %v911
    %v1234 = vunpack.c.h.b16 %v911
    %v1235 = vunpack.c.l.b16 %v912
    %v1236 = vunpack.c.h.b16 %v912
    %v1237 = vunpack.c.l.b16 %v913
    %v1238 = vunpack.c.h.b16 %v913
    %v1239 = vunpack.c.l.b16 %v914
    %v1240 = vunpack.c.h.b16 %v914
    %v1241 = vunpack.c.l.b16 %v915
    %v1242 = vunpack.c.h.b16 %v915
    %v1243 = vunpack.c.l.b16 %v916
    %v1244 = vunpack.c.h.b16 %v916
    %v1245 = vunpack.c.l.b16 %v917
    %v1246 = vunpack.c.h.b16 %v917
    %v1247 = vunpack.c.l.b16 %v918
    %v1248 = vunpack.c.h.b16 %v918
    %v1249 = vunpack.c.l.b16 %v919
    %v1250 = vunpack.c.h.b16 %v919
    %v1251 = vunpack.c.l.b16 %v920
    %v1252 = vunpack.c.h.b16 %v920
    %v1253 = vunpack.c.l.b16 %v921
    %v1254 = vunpack.c.h.b16 %v921
    %v1255 = vunpack.c.l.b16 %v922
    %v1256 = vunpack.c.h.b16 %v922
    %v1257 = vunpack.c.l.b16 %v923
    %v1258 = vunpack.c.h.b16 %v923
    %v1259 = vunpack.c.l.b16 %v924
    %v1260 = vunpack.c.h.b16 %v924
    %v1261 = vunpack.c.l.b16 %v925
    %v1262 = vunpack.c.h.b16 %v925
    %v1263 = vunpack.c.l.b16 %v926
    %v1264 = vunpack.c.h.b16 %v926
    %v1265 = vunpack.c.l.b16 %v927
    %v1266 = vunpack.c.h.b16 %v927
    %v1267 = vunpack.c.l.b16 %v928
    %v1268 = vunpack.c.h.b16 %v928
    %v1269 = vunpack.c.l.b16 %v929
    %v1270 = vunpack.c.h.b16 %v929
    %v1271 = vunpack.c.l.b16 %v930
    %v1272 = vunpack.c.h.b16 %v930
    %v1273 = vunpack.c.l.b16 %v931
    %v1274 = vunpack.c.h.b16 %v931
    %v1275 = vunpack.c.l.b16 %v932
    %v1276 = vunpack.c.h.b16 %v932
    %v1277 = vunpack.c.l.b16 %v933
    %v1278 = vunpack.c.h.b16 %v933
    %v1279 = vunpack.c.l.b16 %v934
    %v1280 = vunpack.c.h.b16 %v934
    %v1281 = vunpack.c.l.b16 %v935
    %v1282 = vunpack.c.h.b16 %v935
    %v1283 = vunpack.c.l.b16 %v936
    %v1284 = vunpack.c.h.b16 %v936
    %v1285 = vunpack.c.l.b16 %v937
    %v1286 = vunpack.c.h.b16 %v937
    %v1287 = vunpack.c.l.b16 %v938
    %v1288 = vunpack.c.h.b16 %v938
    %v1289 = vunpack.c.l.b16 %v939
    %v1290 = vunpack.c.h.b16 %v939
    %v1291 = vunpack.c.l.b16 %v940
    %v1292 = vunpack.c.h.b16 %v940
    %v1293 = vunpack.c.l.b16 %v941
    %v1294 = vunpack.c.h.b16 %v941
    %v1295 = vunpack.c.l.b16 %v942
    %v1296 = vunpack.c.h.b16 %v942
    %v1297 = vunpack.c.l.b16 %v943
    %v1298 = vunpack.c.h.b16 %v943
    %v1299 = vunpack.c.l.b16 %v944
    %v1300 = vunpack.c.h.b16 %v944
    %v1301 = vunpack.c.l.b16 %v945
    %v1302 = vunpack.c.h.b16 %v945
    %v1303 = vunpack.c.l.b16 %v946
    %v1304 = vunpack.c.h.b16 %v946
    %v1305 = vunpack.c.l.b16 %v947
    %v1306 = vunpack.c.h.b16 %v947
    %v1307 = vunpack.c.l.b16 %v948
    %v1308 = vunpack.c.h.b16 %v948
    %v1309 = vunpack.c.l.b16 %v949
    %v1310 = vunpack.c.h.b16 %v949
    %v1311 = vunpack.c.l.b16 %v950
    %v1312 = vunpack.c.h.b16 %v950
    %v1313 = vunpack.c.l.b16 %v951
    %v1314 = vunpack.c.h.b16 %v951
    %v1315 = vunpack.c.l.b16 %v952
    %v1316 = vunpack.c.h.b16 %v952
    %v1317 = vunpack.c.l.b16 %v953
    %v1318 = vunpack.c.h.b16 %v953
    %v1319 = vunpack.c.l.b16 %v954
    %v1320 = vunpack.c.h.b16 %v954
    %v1321 = vunpack.c.l.b16 %v955
    %v1322 = vunpack.c.h.b16 %v955
    %v1323 = vunpack.c.l.b16 %v956
    %v1324 = vunpack.c.h.b16 %v956
    %v1325 = vunpack.c.l.b16 %v957
    %v1326 = vunpack.c.h.b16 %v957
    %v1327 = vunpack.c.l.b16 %v958
    %v1328 = vunpack.c.h.b16 %v958
    %v1329 = vunpack.c.l.b16 %v959
    %v1330 = vunpack.c.h.b16 %v959
    %v1331 = vunpack.c.l.b16 %v960
    %v1332 = vunpack.c.h.b16 %v960
    %v1333 = vunpack.c.l.b16 %v961
    %v1334 = vunpack.c.h.b16 %v961
    %v1335 = vunpack.c.l.b16 %v962
    %v1336 = vunpack.c.h.b16 %v962
    %v1337 = vunpack.c.l.b16 %v963
    %v1338 = vunpack.c.h.b16 %v963
    %v1339 = vunpack.c.l.b16 %v964
    %v1340 = vunpack.c.h.b16 %v964
    %v1341 = vunpack.c.l.b16 %v965
    %v1342 = vunpack.c.h.b16 %v965
    %v1343 = vunpack.c.l.b16 %v966
    %v1344 = vunpack.c.h.b16 %v966
    %v1345 = vunpack.c.l.b16 %v967
    %v1346 = vunpack.c.h.b16 %v967
    %v1347 = vunpack.c.l.b16 %v968
    %v1348 = vunpack.c.h.b16 %v968
    %v1349 = vunpack.c.l.b16 %v969
    %v1350 = vunpack.c.h.b16 %v969
    %v1351 = vunpack.c.l.b16 %v970
    %v1352 = vunpack.c.h.b16 %v970
    %v1353 = vunpack.c.l.b16 %v971
    %v1354 = vunpack.c.h.b16 %v971
    %v1355 = vunpack.c.l.b16 %v972
    %v1356 = vunpack.c.h.b16 %v972
    %v1357 = vunpack.c.l.b16 %v973
    %v1358 = vunpack.c.h.b16 %v973
    %v1359 = vunpack.c.l.b16 %v974
    %v1360 = vunpack.c.h.b16 %v974
    %v1361 = vunpack.c.l.b16 %v975
    %v1362 = vunpack.c.h.b16 %v975
    %v1363 = vunpack.c.l.b16 %v976
    %v1364 = vunpack.c.h.b16 %v976
    %v1365 = vunpack.c.l.b16 %v977
    %v1366 = vunpack.c.h.b16 %v977
    %v1367 = vunpack.c.l.b16 %v978
    %v1368 = vunpack.c.h.b16 %v978
    %v1369 = vunpack.c.l.b16 %v979
    %v1370 = vunpack.c.h.b16 %v979
    %v1371 = vunpack.c.l.b16 %v980
    %v1372 = vunpack.c.h.b16 %v980
    %v1373 = vunpack.c.l.b16 %v981
    %v1374 = vunpack.c.h.b16 %v981
    %v1375 = vunpack.c.l.b16 %v982
    %v1376 = vunpack.c.h.b16 %v982
    %v1377 = vunpack.c.l.b16 %v983
    %v1378 = vunpack.c.h.b16 %v983
    %v1379 = vunpack.c.l.b16 %v984
    %v1380 = vunpack.c.h.b16 %v984
    %v1381 = vunpack.c.l.b16 %v985
    %v1382 = vunpack.c.h.b16 %v985
    %v1383 = vunpack.c.l.b16 %v986
    %v1384 = vunpack.c.h.b16 %v986
    %v1385 = vunpack.c.l.b16 %v987
    %v1386 = vunpack.c.h.b16 %v987
    %v1387 = vunpack.c.l.b16 %v988
    %v1388 = vunpack.c.h.b16 %v988
    %v1389 = vunpack.c.l.b16 %v989
    %v1390 = vunpack.c.h.b16 %v989
    %v1391 = vunpack.c.l.b16 %v990
    %v1392 = vunpack.c.h.b16 %v990
    %v1393 = vunpack.c.l.b16 %v991
    %v1394 = vunpack.c.h.b16 %v991
    %v1395 = vunpack.c.l.b16 %v992
    %v1396 = vunpack.c.h.b16 %v992
    %v1397 = vunpack.c.l.b16 %v993
    %v1398 = vunpack.c.h.b16 %v993
    %v1399 = vunpack.c.l.b16 %v994
    %v1400 = vunpack.c.h.b16 %v994
    %v1401 = vpack.c.b16 %v1149, %v1145
    %v1402 = vpack.c.b16 %v1150, %v1146
    %v1403 = vpack.c.b16 %v1151, %v1147
    %v1404 = vpack.c.b16 %v1152, %v1148
    %v1405 = vpack.c.b16 %v1157, %v1153
    %v1406 = vpack.c.b16 %v1158, %v1154
    %v1407 = vpack.c.b16 %v1159, %v1155
    %v1408 = vpack.c.b16 %v1160, %v1156
    %v1409 = vpack.c.b16 %v1165, %v1161
    %v1410 = vpack.c.b16 %v1166, %v1162
    %v1411 = vpack.c.b16 %v1167, %v1163
    %v1412 = vpack.c.b16 %v1168, %v1164
    %v1413 = vpack.c.b16 %v1173, %v1169
    %v1414 = vpack.c.b16 %v1174, %v1170
    %v1415 = vpack.c.b16 %v1175, %v1171
    %v1416 = vpack.c.b16 %v1176, %v1172
    %v1417 = vpack.c.b16 %v1181, %v1177
    %v1418 = vpack.c.b16 %v1182, %v1178
    %v1419 = vpack.c.b16 %v1183, %v1179
    %v1420 = vpack.c.b16 %v1184, %v1180
    %v1421 = vpack.c.b16 %v1189, %v1185
    %v1422 = vpack.c.b16 %v1190, %v1186
    %v1423 = vpack.c.b16 %v1191, %v1187
    %v1424 = vpack.c.b16 %v1192, %v1188
    %v1425 = vpack.c.b16 %v1197, %v1193
    %v1426 = vpack.c.b16 %v1198, %v1194
    %v1427 = vpack.c.b16 %v1199, %v1195
    %v1428 = vpack.c.b16 %v1200, %v1196
    %v1429 = vpack.c.b16 %v1205, %v1201
    %v1430 = vpack.c.b16 %v1206, %v1202
    %v1431 = vpack.c.b16 %v1207, %v1203
    %v1432 = vpack.c.b16 %v1208, %v1204
    %v1433 = vpack.c.b16 %v1213, %v1209
    %v1434 = vpack.c.b16 %v1214, %v1210
    %v1435 = vpack.c.b16 %v1215, %v1211
    %v1436 = vpack.c.b16 %v1216, %v1212
    %v1437 = vpack.c.b16 %v1221, %v1217
    %v1438 = vpack.c.b16 %v1222, %v1218
    %v1439 = vpack.c.b16 %v1223, %v1219
    %v1440 = vpack.c.b16 %v1224, %v1220
    %v1441 = vpack.c.b16 %v1229, %v1225
    %v1442 = vpack.c.b16 %v1230, %v1226
    %v1443 = vpack.c.b16 %v1231, %v1227
    %v1444 = vpack.c.b16 %v1232, %v1228
    %v1445 = vpack.c.b16 %v1237, %v1233
    %v1446 = vpack.c.b16 %v1238, %v1234
    %v1447 = vpack.c.b16 %v1239, %v1235
    %v1448 = vpack.c.b16 %v1240, %v1236
    %v1449 = vpack.c.b16 %v1245, %v1241
    %v1450 = vpack.c.b16 %v1246, %v1242
    %v1451 = vpack.c.b16 %v1247, %v1243
    %v1452 = vpack.c.b16 %v1248, %v1244
    %v1453 = vpack.c.b16 %v1253, %v1249
    %v1454 = vpack.c.b16 %v1254, %v1250
    %v1455 = vpack.c.b16 %v1255, %v1251
    %v1456 = vpack.c.b16 %v1256, %v1252
    %v1457 = vpack.c.b16 %v1261, %v1257
    %v1458 = vpack.c.b16 %v1262, %v1258
    %v1459 = vpack.c.b16 %v1263, %v1259
    %v1460 = vpack.c.b16 %v1264, %v1260
    %v1461 = vpack.c.b16 %v1269, %v1265
    %v1462 = vpack.c.b16 %v1270, %v1266
    %v1463 = vpack.c.b16 %v1271, %v1267
    %v1464 = vpack.c.b16 %v1272, %v1268
    %v1465 = vpack.c.b16 %v1277, %v1273
    %v1466 = vpack.c.b16 %v1278, %v1274
    %v1467 = vpack.c.b16 %v1279, %v1275
    %v1468 = vpack.c.b16 %v1280, %v1276
    %v1469 = vpack.c.b16 %v1285, %v1281
    %v1470 = vpack.c.b16 %v1286, %v1282
    %v1471 = vpack.c.b16 %v1287, %v1283
    %v1472 = vpack.c.b16 %v1288, %v1284
    %v1473 = vpack.c.b16 %v1293, %v1289
    %v1474 = vpack.c.b16 %v1294, %v1290
    %v1475 = vpack.c.b16 %v1295, %v1291
    %v1476 = vpack.c.b16 %v1296, %v1292
    %v1477 = vpack.c.b16 %v1301, %v1297
    %v1478 = vpack.c.b16 %v1302, %v1298
    %v1479 = vpack.c.b16 %v1303, %v1299
    %v1480 = vpack.c.b16 %v1304, %v1300
    %v1481 = vpack.c.b16 %v1309, %v1305
    %v1482 = vpack.c.b16 %v1310, %v1306
    %v1483 = vpack.c.b16 %v1311, %v1307
    %v1484 = vpack.c.b16 %v1312, %v1308
    %v1485 = vpack.c.b16 %v1317, %v1313
    %v1486 = vpack.c.b16 %v1318, %v1314
    %v1487 = vpack.c.b16 %v1319, %v1315
    %v1488 = vpack.c.b16 %v1320, %v1316
    %v1489 = vpack.c.b16 %v1325, %v1321
    %v1490 = vpack.c.b16 %v1326, %v1322
    %v1491 = vpack.c.b16 %v1327, %v1323
    %v1492 = vpack.c.b16 %v1328, %v1324
    %v1493 = vpack.c.b16 %v1333, %v1329
    %v1494 = vpack.c.b16 %v1334, %v1330
    %v1495 = vpack.c.b16 %v1335, %v1331
    %v1496 = vpack.c.b16 %v1336, %v1332
    %v1497 = vpack.c.b16 %v1341, %v1337
    %v1498 = vpack.c.b16 %v1342, %v1338
    %v1499 = vpack.c.b16 %v1343, %v1339
    %v1500 = vpack.c.b16 %v1344, %v1340
    %v1501 = vpack.c.b16 %v1349, %v1345
    %v1502 = vpack.c.b16 %v1350, %v1346
    %v1503 = vpack.c.b16 %v1351, %v1347
    %v1504 = vpack.c.b16 %v1352, %v1348
    %v1505 = vpack.c.b16 %v1357, %v1353
    %v1506 = vpack.c.b16 %v1358, %v1354
    %v1507 = vpack.c.b16 %v1359, %v1355
    %v1508 = vpack.c.b16 %v1360, %v1356
    %v1509 = vpack.c.b16 %v1365, %v1361
    %v1510 = vpack.c.b16 %v1366, %v1362
    %v1511 = vpack.c.b16 %v1367, %v1363
    %v1512 = vpack.c.b16 %v1368, %v1364
    %v1513 = vpack.c.b16 %v1373, %v1369
    %v1514 = vpack.c.b16 %v1374, %v1370
    %v1515 = vpack.c.b16 %v1375, %v1371
    %v1516 = vpack.c.b16 %v1376, %v1372
    %v1517 = vpack.c.b16 %v1381, %v1377
    %v1518 = vpack.c.b16 %v1382, %v1378
    %v1519 = vpack.c.b16 %v1383, %v1379
    %v1520 = vpack.c.b16 %v1384, %v1380
    %v1521 = vpack.c.b16 %v1389, %v1385
    %v1522 = vpack.c.b16 %v1390, %v1386
    %v1523 = vpack.c.b16 %v1391, %v1387
    %v1524 = vpack.c.b16 %v1392, %v1388
    %v1525 = vpack.c.b16 %v1397, %v1393
    %v1526 = vpack.c.b16 %v1398, %v1394
    %v1527 = vpack.c.b16 %v1399, %v1395
    %v1528 = vpack.c.b16 %v1400, %v1396
    %1657 = vmatprep.subr.bf16.mxu0 %v1402
    %1658 = vmatpush1.bf16.msra.mxu0 %v1401
    %1659 = vmatprep.subr.bf16.mxu0 %v1406
    %1660 = vmatpush1.bf16.msra.mxu0 %v1405
    %1661 = vmatprep.subr.bf16.mxu0 %v1410
    %1662 = vmatpush1.bf16.msra.mxu0 %v1409
    %1663 = vmatprep.subr.bf16.mxu0 %v1414
    %1664 = vmatpush1.bf16.msra.mxu0 %v1413
    %1665 = vmatprep.subr.bf16.mxu0 %v1418
    %1666 = vmatpush1.bf16.msra.mxu0 %v1417
    %1667 = vmatprep.subr.bf16.mxu0 %v1422
    %1668 = vmatpush1.bf16.msra.mxu0 %v1421
    %1669 = vmatprep.subr.bf16.mxu0 %v1426
    %1670 = vmatpush1.bf16.msra.mxu0 %v1425
    %1671 = vmatprep.subr.bf16.mxu0 %v1430
    %1672 = vmatpush1.bf16.msra.mxu0 %v1429
    %1673 = vmatprep.subr.bf16.mxu0 %v1434
    %1674 = vmatpush1.bf16.msra.mxu0 %v1433
    %1675 = vmatprep.subr.bf16.mxu0 %v1438
    %1676 = vmatpush1.bf16.msra.mxu0 %v1437
    %1677 = vmatprep.subr.bf16.mxu0 %v1442
    %1678 = vmatpush1.bf16.msra.mxu0 %v1441
    %1679 = vmatprep.subr.bf16.mxu0 %v1446
    %1680 = vmatpush1.bf16.msra.mxu0 %v1445
    %1681 = vmatprep.subr.bf16.mxu0 %v1450
    %1682 = vmatpush1.bf16.msra.mxu0 %v1449
    %1683 = vmatprep.subr.bf16.mxu0 %v1454
    %1684 = vmatpush1.bf16.msra.mxu0 %v1453
    %1685 = vmatprep.subr.bf16.mxu0 %v1458
    %1686 = vmatpush1.bf16.msra.mxu0 %v1457
    %1687 = vmatprep.subr.bf16.mxu0 %v1462
    %1688 = vmatpush1.bf16.msra.mxu0 %v1461
    %1689 = vmatprep.mubr.bf16.mxu0 %v864
    %1690 = vmatmul.mubr.bf16.gmra.mrb[0].mxu0 %v863
    %v1691 = vpop.f32.mrb[0].mxu0
    %v1692 = vadd.f32 %v1000, %v1691
    %v1693 = vpop.f32.mrb[0].mxu0
    %v1694 = vadd.f32 %v1004, %v1693
    %v1695 = vpop.f32.mrb[0].mxu0
    %v1696 = vadd.f32 %v1000, %v1695
    %v1697 = vpop.f32.mrb[0].mxu0
    %v1698 = vadd.f32 %v1004, %v1697
    %1699 = vdwg.mxu0
    %1700 = vmatprep.subr.bf16.mxu0 %v1466
    %1701 = vmatpush1.bf16.msra.mxu0 %v1465
    %1702 = vmatprep.subr.bf16.mxu0 %v1470
    %1703 = vmatpush1.bf16.msra.mxu0 %v1469
    %1704 = vmatprep.subr.bf16.mxu0 %v1474
    %1705 = vmatpush1.bf16.msra.mxu0 %v1473
    %1706 = vmatprep.subr.bf16.mxu0 %v1478
    %1707 = vmatpush1.bf16.msra.mxu0 %v1477
    %1708 = vmatprep.subr.bf16.mxu0 %v1482
    %1709 = vmatpush1.bf16.msra.mxu0 %v1481
    %1710 = vmatprep.subr.bf16.mxu0 %v1486
    %1711 = vmatpush1.bf16.msra.mxu0 %v1485
    %1712 = vmatprep.subr.bf16.mxu0 %v1490
    %1713 = vmatpush1.bf16.msra.mxu0 %v1489
    %1714 = vmatprep.subr.bf16.mxu0 %v1494
    %1715 = vmatpush1.bf16.msra.mxu0 %v1493
    %1716 = vmatprep.subr.bf16.mxu0 %v1498
    %1717 = vmatpush1.bf16.msra.mxu0 %v1497
    %1718 = vmatprep.subr.bf16.mxu0 %v1502
    %1719 = vmatpush1.bf16.msra.mxu0 %v1501
    %1720 = vmatprep.subr.bf16.mxu0 %v1506
    %1721 = vmatpush1.bf16.msra.mxu0 %v1505
    %1722 = vmatprep.subr.bf16.mxu0 %v1510
    %1723 = vmatpush1.bf16.msra.mxu0 %v1509
    %1724 = vmatprep.subr.bf16.mxu0 %v1514
    %1725 = vmatpush1.bf16.msra.mxu0 %v1513
    %1726 = vmatprep.subr.bf16.mxu0 %v1518
    %1727 = vmatpush1.bf16.msra.mxu0 %v1517
    %1728 = vmatprep.subr.bf16.mxu0 %v1522
    %1729 = vmatpush1.bf16.msra.mxu0 %v1521
    %1730 = vmatprep.subr.bf16.mxu0 %v1526
    %1731 = vmatpush1.bf16.msra.mxu0 %v1525
    %1732 = vmatprep.mubr.bf16.mxu0 %v866
    %1733 = vmatmul.mubr.bf16.gmra.mrb[0].mxu0 %v865
    %v1734 = vpop.f32.mrb[0].mxu0
    %v1735 = vadd.f32 %v1692, %v1734
    %v1736 = vpop.f32.mrb[0].mxu0
    %v1737 = vadd.f32 %v1694, %v1736
    %v1738 = vpop.f32.mrb[0].mxu0
    %v1739 = vadd.f32 %v1696, %v1738
    %v1740 = vpop.f32.mrb[0].mxu0
    %v1741 = vadd.f32 %v1698, %v1740
    %1742 = vdwg.mxu0
    %1743 = vmatprep.subr.bf16.mxu0 %v1404
    %1744 = vmatpush1.bf16.msra.mxu0 %v1403
    %1745 = vmatprep.subr.bf16.mxu0 %v1408
    %1746 = vmatpush1.bf16.msra.mxu0 %v1407
    %1747 = vmatprep.subr.bf16.mxu0 %v1412
    %1748 = vmatpush1.bf16.msra.mxu0 %v1411
    %1749 = vmatprep.subr.bf16.mxu0 %v1416
    %1750 = vmatpush1.bf16.msra.mxu0 %v1415
    %1751 = vmatprep.subr.bf16.mxu0 %v1420
    %1752 = vmatpush1.bf16.msra.mxu0 %v1419
    %1753 = vmatprep.subr.bf16.mxu0 %v1424
    %1754 = vmatpush1.bf16.msra.mxu0 %v1423
    %1755 = vmatprep.subr.bf16.mxu0 %v1428
    %1756 = vmatpush1.bf16.msra.mxu0 %v1427
    %1757 = vmatprep.subr.bf16.mxu0 %v1432
    %1758 = vmatpush1.bf16.msra.mxu0 %v1431
    %1759 = vmatprep.subr.bf16.mxu0 %v1436
    %1760 = vmatpush1.bf16.msra.mxu0 %v1435
    %1761 = vmatprep.subr.bf16.mxu0 %v1440
    %1762 = vmatpush1.bf16.msra.mxu0 %v1439
    %1763 = vmatprep.subr.bf16.mxu0 %v1444
    %1764 = vmatpush1.bf16.msra.mxu0 %v1443
    %1765 = vmatprep.subr.bf16.mxu0 %v1448
    %1766 = vmatpush1.bf16.msra.mxu0 %v1447
    %1767 = vmatprep.subr.bf16.mxu0 %v1452
    %1768 = vmatpush1.bf16.msra.mxu0 %v1451
    %1769 = vmatprep.subr.bf16.mxu0 %v1456
    %1770 = vmatpush1.bf16.msra.mxu0 %v1455
    %1771 = vmatprep.subr.bf16.mxu0 %v1460
    %1772 = vmatpush1.bf16.msra.mxu0 %v1459
    %1773 = vmatprep.subr.bf16.mxu0 %v1464
    %1774 = vmatpush1.bf16.msra.mxu0 %v1463
    %1775 = vmatprep.mubr.bf16.mxu0 %v864
    %1776 = vmatmul.mubr.bf16.gmra.mrb[0].mxu0 %v863
    %v1777 = vpop.f32.mrb[0].mxu0
    %v1778 = vadd.f32 %v1008, %v1777
    %v1779 = vpop.f32.mrb[0].mxu0
    %v1780 = vadd.f32 %v1012, %v1779
    %v1781 = vpop.f32.mrb[0].mxu0
    %v1782 = vadd.f32 %v1008, %v1781
    %v1783 = vpop.f32.mrb[0].mxu0
    %v1784 = vadd.f32 %v1012, %v1783
    %1785 = vdwg.mxu0
    %1786 = vmatprep.subr.bf16.mxu0 %v1468
    %1787 = vmatpush1.bf16.msra.mxu0 %v1467
    %1788 = vmatprep.subr.bf16.mxu0 %v1472
    %1789 = vmatpush1.bf16.msra.mxu0 %v1471
    %1790 = vmatprep.subr.bf16.mxu0 %v1476
    %1791 = vmatpush1.bf16.msra.mxu0 %v1475
    %1792 = vmatprep.subr.bf16.mxu0 %v1480
    %1793 = vmatpush1.bf16.msra.mxu0 %v1479
    %1794 = vmatprep.subr.bf16.mxu0 %v1484
    %1795 = vmatpush1.bf16.msra.mxu0 %v1483
    %1796 = vmatprep.subr.bf16.mxu0 %v1488
    %1797 = vmatpush1.bf16.msra.mxu0 %v1487
    %1798 = vmatprep.subr.bf16.mxu0 %v1492
    %1799 = vmatpush1.bf16.msra.mxu0 %v1491
    %1800 = vmatprep.subr.bf16.mxu0 %v1496
    %1801 = vmatpush1.bf16.msra.mxu0 %v1495
    %1802 = vmatprep.subr.bf16.mxu0 %v1500
    %1803 = vmatpush1.bf16.msra.mxu0 %v1499
    %1804 = vmatprep.subr.bf16.mxu0 %v1504
    %1805 = vmatpush1.bf16.msra.mxu0 %v1503
    %1806 = vmatprep.subr.bf16.mxu0 %v1508
    %1807 = vmatpush1.bf16.msra.mxu0 %v1507
    %1808 = vmatprep.subr.bf16.mxu0 %v1512
    %1809 = vmatpush1.bf16.msra.mxu0 %v1511
    %1810 = vmatprep.subr.bf16.mxu0 %v1516
    %1811 = vmatpush1.bf16.msra.mxu0 %v1515
    %1812 = vmatprep.subr.bf16.mxu0 %v1520
    %1813 = vmatpush1.bf16.msra.mxu0 %v1519
    %1814 = vmatprep.subr.bf16.mxu0 %v1524
    %1815 = vmatpush1.bf16.msra.mxu0 %v1523
    %1816 = vmatprep.subr.bf16.mxu0 %v1528
    %1817 = vmatpush1.bf16.msra.mxu0 %v1527
    %1818 = vmatprep.mubr.bf16.mxu0 %v866
    %1819 = vmatmul.mubr.bf16.gmra.mrb[0].mxu0 %v865
    %v1820 = vpop.f32.mrb[0].mxu0
    %v1821 = vadd.f32 %v1778, %v1820
    %v1822 = vpop.f32.mrb[0].mxu0
    %v1823 = vadd.f32 %v1780, %v1822
    %v1824 = vpop.f32.mrb[0].mxu0
    %v1825 = vadd.f32 %v1782, %v1824
    %v1826 = vpop.f32.mrb[0].mxu0
    %v1827 = vadd.f32 %v1784, %v1826
    %1828 = vdwg.mxu0
    %vm1829 = vcmp.gt.f32.partialorder %v1735, 0.0
    %vm1830 = vcmp.gt.f32.partialorder %v1737, 0.0
    %vm1831 = vcmp.gt.f32.partialorder %v1821, 0.0
    %vm1832 = vcmp.gt.f32.partialorder %v1823, 0.0
    %vm1833 = vcmp.gt.f32.partialorder %v1739, 0.0
    %vm1834 = vcmp.gt.f32.partialorder %v1741, 0.0
    %vm1835 = vcmp.gt.f32.partialorder %v1825, 0.0
    %vm1836 = vcmp.gt.f32.partialorder %v1827, 0.0
    %v1837 = vmul.f32 %v1735, 0.2
    %v1838 = vmul.f32 %v1737, 0.2
    %v1839 = vmul.f32 %v1821, 0.2
    %v1840 = vmul.f32 %v1823, 0.2
    %v1841 = vmul.f32 %v1739, 0.2
    %v1842 = vmul.f32 %v1741, 0.2
    %v1843 = vmul.f32 %v1825, 0.2
    %v1844 = vmul.f32 %v1827, 0.2
    %v1845 = vsel %vm1829, %v1735, %v1837
    %v1846 = vsel %vm1830, %v1737, %v1838
    %v1847 = vsel %vm1831, %v1821, %v1839
    %v1848 = vsel %vm1832, %v1823, %v1840
    %v1849 = vsel %vm1833, %v1739, %v1841
    %v1850 = vsel %vm1834, %v1741, %v1842
    %v1851 = vsel %vm1835, %v1825, %v1843
    %v1852 = vsel %vm1836, %v1827, %v1844
    %v1853 = vpack.c.bf16 %v1849, %v1845
    %v1854 = vpack.c.bf16 %v1850, %v1846
    %v1855 = vpack.c.bf16 %v1851, %v1847
    %v1856 = vpack.c.bf16 %v1852, %v1848
    %v1857 = vld [vmem:[#allocation14] sm:$0xff]
    %v1858 = vld [vmem:[#allocation14 + $0x8] sm:$0xff]
    %v1859 = vld [vmem:[#allocation14 + $0x10] sm:$0xff]
    %v1860 = vld [vmem:[#allocation14 + $0x18] sm:$0xff]
    %v1861 = vld [vmem:[#allocation14 + $0x20] sm:$0xff]
    %v1862 = vld [vmem:[#allocation14 + $0x28] sm:$0xff]
    %v1863 = vld [vmem:[#allocation14 + $0x30] sm:$0xff]
    %v1864 = vld [vmem:[#allocation14 + $0x38] sm:$0xff]
    %v1865 = vld [vmem:[#allocation14 + $0x40] sm:$0xff]
    %v1866 = vld [vmem:[#allocation14 + $0x48] sm:$0xff]
    %v1867 = vld [vmem:[#allocation14 + $0x50] sm:$0xff]
    %v1868 = vld [vmem:[#allocation14 + $0x58] sm:$0xff]
    %v1869 = vld [vmem:[#allocation14 + $0x60] sm:$0xff]
    %v1870 = vld [vmem:[#allocation14 + $0x68] sm:$0xff]
    %v1871 = vld [vmem:[#allocation14 + $0x70] sm:$0xff]
    %v1872 = vld [vmem:[#allocation14 + $0x78] sm:$0xff]
    %v1873 = vld [vmem:[#allocation14 + $0x80] sm:$0xff]
    %v1874 = vld [vmem:[#allocation14 + $0x88] sm:$0xff]
    %v1875 = vld [vmem:[#allocation14 + $0x90] sm:$0xff]
    %v1876 = vld [vmem:[#allocation14 + $0x98] sm:$0xff]
    %v1877 = vld [vmem:[#allocation14 + $0xa0] sm:$0xff]
    %v1878 = vld [vmem:[#allocation14 + $0xa8] sm:$0xff]
    %v1879 = vld [vmem:[#allocation14 + $0xb0] sm:$0xff]
    %v1880 = vld [vmem:[#allocation14 + $0xb8] sm:$0xff]
    %v1881 = vld [vmem:[#allocation14 + $0xc0] sm:$0xff]
    %v1882 = vld [vmem:[#allocation14 + $0xc8] sm:$0xff]
    %v1883 = vld [vmem:[#allocation14 + $0xd0] sm:$0xff]
    %v1884 = vld [vmem:[#allocation14 + $0xd8] sm:$0xff]
    %v1885 = vld [vmem:[#allocation14 + $0xe0] sm:$0xff]
    %v1886 = vld [vmem:[#allocation14 + $0xe8] sm:$0xff]
    %v1887 = vld [vmem:[#allocation14 + $0xf0] sm:$0xff]
    %v1888 = vld [vmem:[#allocation14 + $0xf8] sm:$0xff]
    %v1889 = vld [vmem:[#allocation14 + $0x100] sm:$0xff]
    %v1890 = vld [vmem:[#allocation14 + $0x108] sm:$0xff]
    %v1891 = vld [vmem:[#allocation14 + $0x110] sm:$0xff]
    %v1892 = vld [vmem:[#allocation14 + $0x118] sm:$0xff]
    %v1893 = vld [vmem:[#allocation14 + $0x120] sm:$0xff]
    %v1894 = vld [vmem:[#allocation14 + $0x128] sm:$0xff]
    %v1895 = vld [vmem:[#allocation14 + $0x130] sm:$0xff]
    %v1896 = vld [vmem:[#allocation14 + $0x138] sm:$0xff]
    %v1897 = vld [vmem:[#allocation14 + $0x140] sm:$0xff]
    %v1898 = vld [vmem:[#allocation14 + $0x148] sm:$0xff]
    %v1899 = vld [vmem:[#allocation14 + $0x150] sm:$0xff]
    %v1900 = vld [vmem:[#allocation14 + $0x158] sm:$0xff]
    %v1901 = vld [vmem:[#allocation14 + $0x160] sm:$0xff]
    %v1902 = vld [vmem:[#allocation14 + $0x168] sm:$0xff]
    %v1903 = vld [vmem:[#allocation14 + $0x170] sm:$0xff]
    %v1904 = vld [vmem:[#allocation14 + $0x178] sm:$0xff]
    %v1905 = vld [vmem:[#allocation14 + $0x180] sm:$0xff]
    %v1906 = vld [vmem:[#allocation14 + $0x188] sm:$0xff]
    %v1907 = vld [vmem:[#allocation14 + $0x190] sm:$0xff]
    %v1908 = vld [vmem:[#allocation14 + $0x198] sm:$0xff]
    %v1909 = vld [vmem:[#allocation14 + $0x1a0] sm:$0xff]
    %v1910 = vld [vmem:[#allocation14 + $0x1a8] sm:$0xff]
    %v1911 = vld [vmem:[#allocation14 + $0x1b0] sm:$0xff]
    %v1912 = vld [vmem:[#allocation14 + $0x1b8] sm:$0xff]
    %v1913 = vld [vmem:[#allocation14 + $0x1c0] sm:$0xff]
    %v1914 = vld [vmem:[#allocation14 + $0x1c8] sm:$0xff]
    %v1915 = vld [vmem:[#allocation14 + $0x1d0] sm:$0xff]
    %v1916 = vld [vmem:[#allocation14 + $0x1d8] sm:$0xff]
    %v1917 = vld [vmem:[#allocation14 + $0x1e0] sm:$0xff]
    %v1918 = vld [vmem:[#allocation14 + $0x1e8] sm:$0xff]
    %v1919 = vld [vmem:[#allocation14 + $0x1f0] sm:$0xff]
    %v1920 = vld [vmem:[#allocation14 + $0x1f8] sm:$0xff]
    %v1921 = vld [vmem:[#allocation14 + $0x200] sm:$0xff]
    %v1922 = vld [vmem:[#allocation14 + $0x208] sm:$0xff]
    %v1923 = vld [vmem:[#allocation14 + $0x210] sm:$0xff]
    %v1924 = vld [vmem:[#allocation14 + $0x218] sm:$0xff]
    %v1925 = vld [vmem:[#allocation14 + $0x220] sm:$0xff]
    %v1926 = vld [vmem:[#allocation14 + $0x228] sm:$0xff]
    %v1927 = vld [vmem:[#allocation14 + $0x230] sm:$0xff]
    %v1928 = vld [vmem:[#allocation14 + $0x238] sm:$0xff]
    %v1929 = vld [vmem:[#allocation14 + $0x240] sm:$0xff]
    %v1930 = vld [vmem:[#allocation14 + $0x248] sm:$0xff]
    %v1931 = vld [vmem:[#allocation14 + $0x250] sm:$0xff]
    %v1932 = vld [vmem:[#allocation14 + $0x258] sm:$0xff]
    %v1933 = vld [vmem:[#allocation14 + $0x260] sm:$0xff]
    %v1934 = vld [vmem:[#allocation14 + $0x268] sm:$0xff]
    %v1935 = vld [vmem:[#allocation14 + $0x270] sm:$0xff]
    %v1936 = vld [vmem:[#allocation14 + $0x278] sm:$0xff]
    %v1937 = vld [vmem:[#allocation14 + $0x280] sm:$0xff]
    %v1938 = vld [vmem:[#allocation14 + $0x288] sm:$0xff]
    %v1939 = vld [vmem:[#allocation14 + $0x290] sm:$0xff]
    %v1940 = vld [vmem:[#allocation14 + $0x298] sm:$0xff]
    %v1941 = vld [vmem:[#allocation14 + $0x2a0] sm:$0xff]
    %v1942 = vld [vmem:[#allocation14 + $0x2a8] sm:$0xff]
    %v1943 = vld [vmem:[#allocation14 + $0x2b0] sm:$0xff]
    %v1944 = vld [vmem:[#allocation14 + $0x2b8] sm:$0xff]
    %v1945 = vld [vmem:[#allocation14 + $0x2c0] sm:$0xff]
    %v1946 = vld [vmem:[#allocation14 + $0x2c8] sm:$0xff]
    %v1947 = vld [vmem:[#allocation14 + $0x2d0] sm:$0xff]
    %v1948 = vld [vmem:[#allocation14 + $0x2d8] sm:$0xff]
    %v1949 = vld [vmem:[#allocation14 + $0x2e0] sm:$0xff]
    %v1950 = vld [vmem:[#allocation14 + $0x2e8] sm:$0xff]
    %v1951 = vld [vmem:[#allocation14 + $0x2f0] sm:$0xff]
    %v1952 = vld [vmem:[#allocation14 + $0x2f8] sm:$0xff]
    %v1953 = vld [vmem:[#allocation14 + $0x300] sm:$0xff]
    %v1954 = vld [vmem:[#allocation14 + $0x308] sm:$0xff]
    %v1955 = vld [vmem:[#allocation14 + $0x310] sm:$0xff]
    %v1956 = vld [vmem:[#allocation14 + $0x318] sm:$0xff]
    %v1957 = vld [vmem:[#allocation14 + $0x320] sm:$0xff]
    %v1958 = vld [vmem:[#allocation14 + $0x328] sm:$0xff]
    %v1959 = vld [vmem:[#allocation14 + $0x330] sm:$0xff]
    %v1960 = vld [vmem:[#allocation14 + $0x338] sm:$0xff]
    %v1961 = vld [vmem:[#allocation14 + $0x340] sm:$0xff]
    %v1962 = vld [vmem:[#allocation14 + $0x348] sm:$0xff]
    %v1963 = vld [vmem:[#allocation14 + $0x350] sm:$0xff]
    %v1964 = vld [vmem:[#allocation14 + $0x358] sm:$0xff]
    %v1965 = vld [vmem:[#allocation14 + $0x360] sm:$0xff]
    %v1966 = vld [vmem:[#allocation14 + $0x368] sm:$0xff]
    %v1967 = vld [vmem:[#allocation14 + $0x370] sm:$0xff]
    %v1968 = vld [vmem:[#allocation14 + $0x378] sm:$0xff]
    %v1969 = vld [vmem:[#allocation14 + $0x380] sm:$0xff]
    %v1970 = vld [vmem:[#allocation14 + $0x388] sm:$0xff]
    %v1971 = vld [vmem:[#allocation14 + $0x390] sm:$0xff]
    %v1972 = vld [vmem:[#allocation14 + $0x398] sm:$0xff]
    %v1973 = vld [vmem:[#allocation14 + $0x3a0] sm:$0xff]
    %v1974 = vld [vmem:[#allocation14 + $0x3a8] sm:$0xff]
    %v1975 = vld [vmem:[#allocation14 + $0x3b0] sm:$0xff]
    %v1976 = vld [vmem:[#allocation14 + $0x3b8] sm:$0xff]
    %v1977 = vld [vmem:[#allocation14 + $0x3c0] sm:$0xff]
    %v1978 = vld [vmem:[#allocation14 + $0x3c8] sm:$0xff]
    %v1979 = vld [vmem:[#allocation14 + $0x3d0] sm:$0xff]
    %v1980 = vld [vmem:[#allocation14 + $0x3d8] sm:$0xff]
    %v1981 = vld [vmem:[#allocation14 + $0x3e0] sm:$0xff]
    %v1982 = vld [vmem:[#allocation14 + $0x3e8] sm:$0xff]
    %v1983 = vld [vmem:[#allocation14 + $0x3f0] sm:$0xff]
    %v1984 = vld [vmem:[#allocation14 + $0x3f8] sm:$0xff]
    %v1985 = vld [vmem:[#allocation14 + $0x400] sm:$0xff]
    %v1986 = vld [vmem:[#allocation14 + $0x408] sm:$0xff]
    %v1987 = vld [vmem:[#allocation14 + $0x410] sm:$0xff]
    %v1988 = vld [vmem:[#allocation14 + $0x418] sm:$0xff]
    %v1989 = vld [vmem:[#allocation14 + $0x420] sm:$0xff]
    %v1990 = vld [vmem:[#allocation14 + $0x428] sm:$0xff]
    %v1991 = vld [vmem:[#allocation14 + $0x430] sm:$0xff]
    %v1992 = vld [vmem:[#allocation14 + $0x438] sm:$0xff]
    %v1993 = vld [vmem:[#allocation14 + $0x440] sm:$0xff]
    %v1994 = vld [vmem:[#allocation14 + $0x448] sm:$0xff]
    %v1995 = vld [vmem:[#allocation14 + $0x450] sm:$0xff]
    %v1996 = vld [vmem:[#allocation14 + $0x458] sm:$0xff]
    %v1997 = vld [vmem:[#allocation14 + $0x460] sm:$0xff]
    %v1998 = vld [vmem:[#allocation14 + $0x468] sm:$0xff]
    %v1999 = vld [vmem:[#allocation14 + $0x470] sm:$0xff]
    %v2000 = vld [vmem:[#allocation14 + $0x478] sm:$0xff]
    %v2001 = vld [vmem:[#allocation14 + $0x480] sm:$0xff]
    %v2002 = vld [vmem:[#allocation14 + $0x488] sm:$0xff]
    %v2003 = vld [vmem:[#allocation14 + $0x490] sm:$0xff]
    %v2004 = vld [vmem:[#allocation14 + $0x498] sm:$0xff]
    %v2005 = vld [vmem:[#allocation14 + $0x4a0] sm:$0xff]
    %v2006 = vld [vmem:[#allocation14 + $0x4a8] sm:$0xff]
    %v2007 = vld [vmem:[#allocation14 + $0x4b0] sm:$0xff]
    %v2008 = vld [vmem:[#allocation14 + $0x4b8] sm:$0xff]
    %v2009 = vld [vmem:[#allocation14 + $0x4c0] sm:$0xff]
    %v2010 = vld [vmem:[#allocation14 + $0x4c8] sm:$0xff]
    %v2011 = vld [vmem:[#allocation14 + $0x4d0] sm:$0xff]
    %v2012 = vld [vmem:[#allocation14 + $0x4d8] sm:$0xff]
    %v2013 = vld [vmem:[#allocation14 + $0x4e0] sm:$0xff]
    %v2014 = vld [vmem:[#allocation14 + $0x4e8] sm:$0xff]
    %v2015 = vld [vmem:[#allocation14 + $0x4f0] sm:$0xff]
    %v2016 = vld [vmem:[#allocation14 + $0x4f8] sm:$0xff]
    %v2017 = vld [vmem:[#allocation14 + $0x500] sm:$0xff]
    %v2018 = vld [vmem:[#allocation14 + $0x508] sm:$0xff]
    %v2019 = vld [vmem:[#allocation14 + $0x510] sm:$0xff]
    %v2020 = vld [vmem:[#allocation14 + $0x518] sm:$0xff]
    %v2021 = vld [vmem:[#allocation14 + $0x520] sm:$0xff]
    %v2022 = vld [vmem:[#allocation14 + $0x528] sm:$0xff]
    %v2023 = vld [vmem:[#allocation14 + $0x530] sm:$0xff]
    %v2024 = vld [vmem:[#allocation14 + $0x538] sm:$0xff]
    %v2025 = vld [vmem:[#allocation14 + $0x540] sm:$0xff]
    %v2026 = vld [vmem:[#allocation14 + $0x548] sm:$0xff]
    %v2027 = vld [vmem:[#allocation14 + $0x550] sm:$0xff]
    %v2028 = vld [vmem:[#allocation14 + $0x558] sm:$0xff]
    %v2029 = vld [vmem:[#allocation14 + $0x560] sm:$0xff]
    %v2030 = vld [vmem:[#allocation14 + $0x568] sm:$0xff]
    %v2031 = vld [vmem:[#allocation14 + $0x570] sm:$0xff]
    %v2032 = vld [vmem:[#allocation14 + $0x578] sm:$0xff]
    %v2033 = vld [vmem:[#allocation14 + $0x580] sm:$0xff]
    %v2034 = vld [vmem:[#allocation14 + $0x588] sm:$0xff]
    %v2035 = vld [vmem:[#allocation14 + $0x590] sm:$0xff]
    %v2036 = vld [vmem:[#allocation14 + $0x598] sm:$0xff]
    %v2037 = vld [vmem:[#allocation14 + $0x5a0] sm:$0xff]
    %v2038 = vld [vmem:[#allocation14 + $0x5a8] sm:$0xff]
    %v2039 = vld [vmem:[#allocation14 + $0x5b0] sm:$0xff]
    %v2040 = vld [vmem:[#allocation14 + $0x5b8] sm:$0xff]
    %v2041 = vld [vmem:[#allocation14 + $0x5c0] sm:$0xff]
    %v2042 = vld [vmem:[#allocation14 + $0x5c8] sm:$0xff]
    %v2043 = vld [vmem:[#allocation14 + $0x5d0] sm:$0xff]
    %v2044 = vld [vmem:[#allocation14 + $0x5d8] sm:$0xff]
    %v2045 = vld [vmem:[#allocation14 + $0x5e0] sm:$0xff]
    %v2046 = vld [vmem:[#allocation14 + $0x5e8] sm:$0xff]
    %v2047 = vld [vmem:[#allocation14 + $0x5f0] sm:$0xff]
    %v2048 = vld [vmem:[#allocation14 + $0x5f8] sm:$0xff]
    %v2049 = vld [vmem:[#allocation14 + $0x600] sm:$0xff]
    %v2050 = vld [vmem:[#allocation14 + $0x608] sm:$0xff]
    %v2051 = vld [vmem:[#allocation14 + $0x610] sm:$0xff]
    %v2052 = vld [vmem:[#allocation14 + $0x618] sm:$0xff]
    %v2053 = vld [vmem:[#allocation14 + $0x620] sm:$0xff]
    %v2054 = vld [vmem:[#allocation14 + $0x628] sm:$0xff]
    %v2055 = vld [vmem:[#allocation14 + $0x630] sm:$0xff]
    %v2056 = vld [vmem:[#allocation14 + $0x638] sm:$0xff]
    %v2057 = vld [vmem:[#allocation14 + $0x640] sm:$0xff]
    %v2058 = vld [vmem:[#allocation14 + $0x648] sm:$0xff]
    %v2059 = vld [vmem:[#allocation14 + $0x650] sm:$0xff]
    %v2060 = vld [vmem:[#allocation14 + $0x658] sm:$0xff]
    %v2061 = vld [vmem:[#allocation14 + $0x660] sm:$0xff]
    %v2062 = vld [vmem:[#allocation14 + $0x668] sm:$0xff]
    %v2063 = vld [vmem:[#allocation14 + $0x670] sm:$0xff]
    %v2064 = vld [vmem:[#allocation14 + $0x678] sm:$0xff]
    %v2065 = vld [vmem:[#allocation14 + $0x680] sm:$0xff]
    %v2066 = vld [vmem:[#allocation14 + $0x688] sm:$0xff]
    %v2067 = vld [vmem:[#allocation14 + $0x690] sm:$0xff]
    %v2068 = vld [vmem:[#allocation14 + $0x698] sm:$0xff]
    %v2069 = vld [vmem:[#allocation14 + $0x6a0] sm:$0xff]
    %v2070 = vld [vmem:[#allocation14 + $0x6a8] sm:$0xff]
    %v2071 = vld [vmem:[#allocation14 + $0x6b0] sm:$0xff]
    %v2072 = vld [vmem:[#allocation14 + $0x6b8] sm:$0xff]
    %v2073 = vld [vmem:[#allocation14 + $0x6c0] sm:$0xff]
    %v2074 = vld [vmem:[#allocation14 + $0x6c8] sm:$0xff]
    %v2075 = vld [vmem:[#allocation14 + $0x6d0] sm:$0xff]
    %v2076 = vld [vmem:[#allocation14 + $0x6d8] sm:$0xff]
    %v2077 = vld [vmem:[#allocation14 + $0x6e0] sm:$0xff]
    %v2078 = vld [vmem:[#allocation14 + $0x6e8] sm:$0xff]
    %v2079 = vld [vmem:[#allocation14 + $0x6f0] sm:$0xff]
    %v2080 = vld [vmem:[#allocation14 + $0x6f8] sm:$0xff]
    %v2081 = vld [vmem:[#allocation14 + $0x700] sm:$0xff]
    %v2082 = vld [vmem:[#allocation14 + $0x708] sm:$0xff]
    %v2083 = vld [vmem:[#allocation14 + $0x710] sm:$0xff]
    %v2084 = vld [vmem:[#allocation14 + $0x718] sm:$0xff]
    %v2085 = vld [vmem:[#allocation14 + $0x720] sm:$0xff]
    %v2086 = vld [vmem:[#allocation14 + $0x728] sm:$0xff]
    %v2087 = vld [vmem:[#allocation14 + $0x730] sm:$0xff]
    %v2088 = vld [vmem:[#allocation14 + $0x738] sm:$0xff]
    %v2089 = vld [vmem:[#allocation14 + $0x740] sm:$0xff]
    %v2090 = vld [vmem:[#allocation14 + $0x748] sm:$0xff]
    %v2091 = vld [vmem:[#allocation14 + $0x750] sm:$0xff]
    %v2092 = vld [vmem:[#allocation14 + $0x758] sm:$0xff]
    %v2093 = vld [vmem:[#allocation14 + $0x760] sm:$0xff]
    %v2094 = vld [vmem:[#allocation14 + $0x768] sm:$0xff]
    %v2095 = vld [vmem:[#allocation14 + $0x770] sm:$0xff]
    %v2096 = vld [vmem:[#allocation14 + $0x778] sm:$0xff]
    %v2097 = vld [vmem:[#allocation14 + $0x780] sm:$0xff]
    %v2098 = vld [vmem:[#allocation14 + $0x788] sm:$0xff]
    %v2099 = vld [vmem:[#allocation14 + $0x790] sm:$0xff]
    %v2100 = vld [vmem:[#allocation14 + $0x798] sm:$0xff]
    %v2101 = vld [vmem:[#allocation14 + $0x7a0] sm:$0xff]
    %v2102 = vld [vmem:[#allocation14 + $0x7a8] sm:$0xff]
    %v2103 = vld [vmem:[#allocation14 + $0x7b0] sm:$0xff]
    %v2104 = vld [vmem:[#allocation14 + $0x7b8] sm:$0xff]
    %v2105 = vld [vmem:[#allocation14 + $0x7c0] sm:$0xff]
    %v2106 = vld [vmem:[#allocation14 + $0x7c8] sm:$0xff]
    %v2107 = vld [vmem:[#allocation14 + $0x7d0] sm:$0xff]
    %v2108 = vld [vmem:[#allocation14 + $0x7d8] sm:$0xff]
    %v2109 = vld [vmem:[#allocation14 + $0x7e0] sm:$0xff]
    %v2110 = vld [vmem:[#allocation14 + $0x7e8] sm:$0xff]
    %v2111 = vld [vmem:[#allocation14 + $0x7f0] sm:$0xff]
    %v2112 = vld [vmem:[#allocation14 + $0x7f8] sm:$0xff]
    %v2113 = vld [vmem:[#allocation16] sm:$0xff]
    %v2115 = vlaneseq
    %v2116 = vshrl.u32 %v2115, 7
    %v2117 = vsub.s32 0, %v2116
    %v2118 = vrot.slane %v2113, %v2117
    %v2119 = vlaneseq
    %v2120 = vshrl.u32 %v2119, 7
    %v2121 = vsub.s32 1, %v2120
    %v2122 = vrot.slane %v2113, %v2121
    %v2123 = vlaneseq
    %v2124 = vshrl.u32 %v2123, 7
    %v2125 = vsub.s32 2, %v2124
    %v2126 = vrot.slane %v2113, %v2125
    %v2127 = vlaneseq
    %v2128 = vshrl.u32 %v2127, 7
    %v2129 = vsub.s32 3, %v2128
    %v2130 = vrot.slane %v2113, %v2129
    %v2131 = vlaneseq
    %v2132 = vshrl.u32 %v2131, 7
    %v2133 = vsub.s32 4, %v2132
    %v2134 = vrot.slane %v2113, %v2133
    %v2135 = vlaneseq
    %v2136 = vshrl.u32 %v2135, 7
    %v2137 = vsub.s32 5, %v2136
    %v2138 = vrot.slane %v2113, %v2137
    %v2139 = vlaneseq
    %v2140 = vshrl.u32 %v2139, 7
    %v2141 = vsub.s32 6, %v2140
    %v2142 = vrot.slane %v2113, %v2141
    %v2143 = vlaneseq
    %v2144 = vshrl.u32 %v2143, 7
    %v2145 = vsub.s32 7, %v2144
    %v2146 = vrot.slane %v2113, %v2145
    %v2411 = vunpack.c.l.b16 %v1857
    %v2412 = vunpack.c.h.b16 %v1857
    %v2413 = vunpack.c.l.b16 %v1858
    %v2414 = vunpack.c.h.b16 %v1858
    %v2415 = vunpack.c.l.b16 %v1859
    %v2416 = vunpack.c.h.b16 %v1859
    %v2417 = vunpack.c.l.b16 %v1860
    %v2418 = vunpack.c.h.b16 %v1860
    %v2419 = vunpack.c.l.b16 %v1861
    %v2420 = vunpack.c.h.b16 %v1861
    %v2421 = vunpack.c.l.b16 %v1862
    %v2422 = vunpack.c.h.b16 %v1862
    %v2423 = vunpack.c.l.b16 %v1863
    %v2424 = vunpack.c.h.b16 %v1863
    %v2425 = vunpack.c.l.b16 %v1864
    %v2426 = vunpack.c.h.b16 %v1864
    %v2427 = vunpack.c.l.b16 %v1865
    %v2428 = vunpack.c.h.b16 %v1865
    %v2429 = vunpack.c.l.b16 %v1866
    %v2430 = vunpack.c.h.b16 %v1866
    %v2431 = vunpack.c.l.b16 %v1867
    %v2432 = vunpack.c.h.b16 %v1867
    %v2433 = vunpack.c.l.b16 %v1868
    %v2434 = vunpack.c.h.b16 %v1868
    %v2435 = vunpack.c.l.b16 %v1869
    %v2436 = vunpack.c.h.b16 %v1869
    %v2437 = vunpack.c.l.b16 %v1870
    %v2438 = vunpack.c.h.b16 %v1870
    %v2439 = vunpack.c.l.b16 %v1871
    %v2440 = vunpack.c.h.b16 %v1871
    %v2441 = vunpack.c.l.b16 %v1872
    %v2442 = vunpack.c.h.b16 %v1872
    %v2443 = vunpack.c.l.b16 %v1873
    %v2444 = vunpack.c.h.b16 %v1873
    %v2445 = vunpack.c.l.b16 %v1874
    %v2446 = vunpack.c.h.b16 %v1874
    %v2447 = vunpack.c.l.b16 %v1875
    %v2448 = vunpack.c.h.b16 %v1875
    %v2449 = vunpack.c.l.b16 %v1876
    %v2450 = vunpack.c.h.b16 %v1876
    %v2451 = vunpack.c.l.b16 %v1877
    %v2452 = vunpack.c.h.b16 %v1877
    %v2453 = vunpack.c.l.b16 %v1878
    %v2454 = vunpack.c.h.b16 %v1878
    %v2455 = vunpack.c.l.b16 %v1879
    %v2456 = vunpack.c.h.b16 %v1879
    %v2457 = vunpack.c.l.b16 %v1880
    %v2458 = vunpack.c.h.b16 %v1880
    %v2459 = vunpack.c.l.b16 %v1881
    %v2460 = vunpack.c.h.b16 %v1881
    %v2461 = vunpack.c.l.b16 %v1882
    %v2462 = vunpack.c.h.b16 %v1882
    %v2463 = vunpack.c.l.b16 %v1883
    %v2464 = vunpack.c.h.b16 %v1883
    %v2465 = vunpack.c.l.b16 %v1884
    %v2466 = vunpack.c.h.b16 %v1884
    %v2467 = vunpack.c.l.b16 %v1885
    %v2468 = vunpack.c.h.b16 %v1885
    %v2469 = vunpack.c.l.b16 %v1886
    %v2470 = vunpack.c.h.b16 %v1886
    %v2471 = vunpack.c.l.b16 %v1887
    %v2472 = vunpack.c.h.b16 %v1887
    %v2473 = vunpack.c.l.b16 %v1888
    %v2474 = vunpack.c.h.b16 %v1888
    %v2475 = vunpack.c.l.b16 %v1889
    %v2476 = vunpack.c.h.b16 %v1889
    %v2477 = vunpack.c.l.b16 %v1890
    %v2478 = vunpack.c.h.b16 %v1890
    %v2479 = vunpack.c.l.b16 %v1891
    %v2480 = vunpack.c.h.b16 %v1891
    %v2481 = vunpack.c.l.b16 %v1892
    %v2482 = vunpack.c.h.b16 %v1892
    %v2483 = vunpack.c.l.b16 %v1893
    %v2484 = vunpack.c.h.b16 %v1893
    %v2485 = vunpack.c.l.b16 %v1894
    %v2486 = vunpack.c.h.b16 %v1894
    %v2487 = vunpack.c.l.b16 %v1895
    %v2488 = vunpack.c.h.b16 %v1895
    %v2489 = vunpack.c.l.b16 %v1896
    %v2490 = vunpack.c.h.b16 %v1896
    %v2491 = vunpack.c.l.b16 %v1897
    %v2492 = vunpack.c.h.b16 %v1897
    %v2493 = vunpack.c.l.b16 %v1898
    %v2494 = vunpack.c.h.b16 %v1898
    %v2495 = vunpack.c.l.b16 %v1899
    %v2496 = vunpack.c.h.b16 %v1899
    %v2497 = vunpack.c.l.b16 %v1900
    %v2498 = vunpack.c.h.b16 %v1900
    %v2499 = vunpack.c.l.b16 %v1901
    %v2500 = vunpack.c.h.b16 %v1901
    %v2501 = vunpack.c.l.b16 %v1902
    %v2502 = vunpack.c.h.b16 %v1902
    %v2503 = vunpack.c.l.b16 %v1903
    %v2504 = vunpack.c.h.b16 %v1903
    %v2505 = vunpack.c.l.b16 %v1904
    %v2506 = vunpack.c.h.b16 %v1904
    %v2507 = vunpack.c.l.b16 %v1905
    %v2508 = vunpack.c.h.b16 %v1905
    %v2509 = vunpack.c.l.b16 %v1906
    %v2510 = vunpack.c.h.b16 %v1906
    %v2511 = vunpack.c.l.b16 %v1907
    %v2512 = vunpack.c.h.b16 %v1907
    %v2513 = vunpack.c.l.b16 %v1908
    %v2514 = vunpack.c.h.b16 %v1908
    %v2515 = vunpack.c.l.b16 %v1909
    %v2516 = vunpack.c.h.b16 %v1909
    %v2517 = vunpack.c.l.b16 %v1910
    %v2518 = vunpack.c.h.b16 %v1910
    %v2519 = vunpack.c.l.b16 %v1911
    %v2520 = vunpack.c.h.b16 %v1911
    %v2521 = vunpack.c.l.b16 %v1912
    %v2522 = vunpack.c.h.b16 %v1912
    %v2523 = vunpack.c.l.b16 %v1913
    %v2524 = vunpack.c.h.b16 %v1913
    %v2525 = vunpack.c.l.b16 %v1914
    %v2526 = vunpack.c.h.b16 %v1914
    %v2527 = vunpack.c.l.b16 %v1915
    %v2528 = vunpack.c.h.b16 %v1915
    %v2529 = vunpack.c.l.b16 %v1916
    %v2530 = vunpack.c.h.b16 %v1916
    %v2531 = vunpack.c.l.b16 %v1917
    %v2532 = vunpack.c.h.b16 %v1917
    %v2533 = vunpack.c.l.b16 %v1918
    %v2534 = vunpack.c.h.b16 %v1918
    %v2535 = vunpack.c.l.b16 %v1919
    %v2536 = vunpack.c.h.b16 %v1919
    %v2537 = vunpack.c.l.b16 %v1920
    %v2538 = vunpack.c.h.b16 %v1920
    %v2539 = vunpack.c.l.b16 %v1921
    %v2540 = vunpack.c.h.b16 %v1921
    %v2541 = vunpack.c.l.b16 %v1922
    %v2542 = vunpack.c.h.b16 %v1922
    %v2543 = vunpack.c.l.b16 %v1923
    %v2544 = vunpack.c.h.b16 %v1923
    %v2545 = vunpack.c.l.b16 %v1924
    %v2546 = vunpack.c.h.b16 %v1924
    %v2547 = vunpack.c.l.b16 %v1925
    %v2548 = vunpack.c.h.b16 %v1925
    %v2549 = vunpack.c.l.b16 %v1926
    %v2550 = vunpack.c.h.b16 %v1926
    %v2551 = vunpack.c.l.b16 %v1927
    %v2552 = vunpack.c.h.b16 %v1927
    %v2553 = vunpack.c.l.b16 %v1928
    %v2554 = vunpack.c.h.b16 %v1928
    %v2555 = vunpack.c.l.b16 %v1929
    %v2556 = vunpack.c.h.b16 %v1929
    %v2557 = vunpack.c.l.b16 %v1930
    %v2558 = vunpack.c.h.b16 %v1930
    %v2559 = vunpack.c.l.b16 %v1931
    %v2560 = vunpack.c.h.b16 %v1931
    %v2561 = vunpack.c.l.b16 %v1932
    %v2562 = vunpack.c.h.b16 %v1932
    %v2563 = vunpack.c.l.b16 %v1933
    %v2564 = vunpack.c.h.b16 %v1933
    %v2565 = vunpack.c.l.b16 %v1934
    %v2566 = vunpack.c.h.b16 %v1934
    %v2567 = vunpack.c.l.b16 %v1935
    %v2568 = vunpack.c.h.b16 %v1935
    %v2569 = vunpack.c.l.b16 %v1936
    %v2570 = vunpack.c.h.b16 %v1936
    %v2571 = vunpack.c.l.b16 %v1937
    %v2572 = vunpack.c.h.b16 %v1937
    %v2573 = vunpack.c.l.b16 %v1938
    %v2574 = vunpack.c.h.b16 %v1938
    %v2575 = vunpack.c.l.b16 %v1939
    %v2576 = vunpack.c.h.b16 %v1939
    %v2577 = vunpack.c.l.b16 %v1940
    %v2578 = vunpack.c.h.b16 %v1940
    %v2579 = vunpack.c.l.b16 %v1941
    %v2580 = vunpack.c.h.b16 %v1941
    %v2581 = vunpack.c.l.b16 %v1942
    %v2582 = vunpack.c.h.b16 %v1942
    %v2583 = vunpack.c.l.b16 %v1943
    %v2584 = vunpack.c.h.b16 %v1943
    %v2585 = vunpack.c.l.b16 %v1944
    %v2586 = vunpack.c.h.b16 %v1944
    %v2587 = vunpack.c.l.b16 %v1945
    %v2588 = vunpack.c.h.b16 %v1945
    %v2589 = vunpack.c.l.b16 %v1946
    %v2590 = vunpack.c.h.b16 %v1946
    %v2591 = vunpack.c.l.b16 %v1947
    %v2592 = vunpack.c.h.b16 %v1947
    %v2593 = vunpack.c.l.b16 %v1948
    %v2594 = vunpack.c.h.b16 %v1948
    %v2595 = vunpack.c.l.b16 %v1949
    %v2596 = vunpack.c.h.b16 %v1949
    %v2597 = vunpack.c.l.b16 %v1950
    %v2598 = vunpack.c.h.b16 %v1950
    %v2599 = vunpack.c.l.b16 %v1951
    %v2600 = vunpack.c.h.b16 %v1951
    %v2601 = vunpack.c.l.b16 %v1952
    %v2602 = vunpack.c.h.b16 %v1952
    %v2603 = vunpack.c.l.b16 %v1953
    %v2604 = vunpack.c.h.b16 %v1953
    %v2605 = vunpack.c.l.b16 %v1954
    %v2606 = vunpack.c.h.b16 %v1954
    %v2607 = vunpack.c.l.b16 %v1955
    %v2608 = vunpack.c.h.b16 %v1955
    %v2609 = vunpack.c.l.b16 %v1956
    %v2610 = vunpack.c.h.b16 %v1956
    %v2611 = vunpack.c.l.b16 %v1957
    %v2612 = vunpack.c.h.b16 %v1957
    %v2613 = vunpack.c.l.b16 %v1958
    %v2614 = vunpack.c.h.b16 %v1958
    %v2615 = vunpack.c.l.b16 %v1959
    %v2616 = vunpack.c.h.b16 %v1959
    %v2617 = vunpack.c.l.b16 %v1960
    %v2618 = vunpack.c.h.b16 %v1960
    %v2619 = vunpack.c.l.b16 %v1961
    %v2620 = vunpack.c.h.b16 %v1961
    %v2621 = vunpack.c.l.b16 %v1962
    %v2622 = vunpack.c.h.b16 %v1962
    %v2623 = vunpack.c.l.b16 %v1963
    %v2624 = vunpack.c.h.b16 %v1963
    %v2625 = vunpack.c.l.b16 %v1964
    %v2626 = vunpack.c.h.b16 %v1964
    %v2627 = vunpack.c.l.b16 %v1965
    %v2628 = vunpack.c.h.b16 %v1965
    %v2629 = vunpack.c.l.b16 %v1966
    %v2630 = vunpack.c.h.b16 %v1966
    %v2631 = vunpack.c.l.b16 %v1967
    %v2632 = vunpack.c.h.b16 %v1967
    %v2633 = vunpack.c.l.b16 %v1968
    %v2634 = vunpack.c.h.b16 %v1968
    %v2635 = vunpack.c.l.b16 %v1969
    %v2636 = vunpack.c.h.b16 %v1969
    %v2637 = vunpack.c.l.b16 %v1970
    %v2638 = vunpack.c.h.b16 %v1970
    %v2639 = vunpack.c.l.b16 %v1971
    %v2640 = vunpack.c.h.b16 %v1971
    %v2641 = vunpack.c.l.b16 %v1972
    %v2642 = vunpack.c.h.b16 %v1972
    %v2643 = vunpack.c.l.b16 %v1973
    %v2644 = vunpack.c.h.b16 %v1973
    %v2645 = vunpack.c.l.b16 %v1974
    %v2646 = vunpack.c.h.b16 %v1974
    %v2647 = vunpack.c.l.b16 %v1975
    %v2648 = vunpack.c.h.b16 %v1975
    %v2649 = vunpack.c.l.b16 %v1976
    %v2650 = vunpack.c.h.b16 %v1976
    %v2651 = vunpack.c.l.b16 %v1977
    %v2652 = vunpack.c.h.b16 %v1977
    %v2653 = vunpack.c.l.b16 %v1978
    %v2654 = vunpack.c.h.b16 %v1978
    %v2655 = vunpack.c.l.b16 %v1979
    %v2656 = vunpack.c.h.b16 %v1979
    %v2657 = vunpack.c.l.b16 %v1980
    %v2658 = vunpack.c.h.b16 %v1980
    %v2659 = vunpack.c.l.b16 %v1981
    %v2660 = vunpack.c.h.b16 %v1981
    %v2661 = vunpack.c.l.b16 %v1982
    %v2662 = vunpack.c.h.b16 %v1982
    %v2663 = vunpack.c.l.b16 %v1983
    %v2664 = vunpack.c.h.b16 %v1983
    %v2665 = vunpack.c.l.b16 %v1984
    %v2666 = vunpack.c.h.b16 %v1984
    %v2667 = vunpack.c.l.b16 %v1985
    %v2668 = vunpack.c.h.b16 %v1985
    %v2669 = vunpack.c.l.b16 %v1986
    %v2670 = vunpack.c.h.b16 %v1986
    %v2671 = vunpack.c.l.b16 %v1987
    %v2672 = vunpack.c.h.b16 %v1987
    %v2673 = vunpack.c.l.b16 %v1988
    %v2674 = vunpack.c.h.b16 %v1988
    %v2675 = vunpack.c.l.b16 %v1989
    %v2676 = vunpack.c.h.b16 %v1989
    %v2677 = vunpack.c.l.b16 %v1990
    %v2678 = vunpack.c.h.b16 %v1990
    %v2679 = vunpack.c.l.b16 %v1991
    %v2680 = vunpack.c.h.b16 %v1991
    %v2681 = vunpack.c.l.b16 %v1992
    %v2682 = vunpack.c.h.b16 %v1992
    %v2683 = vunpack.c.l.b16 %v1993
    %v2684 = vunpack.c.h.b16 %v1993
    %v2685 = vunpack.c.l.b16 %v1994
    %v2686 = vunpack.c.h.b16 %v1994
    %v2687 = vunpack.c.l.b16 %v1995
    %v2688 = vunpack.c.h.b16 %v1995
    %v2689 = vunpack.c.l.b16 %v1996
    %v2690 = vunpack.c.h.b16 %v1996
    %v2691 = vunpack.c.l.b16 %v1997
    %v2692 = vunpack.c.h.b16 %v1997
    %v2693 = vunpack.c.l.b16 %v1998
    %v2694 = vunpack.c.h.b16 %v1998
    %v2695 = vunpack.c.l.b16 %v1999
    %v2696 = vunpack.c.h.b16 %v1999
    %v2697 = vunpack.c.l.b16 %v2000
    %v2698 = vunpack.c.h.b16 %v2000
    %v2699 = vunpack.c.l.b16 %v2001
    %v2700 = vunpack.c.h.b16 %v2001
    %v2701 = vunpack.c.l.b16 %v2002
    %v2702 = vunpack.c.h.b16 %v2002
    %v2703 = vunpack.c.l.b16 %v2003
    %v2704 = vunpack.c.h.b16 %v2003
    %v2705 = vunpack.c.l.b16 %v2004
    %v2706 = vunpack.c.h.b16 %v2004
    %v2707 = vunpack.c.l.b16 %v2005
    %v2708 = vunpack.c.h.b16 %v2005
    %v2709 = vunpack.c.l.b16 %v2006
    %v2710 = vunpack.c.h.b16 %v2006
    %v2711 = vunpack.c.l.b16 %v2007
    %v2712 = vunpack.c.h.b16 %v2007
    %v2713 = vunpack.c.l.b16 %v2008
    %v2714 = vunpack.c.h.b16 %v2008
    %v2715 = vunpack.c.l.b16 %v2009
    %v2716 = vunpack.c.h.b16 %v2009
    %v2717 = vunpack.c.l.b16 %v2010
    %v2718 = vunpack.c.h.b16 %v2010
    %v2719 = vunpack.c.l.b16 %v2011
    %v2720 = vunpack.c.h.b16 %v2011
    %v2721 = vunpack.c.l.b16 %v2012
    %v2722 = vunpack.c.h.b16 %v2012
    %v2723 = vunpack.c.l.b16 %v2013
    %v2724 = vunpack.c.h.b16 %v2013
    %v2725 = vunpack.c.l.b16 %v2014
    %v2726 = vunpack.c.h.b16 %v2014
    %v2727 = vunpack.c.l.b16 %v2015
    %v2728 = vunpack.c.h.b16 %v2015
    %v2729 = vunpack.c.l.b16 %v2016
    %v2730 = vunpack.c.h.b16 %v2016
    %v2731 = vunpack.c.l.b16 %v2017
    %v2732 = vunpack.c.h.b16 %v2017
    %v2733 = vunpack.c.l.b16 %v2018
    %v2734 = vunpack.c.h.b16 %v2018
    %v2735 = vunpack.c.l.b16 %v2019
    %v2736 = vunpack.c.h.b16 %v2019
    %v2737 = vunpack.c.l.b16 %v2020
    %v2738 = vunpack.c.h.b16 %v2020
    %v2739 = vunpack.c.l.b16 %v2021
    %v2740 = vunpack.c.h.b16 %v2021
    %v2741 = vunpack.c.l.b16 %v2022
    %v2742 = vunpack.c.h.b16 %v2022
    %v2743 = vunpack.c.l.b16 %v2023
    %v2744 = vunpack.c.h.b16 %v2023
    %v2745 = vunpack.c.l.b16 %v2024
    %v2746 = vunpack.c.h.b16 %v2024
    %v2747 = vunpack.c.l.b16 %v2025
    %v2748 = vunpack.c.h.b16 %v2025
    %v2749 = vunpack.c.l.b16 %v2026
    %v2750 = vunpack.c.h.b16 %v2026
    %v2751 = vunpack.c.l.b16 %v2027
    %v2752 = vunpack.c.h.b16 %v2027
    %v2753 = vunpack.c.l.b16 %v2028
    %v2754 = vunpack.c.h.b16 %v2028
    %v2755 = vunpack.c.l.b16 %v2029
    %v2756 = vunpack.c.h.b16 %v2029
    %v2757 = vunpack.c.l.b16 %v2030
    %v2758 = vunpack.c.h.b16 %v2030
    %v2759 = vunpack.c.l.b16 %v2031
    %v2760 = vunpack.c.h.b16 %v2031
    %v2761 = vunpack.c.l.b16 %v2032
    %v2762 = vunpack.c.h.b16 %v2032
    %v2763 = vunpack.c.l.b16 %v2033
    %v2764 = vunpack.c.h.b16 %v2033
    %v2765 = vunpack.c.l.b16 %v2034
    %v2766 = vunpack.c.h.b16 %v2034
    %v2767 = vunpack.c.l.b16 %v2035
    %v2768 = vunpack.c.h.b16 %v2035
    %v2769 = vunpack.c.l.b16 %v2036
    %v2770 = vunpack.c.h.b16 %v2036
    %v2771 = vunpack.c.l.b16 %v2037
    %v2772 = vunpack.c.h.b16 %v2037
    %v2773 = vunpack.c.l.b16 %v2038
    %v2774 = vunpack.c.h.b16 %v2038
    %v2775 = vunpack.c.l.b16 %v2039
    %v2776 = vunpack.c.h.b16 %v2039
    %v2777 = vunpack.c.l.b16 %v2040
    %v2778 = vunpack.c.h.b16 %v2040
    %v2779 = vunpack.c.l.b16 %v2041
    %v2780 = vunpack.c.h.b16 %v2041
    %v2781 = vunpack.c.l.b16 %v2042
    %v2782 = vunpack.c.h.b16 %v2042
    %v2783 = vunpack.c.l.b16 %v2043
    %v2784 = vunpack.c.h.b16 %v2043
    %v2785 = vunpack.c.l.b16 %v2044
    %v2786 = vunpack.c.h.b16 %v2044
    %v2787 = vunpack.c.l.b16 %v2045
    %v2788 = vunpack.c.h.b16 %v2045
    %v2789 = vunpack.c.l.b16 %v2046
    %v2790 = vunpack.c.h.b16 %v2046
    %v2791 = vunpack.c.l.b16 %v2047
    %v2792 = vunpack.c.h.b16 %v2047
    %v2793 = vunpack.c.l.b16 %v2048
    %v2794 = vunpack.c.h.b16 %v2048
    %v2795 = vunpack.c.l.b16 %v2049
    %v2796 = vunpack.c.h.b16 %v2049
    %v2797 = vunpack.c.l.b16 %v2050
    %v2798 = vunpack.c.h.b16 %v2050
    %v2799 = vunpack.c.l.b16 %v2051
    %v2800 = vunpack.c.h.b16 %v2051
    %v2801 = vunpack.c.l.b16 %v2052
    %v2802 = vunpack.c.h.b16 %v2052
    %v2803 = vunpack.c.l.b16 %v2053
    %v2804 = vunpack.c.h.b16 %v2053
    %v2805 = vunpack.c.l.b16 %v2054
    %v2806 = vunpack.c.h.b16 %v2054
    %v2807 = vunpack.c.l.b16 %v2055
    %v2808 = vunpack.c.h.b16 %v2055
    %v2809 = vunpack.c.l.b16 %v2056
    %v2810 = vunpack.c.h.b16 %v2056
    %v2811 = vunpack.c.l.b16 %v2057
    %v2812 = vunpack.c.h.b16 %v2057
    %v2813 = vunpack.c.l.b16 %v2058
    %v2814 = vunpack.c.h.b16 %v2058
    %v2815 = vunpack.c.l.b16 %v2059
    %v2816 = vunpack.c.h.b16 %v2059
    %v2817 = vunpack.c.l.b16 %v2060
    %v2818 = vunpack.c.h.b16 %v2060
    %v2819 = vunpack.c.l.b16 %v2061
    %v2820 = vunpack.c.h.b16 %v2061
    %v2821 = vunpack.c.l.b16 %v2062
    %v2822 = vunpack.c.h.b16 %v2062
    %v2823 = vunpack.c.l.b16 %v2063
    %v2824 = vunpack.c.h.b16 %v2063
    %v2825 = vunpack.c.l.b16 %v2064
    %v2826 = vunpack.c.h.b16 %v2064
    %v2827 = vunpack.c.l.b16 %v2065
    %v2828 = vunpack.c.h.b16 %v2065
    %v2829 = vunpack.c.l.b16 %v2066
    %v2830 = vunpack.c.h.b16 %v2066
    %v2831 = vunpack.c.l.b16 %v2067
    %v2832 = vunpack.c.h.b16 %v2067
    %v2833 = vunpack.c.l.b16 %v2068
    %v2834 = vunpack.c.h.b16 %v2068
    %v2835 = vunpack.c.l.b16 %v2069
    %v2836 = vunpack.c.h.b16 %v2069
    %v2837 = vunpack.c.l.b16 %v2070
    %v2838 = vunpack.c.h.b16 %v2070
    %v2839 = vunpack.c.l.b16 %v2071
    %v2840 = vunpack.c.h.b16 %v2071
    %v2841 = vunpack.c.l.b16 %v2072
    %v2842 = vunpack.c.h.b16 %v2072
    %v2843 = vunpack.c.l.b16 %v2073
    %v2844 = vunpack.c.h.b16 %v2073
    %v2845 = vunpack.c.l.b16 %v2074
    %v2846 = vunpack.c.h.b16 %v2074
    %v2847 = vunpack.c.l.b16 %v2075
    %v2848 = vunpack.c.h.b16 %v2075
    %v2849 = vunpack.c.l.b16 %v2076
    %v2850 = vunpack.c.h.b16 %v2076
    %v2851 = vunpack.c.l.b16 %v2077
    %v2852 = vunpack.c.h.b16 %v2077
    %v2853 = vunpack.c.l.b16 %v2078
    %v2854 = vunpack.c.h.b16 %v2078
    %v2855 = vunpack.c.l.b16 %v2079
    %v2856 = vunpack.c.h.b16 %v2079
    %v2857 = vunpack.c.l.b16 %v2080
    %v2858 = vunpack.c.h.b16 %v2080
    %v2859 = vunpack.c.l.b16 %v2081
    %v2860 = vunpack.c.h.b16 %v2081
    %v2861 = vunpack.c.l.b16 %v2082
    %v2862 = vunpack.c.h.b16 %v2082
    %v2863 = vunpack.c.l.b16 %v2083
    %v2864 = vunpack.c.h.b16 %v2083
    %v2865 = vunpack.c.l.b16 %v2084
    %v2866 = vunpack.c.h.b16 %v2084
    %v2867 = vunpack.c.l.b16 %v2085
    %v2868 = vunpack.c.h.b16 %v2085
    %v2869 = vunpack.c.l.b16 %v2086
    %v2870 = vunpack.c.h.b16 %v2086
    %v2871 = vunpack.c.l.b16 %v2087
    %v2872 = vunpack.c.h.b16 %v2087
    %v2873 = vunpack.c.l.b16 %v2088
    %v2874 = vunpack.c.h.b16 %v2088
    %v2875 = vunpack.c.l.b16 %v2089
    %v2876 = vunpack.c.h.b16 %v2089
    %v2877 = vunpack.c.l.b16 %v2090
    %v2878 = vunpack.c.h.b16 %v2090
    %v2879 = vunpack.c.l.b16 %v2091
    %v2880 = vunpack.c.h.b16 %v2091
    %v2881 = vunpack.c.l.b16 %v2092
    %v2882 = vunpack.c.h.b16 %v2092
    %v2883 = vunpack.c.l.b16 %v2093
    %v2884 = vunpack.c.h.b16 %v2093
    %v2885 = vunpack.c.l.b16 %v2094
    %v2886 = vunpack.c.h.b16 %v2094
    %v2887 = vunpack.c.l.b16 %v2095
    %v2888 = vunpack.c.h.b16 %v2095
    %v2889 = vunpack.c.l.b16 %v2096
    %v2890 = vunpack.c.h.b16 %v2096
    %v2891 = vunpack.c.l.b16 %v2097
    %v2892 = vunpack.c.h.b16 %v2097
    %v2893 = vunpack.c.l.b16 %v2098
    %v2894 = vunpack.c.h.b16 %v2098
    %v2895 = vunpack.c.l.b16 %v2099
    %v2896 = vunpack.c.h.b16 %v2099
    %v2897 = vunpack.c.l.b16 %v2100
    %v2898 = vunpack.c.h.b16 %v2100
    %v2899 = vunpack.c.l.b16 %v2101
    %v2900 = vunpack.c.h.b16 %v2101
    %v2901 = vunpack.c.l.b16 %v2102
    %v2902 = vunpack.c.h.b16 %v2102
    %v2903 = vunpack.c.l.b16 %v2103
    %v2904 = vunpack.c.h.b16 %v2103
    %v2905 = vunpack.c.l.b16 %v2104
    %v2906 = vunpack.c.h.b16 %v2104
    %v2907 = vunpack.c.l.b16 %v2105
    %v2908 = vunpack.c.h.b16 %v2105
    %v2909 = vunpack.c.l.b16 %v2106
    %v2910 = vunpack.c.h.b16 %v2106
    %v2911 = vunpack.c.l.b16 %v2107
    %v2912 = vunpack.c.h.b16 %v2107
    %v2913 = vunpack.c.l.b16 %v2108
    %v2914 = vunpack.c.h.b16 %v2108
    %v2915 = vunpack.c.l.b16 %v2109
    %v2916 = vunpack.c.h.b16 %v2109
    %v2917 = vunpack.c.l.b16 %v2110
    %v2918 = vunpack.c.h.b16 %v2110
    %v2919 = vunpack.c.l.b16 %v2111
    %v2920 = vunpack.c.h.b16 %v2111
    %v2921 = vunpack.c.l.b16 %v2112
    %v2922 = vunpack.c.h.b16 %v2112
    %v2923 = vpack.c.b16 %v2419, %v2411
    %v2924 = vpack.c.b16 %v2420, %v2412
    %v2925 = vpack.c.b16 %v2421, %v2413
    %v2926 = vpack.c.b16 %v2422, %v2414
    %v2927 = vpack.c.b16 %v2423, %v2415
    %v2928 = vpack.c.b16 %v2424, %v2416
    %v2929 = vpack.c.b16 %v2425, %v2417
    %v2930 = vpack.c.b16 %v2426, %v2418
    %v2931 = vpack.c.b16 %v2435, %v2427
    %v2932 = vpack.c.b16 %v2436, %v2428
    %v2933 = vpack.c.b16 %v2437, %v2429
    %v2934 = vpack.c.b16 %v2438, %v2430
    %v2935 = vpack.c.b16 %v2439, %v2431
    %v2936 = vpack.c.b16 %v2440, %v2432
    %v2937 = vpack.c.b16 %v2441, %v2433
    %v2938 = vpack.c.b16 %v2442, %v2434
    %v2939 = vpack.c.b16 %v2451, %v2443
    %v2940 = vpack.c.b16 %v2452, %v2444
    %v2941 = vpack.c.b16 %v2453, %v2445
    %v2942 = vpack.c.b16 %v2454, %v2446
    %v2943 = vpack.c.b16 %v2455, %v2447
    %v2944 = vpack.c.b16 %v2456, %v2448
    %v2945 = vpack.c.b16 %v2457, %v2449
    %v2946 = vpack.c.b16 %v2458, %v2450
    %v2947 = vpack.c.b16 %v2467, %v2459
    %v2948 = vpack.c.b16 %v2468, %v2460
    %v2949 = vpack.c.b16 %v2469, %v2461
    %v2950 = vpack.c.b16 %v2470, %v2462
    %v2951 = vpack.c.b16 %v2471, %v2463
    %v2952 = vpack.c.b16 %v2472, %v2464
    %v2953 = vpack.c.b16 %v2473, %v2465
    %v2954 = vpack.c.b16 %v2474, %v2466
    %v2955 = vpack.c.b16 %v2483, %v2475
    %v2956 = vpack.c.b16 %v2484, %v2476
    %v2957 = vpack.c.b16 %v2485, %v2477
    %v2958 = vpack.c.b16 %v2486, %v2478
    %v2959 = vpack.c.b16 %v2487, %v2479
    %v2960 = vpack.c.b16 %v2488, %v2480
    %v2961 = vpack.c.b16 %v2489, %v2481
    %v2962 = vpack.c.b16 %v2490, %v2482
    %v2963 = vpack.c.b16 %v2499, %v2491
    %v2964 = vpack.c.b16 %v2500, %v2492
    %v2965 = vpack.c.b16 %v2501, %v2493
    %v2966 = vpack.c.b16 %v2502, %v2494
    %v2967 = vpack.c.b16 %v2503, %v2495
    %v2968 = vpack.c.b16 %v2504, %v2496
    %v2969 = vpack.c.b16 %v2505, %v2497
    %v2970 = vpack.c.b16 %v2506, %v2498
    %v2971 = vpack.c.b16 %v2515, %v2507
    %v2972 = vpack.c.b16 %v2516, %v2508
    %v2973 = vpack.c.b16 %v2517, %v2509
    %v2974 = vpack.c.b16 %v2518, %v2510
    %v2975 = vpack.c.b16 %v2519, %v2511
    %v2976 = vpack.c.b16 %v2520, %v2512
    %v2977 = vpack.c.b16 %v2521, %v2513
    %v2978 = vpack.c.b16 %v2522, %v2514
    %v2979 = vpack.c.b16 %v2531, %v2523
    %v2980 = vpack.c.b16 %v2532, %v2524
    %v2981 = vpack.c.b16 %v2533, %v2525
    %v2982 = vpack.c.b16 %v2534, %v2526
    %v2983 = vpack.c.b16 %v2535, %v2527
    %v2984 = vpack.c.b16 %v2536, %v2528
    %v2985 = vpack.c.b16 %v2537, %v2529
    %v2986 = vpack.c.b16 %v2538, %v2530
    %v2987 = vpack.c.b16 %v2547, %v2539
    %v2988 = vpack.c.b16 %v2548, %v2540
    %v2989 = vpack.c.b16 %v2549, %v2541
    %v2990 = vpack.c.b16 %v2550, %v2542
    %v2991 = vpack.c.b16 %v2551, %v2543
    %v2992 = vpack.c.b16 %v2552, %v2544
    %v2993 = vpack.c.b16 %v2553, %v2545
    %v2994 = vpack.c.b16 %v2554, %v2546
    %v2995 = vpack.c.b16 %v2563, %v2555
    %v2996 = vpack.c.b16 %v2564, %v2556
    %v2997 = vpack.c.b16 %v2565, %v2557
    %v2998 = vpack.c.b16 %v2566, %v2558
    %v2999 = vpack.c.b16 %v2567, %v2559
    %v3000 = vpack.c.b16 %v2568, %v2560
    %v3001 = vpack.c.b16 %v2569, %v2561
    %v3002 = vpack.c.b16 %v2570, %v2562
    %v3003 = vpack.c.b16 %v2579, %v2571
    %v3004 = vpack.c.b16 %v2580, %v2572
    %v3005 = vpack.c.b16 %v2581, %v2573
    %v3006 = vpack.c.b16 %v2582, %v2574
    %v3007 = vpack.c.b16 %v2583, %v2575
    %v3008 = vpack.c.b16 %v2584, %v2576
    %v3009 = vpack.c.b16 %v2585, %v2577
    %v3010 = vpack.c.b16 %v2586, %v2578
    %v3011 = vpack.c.b16 %v2595, %v2587
    %v3012 = vpack.c.b16 %v2596, %v2588
    %v3013 = vpack.c.b16 %v2597, %v2589
    %v3014 = vpack.c.b16 %v2598, %v2590
    %v3015 = vpack.c.b16 %v2599, %v2591
    %v3016 = vpack.c.b16 %v2600, %v2592
    %v3017 = vpack.c.b16 %v2601, %v2593
    %v3018 = vpack.c.b16 %v2602, %v2594
    %v3019 = vpack.c.b16 %v2611, %v2603
    %v3020 = vpack.c.b16 %v2612, %v2604
    %v3021 = vpack.c.b16 %v2613, %v2605
    %v3022 = vpack.c.b16 %v2614, %v2606
    %v3023 = vpack.c.b16 %v2615, %v2607
    %v3024 = vpack.c.b16 %v2616, %v2608
    %v3025 = vpack.c.b16 %v2617, %v2609
    %v3026 = vpack.c.b16 %v2618, %v2610
    %v3027 = vpack.c.b16 %v2627, %v2619
    %v3028 = vpack.c.b16 %v2628, %v2620
    %v3029 = vpack.c.b16 %v2629, %v2621
    %v3030 = vpack.c.b16 %v2630, %v2622
    %v3031 = vpack.c.b16 %v2631, %v2623
    %v3032 = vpack.c.b16 %v2632, %v2624
    %v3033 = vpack.c.b16 %v2633, %v2625
    %v3034 = vpack.c.b16 %v2634, %v2626
    %v3035 = vpack.c.b16 %v2643, %v2635
    %v3036 = vpack.c.b16 %v2644, %v2636
    %v3037 = vpack.c.b16 %v2645, %v2637
    %v3038 = vpack.c.b16 %v2646, %v2638
    %v3039 = vpack.c.b16 %v2647, %v2639
    %v3040 = vpack.c.b16 %v2648, %v2640
    %v3041 = vpack.c.b16 %v2649, %v2641
    %v3042 = vpack.c.b16 %v2650, %v2642
    %v3043 = vpack.c.b16 %v2659, %v2651
    %v3044 = vpack.c.b16 %v2660, %v2652
    %v3045 = vpack.c.b16 %v2661, %v2653
    %v3046 = vpack.c.b16 %v2662, %v2654
    %v3047 = vpack.c.b16 %v2663, %v2655
    %v3048 = vpack.c.b16 %v2664, %v2656
    %v3049 = vpack.c.b16 %v2665, %v2657
    %v3050 = vpack.c.b16 %v2666, %v2658
    %v3051 = vpack.c.b16 %v2675, %v2667
    %v3052 = vpack.c.b16 %v2676, %v2668
    %v3053 = vpack.c.b16 %v2677, %v2669
    %v3054 = vpack.c.b16 %v2678, %v2670
    %v3055 = vpack.c.b16 %v2679, %v2671
    %v3056 = vpack.c.b16 %v2680, %v2672
    %v3057 = vpack.c.b16 %v2681, %v2673
    %v3058 = vpack.c.b16 %v2682, %v2674
    %v3059 = vpack.c.b16 %v2691, %v2683
    %v3060 = vpack.c.b16 %v2692, %v2684
    %v3061 = vpack.c.b16 %v2693, %v2685
    %v3062 = vpack.c.b16 %v2694, %v2686
    %v3063 = vpack.c.b16 %v2695, %v2687
    %v3064 = vpack.c.b16 %v2696, %v2688
    %v3065 = vpack.c.b16 %v2697, %v2689
    %v3066 = vpack.c.b16 %v2698, %v2690
    %v3067 = vpack.c.b16 %v2707, %v2699
    %v3068 = vpack.c.b16 %v2708, %v2700
    %v3069 = vpack.c.b16 %v2709, %v2701
    %v3070 = vpack.c.b16 %v2710, %v2702
    %v3071 = vpack.c.b16 %v2711, %v2703
    %v3072 = vpack.c.b16 %v2712, %v2704
    %v3073 = vpack.c.b16 %v2713, %v2705
    %v3074 = vpack.c.b16 %v2714, %v2706
    %v3075 = vpack.c.b16 %v2723, %v2715
    %v3076 = vpack.c.b16 %v2724, %v2716
    %v3077 = vpack.c.b16 %v2725, %v2717
    %v3078 = vpack.c.b16 %v2726, %v2718
    %v3079 = vpack.c.b16 %v2727, %v2719
    %v3080 = vpack.c.b16 %v2728, %v2720
    %v3081 = vpack.c.b16 %v2729, %v2721
    %v3082 = vpack.c.b16 %v2730, %v2722
    %v3083 = vpack.c.b16 %v2739, %v2731
    %v3084 = vpack.c.b16 %v2740, %v2732
    %v3085 = vpack.c.b16 %v2741, %v2733
    %v3086 = vpack.c.b16 %v2742, %v2734
    %v3087 = vpack.c.b16 %v2743, %v2735
    %v3088 = vpack.c.b16 %v2744, %v2736
    %v3089 = vpack.c.b16 %v2745, %v2737
    %v3090 = vpack.c.b16 %v2746, %v2738
    %v3091 = vpack.c.b16 %v2755, %v2747
    %v3092 = vpack.c.b16 %v2756, %v2748
    %v3093 = vpack.c.b16 %v2757, %v2749
    %v3094 = vpack.c.b16 %v2758, %v2750
    %v3095 = vpack.c.b16 %v2759, %v2751
    %v3096 = vpack.c.b16 %v2760, %v2752
    %v3097 = vpack.c.b16 %v2761, %v2753
    %v3098 = vpack.c.b16 %v2762, %v2754
    %v3099 = vpack.c.b16 %v2771, %v2763
    %v3100 = vpack.c.b16 %v2772, %v2764
    %v3101 = vpack.c.b16 %v2773, %v2765
    %v3102 = vpack.c.b16 %v2774, %v2766
    %v3103 = vpack.c.b16 %v2775, %v2767
    %v3104 = vpack.c.b16 %v2776, %v2768
    %v3105 = vpack.c.b16 %v2777, %v2769
    %v3106 = vpack.c.b16 %v2778, %v2770
    %v3107 = vpack.c.b16 %v2787, %v2779
    %v3108 = vpack.c.b16 %v2788, %v2780
    %v3109 = vpack.c.b16 %v2789, %v2781
    %v3110 = vpack.c.b16 %v2790, %v2782
    %v3111 = vpack.c.b16 %v2791, %v2783
    %v3112 = vpack.c.b16 %v2792, %v2784
    %v3113 = vpack.c.b16 %v2793, %v2785
    %v3114 = vpack.c.b16 %v2794, %v2786
    %v3115 = vpack.c.b16 %v2803, %v2795
    %v3116 = vpack.c.b16 %v2804, %v2796
    %v3117 = vpack.c.b16 %v2805, %v2797
    %v3118 = vpack.c.b16 %v2806, %v2798
    %v3119 = vpack.c.b16 %v2807, %v2799
    %v3120 = vpack.c.b16 %v2808, %v2800
    %v3121 = vpack.c.b16 %v2809, %v2801
    %v3122 = vpack.c.b16 %v2810, %v2802
    %v3123 = vpack.c.b16 %v2819, %v2811
    %v3124 = vpack.c.b16 %v2820, %v2812
    %v3125 = vpack.c.b16 %v2821, %v2813
    %v3126 = vpack.c.b16 %v2822, %v2814
    %v3127 = vpack.c.b16 %v2823, %v2815
    %v3128 = vpack.c.b16 %v2824, %v2816
    %v3129 = vpack.c.b16 %v2825, %v2817
    %v3130 = vpack.c.b16 %v2826, %v2818
    %v3131 = vpack.c.b16 %v2835, %v2827
    %v3132 = vpack.c.b16 %v2836, %v2828
    %v3133 = vpack.c.b16 %v2837, %v2829
    %v3134 = vpack.c.b16 %v2838, %v2830
    %v3135 = vpack.c.b16 %v2839, %v2831
    %v3136 = vpack.c.b16 %v2840, %v2832
    %v3137 = vpack.c.b16 %v2841, %v2833
    %v3138 = vpack.c.b16 %v2842, %v2834
    %v3139 = vpack.c.b16 %v2851, %v2843
    %v3140 = vpack.c.b16 %v2852, %v2844
    %v3141 = vpack.c.b16 %v2853, %v2845
    %v3142 = vpack.c.b16 %v2854, %v2846
    %v3143 = vpack.c.b16 %v2855, %v2847
    %v3144 = vpack.c.b16 %v2856, %v2848
    %v3145 = vpack.c.b16 %v2857, %v2849
    %v3146 = vpack.c.b16 %v2858, %v2850
    %v3147 = vpack.c.b16 %v2867, %v2859
    %v3148 = vpack.c.b16 %v2868, %v2860
    %v3149 = vpack.c.b16 %v2869, %v2861
    %v3150 = vpack.c.b16 %v2870, %v2862
    %v3151 = vpack.c.b16 %v2871, %v2863
    %v3152 = vpack.c.b16 %v2872, %v2864
    %v3153 = vpack.c.b16 %v2873, %v2865
    %v3154 = vpack.c.b16 %v2874, %v2866
    %v3155 = vpack.c.b16 %v2883, %v2875
    %v3156 = vpack.c.b16 %v2884, %v2876
    %v3157 = vpack.c.b16 %v2885, %v2877
    %v3158 = vpack.c.b16 %v2886, %v2878
    %v3159 = vpack.c.b16 %v2887, %v2879
    %v3160 = vpack.c.b16 %v2888, %v2880
    %v3161 = vpack.c.b16 %v2889, %v2881
    %v3162 = vpack.c.b16 %v2890, %v2882
    %v3163 = vpack.c.b16 %v2899, %v2891
    %v3164 = vpack.c.b16 %v2900, %v2892
    %v3165 = vpack.c.b16 %v2901, %v2893
    %v3166 = vpack.c.b16 %v2902, %v2894
    %v3167 = vpack.c.b16 %v2903, %v2895
    %v3168 = vpack.c.b16 %v2904, %v2896
    %v3169 = vpack.c.b16 %v2905, %v2897
    %v3170 = vpack.c.b16 %v2906, %v2898
    %v3171 = vpack.c.b16 %v2915, %v2907
    %v3172 = vpack.c.b16 %v2916, %v2908
    %v3173 = vpack.c.b16 %v2917, %v2909
    %v3174 = vpack.c.b16 %v2918, %v2910
    %v3175 = vpack.c.b16 %v2919, %v2911
    %v3176 = vpack.c.b16 %v2920, %v2912
    %v3177 = vpack.c.b16 %v2921, %v2913
    %v3178 = vpack.c.b16 %v2922, %v2914
    %3435 = vmatprep.subr.bf16.mxu0 %v2924
    %3436 = vmatpush1.bf16.msra.mxu0 %v2923
    %3437 = vmatprep.subr.bf16.mxu0 %v2932
    %3438 = vmatpush1.bf16.msra.mxu0 %v2931
    %3439 = vmatprep.subr.bf16.mxu0 %v2940
    %3440 = vmatpush1.bf16.msra.mxu0 %v2939
    %3441 = vmatprep.subr.bf16.mxu0 %v2948
    %3442 = vmatpush1.bf16.msra.mxu0 %v2947
    %3443 = vmatprep.subr.bf16.mxu0 %v2956
    %3444 = vmatpush1.bf16.msra.mxu0 %v2955
    %3445 = vmatprep.subr.bf16.mxu0 %v2964
    %3446 = vmatpush1.bf16.msra.mxu0 %v2963
    %3447 = vmatprep.subr.bf16.mxu0 %v2972
    %3448 = vmatpush1.bf16.msra.mxu0 %v2971
    %3449 = vmatprep.subr.bf16.mxu0 %v2980
    %3450 = vmatpush1.bf16.msra.mxu0 %v2979
    %3451 = vmatprep.subr.bf16.mxu0 %v2988
    %3452 = vmatpush1.bf16.msra.mxu0 %v2987
    %3453 = vmatprep.subr.bf16.mxu0 %v2996
    %3454 = vmatpush1.bf16.msra.mxu0 %v2995
    %3455 = vmatprep.subr.bf16.mxu0 %v3004
    %3456 = vmatpush1.bf16.msra.mxu0 %v3003
    %3457 = vmatprep.subr.bf16.mxu0 %v3012
    %3458 = vmatpush1.bf16.msra.mxu0 %v3011
    %3459 = vmatprep.subr.bf16.mxu0 %v3020
    %3460 = vmatpush1.bf16.msra.mxu0 %v3019
    %3461 = vmatprep.subr.bf16.mxu0 %v3028
    %3462 = vmatpush1.bf16.msra.mxu0 %v3027
    %3463 = vmatprep.subr.bf16.mxu0 %v3036
    %3464 = vmatpush1.bf16.msra.mxu0 %v3035
    %3465 = vmatprep.subr.bf16.mxu0 %v3044
    %3466 = vmatpush1.bf16.msra.mxu0 %v3043
    %3467 = vmatprep.mubr.bf16.mxu0 %v1854
    %3468 = vmatmul.mubr.bf16.gmra.mrb[0].mxu0 %v1853
    %v3469 = vpop.f32.mrb[0].mxu0
    %v3470 = vadd.f32 %v2118, %v3469
    %v3471 = vpop.f32.mrb[0].mxu0
    %v3472 = vadd.f32 %v2122, %v3471
    %v3473 = vpop.f32.mrb[0].mxu0
    %v3474 = vadd.f32 %v2118, %v3473
    %v3475 = vpop.f32.mrb[0].mxu0
    %v3476 = vadd.f32 %v2122, %v3475
    %3477 = vdwg.mxu0
    %3478 = vmatprep.subr.bf16.mxu0 %v3052
    %3479 = vmatpush1.bf16.msra.mxu0 %v3051
    %3480 = vmatprep.subr.bf16.mxu0 %v3060
    %3481 = vmatpush1.bf16.msra.mxu0 %v3059
    %3482 = vmatprep.subr.bf16.mxu0 %v3068
    %3483 = vmatpush1.bf16.msra.mxu0 %v3067
    %3484 = vmatprep.subr.bf16.mxu0 %v3076
    %3485 = vmatpush1.bf16.msra.mxu0 %v3075
    %3486 = vmatprep.subr.bf16.mxu0 %v3084
    %3487 = vmatpush1.bf16.msra.mxu0 %v3083
    %3488 = vmatprep.subr.bf16.mxu0 %v3092
    %3489 = vmatpush1.bf16.msra.mxu0 %v3091
    %3490 = vmatprep.subr.bf16.mxu0 %v3100
    %3491 = vmatpush1.bf16.msra.mxu0 %v3099
    %3492 = vmatprep.subr.bf16.mxu0 %v3108
    %3493 = vmatpush1.bf16.msra.mxu0 %v3107
    %3494 = vmatprep.subr.bf16.mxu0 %v3116
    %3495 = vmatpush1.bf16.msra.mxu0 %v3115
    %3496 = vmatprep.subr.bf16.mxu0 %v3124
    %3497 = vmatpush1.bf16.msra.mxu0 %v3123
    %3498 = vmatprep.subr.bf16.mxu0 %v3132
    %3499 = vmatpush1.bf16.msra.mxu0 %v3131
    %3500 = vmatprep.subr.bf16.mxu0 %v3140
    %3501 = vmatpush1.bf16.msra.mxu0 %v3139
    %3502 = vmatprep.subr.bf16.mxu0 %v3148
    %3503 = vmatpush1.bf16.msra.mxu0 %v3147
    %3504 = vmatprep.subr.bf16.mxu0 %v3156
    %3505 = vmatpush1.bf16.msra.mxu0 %v3155
    %3506 = vmatprep.subr.bf16.mxu0 %v3164
    %3507 = vmatpush1.bf16.msra.mxu0 %v3163
    %3508 = vmatprep.subr.bf16.mxu0 %v3172
    %3509 = vmatpush1.bf16.msra.mxu0 %v3171
    %3510 = vmatprep.mubr.bf16.mxu0 %v1856
    %3511 = vmatmul.mubr.bf16.gmra.mrb[0].mxu0 %v1855
    %v3512 = vpop.f32.mrb[0].mxu0
    %v3513 = vadd.f32 %v3470, %v3512
    %v3514 = vpop.f32.mrb[0].mxu0
    %v3515 = vadd.f32 %v3472, %v3514
    %v3516 = vpop.f32.mrb[0].mxu0
    %v3517 = vadd.f32 %v3474, %v3516
    %v3518 = vpop.f32.mrb[0].mxu0
    %v3519 = vadd.f32 %v3476, %v3518
    %3520 = vdwg.mxu0
    %3521 = vmatprep.subr.bf16.mxu0 %v2926
    %3522 = vmatpush1.bf16.msra.mxu0 %v2925
    %3523 = vmatprep.subr.bf16.mxu0 %v2934
    %3524 = vmatpush1.bf16.msra.mxu0 %v2933
    %3525 = vmatprep.subr.bf16.mxu0 %v2942
    %3526 = vmatpush1.bf16.msra.mxu0 %v2941
    %3527 = vmatprep.subr.bf16.mxu0 %v2950
    %3528 = vmatpush1.bf16.msra.mxu0 %v2949
    %3529 = vmatprep.subr.bf16.mxu0 %v2958
    %3530 = vmatpush1.bf16.msra.mxu0 %v2957
    %3531 = vmatprep.subr.bf16.mxu0 %v2966
    %3532 = vmatpush1.bf16.msra.mxu0 %v2965
    %3533 = vmatprep.subr.bf16.mxu0 %v2974
    %3534 = vmatpush1.bf16.msra.mxu0 %v2973
    %3535 = vmatprep.subr.bf16.mxu0 %v2982
    %3536 = vmatpush1.bf16.msra.mxu0 %v2981
    %3537 = vmatprep.subr.bf16.mxu0 %v2990
    %3538 = vmatpush1.bf16.msra.mxu0 %v2989
    %3539 = vmatprep.subr.bf16.mxu0 %v2998
    %3540 = vmatpush1.bf16.msra.mxu0 %v2997
    %3541 = vmatprep.subr.bf16.mxu0 %v3006
    %3542 = vmatpush1.bf16.msra.mxu0 %v3005
    %3543 = vmatprep.subr.bf16.mxu0 %v3014
    %3544 = vmatpush1.bf16.msra.mxu0 %v3013
    %3545 = vmatprep.subr.bf16.mxu0 %v3022
    %3546 = vmatpush1.bf16.msra.mxu0 %v3021
    %3547 = vmatprep.subr.bf16.mxu0 %v3030
    %3548 = vmatpush1.bf16.msra.mxu0 %v3029
    %3549 = vmatprep.subr.bf16.mxu0 %v3038
    %3550 = vmatpush1.bf16.msra.mxu0 %v3037
    %3551 = vmatprep.subr.bf16.mxu0 %v3046
    %3552 = vmatpush1.bf16.msra.mxu0 %v3045
    %3553 = vmatprep.mubr.bf16.mxu0 %v1854
    %3554 = vmatmul.mubr.bf16.gmra.mrb[0].mxu0 %v1853
    %v3555 = vpop.f32.mrb[0].mxu0
    %v3556 = vadd.f32 %v2126, %v3555
    %v3557 = vpop.f32.mrb[0].mxu0
    %v3558 = vadd.f32 %v2130, %v3557
    %v3559 = vpop.f32.mrb[0].mxu0
    %v3560 = vadd.f32 %v2126, %v3559
    %v3561 = vpop.f32.mrb[0].mxu0
    %v3562 = vadd.f32 %v2130, %v3561
    %3563 = vdwg.mxu0
    %3564 = vmatprep.subr.bf16.mxu0 %v3054
    %3565 = vmatpush1.bf16.msra.mxu0 %v3053
    %3566 = vmatprep.subr.bf16.mxu0 %v3062
    %3567 = vmatpush1.bf16.msra.mxu0 %v3061
    %3568 = vmatprep.subr.bf16.mxu0 %v3070
    %3569 = vmatpush1.bf16.msra.mxu0 %v3069
    %3570 = vmatprep.subr.bf16.mxu0 %v3078
    %3571 = vmatpush1.bf16.msra.mxu0 %v3077
    %3572 = vmatprep.subr.bf16.mxu0 %v3086
    %3573 = vmatpush1.bf16.msra.mxu0 %v3085
    %3574 = vmatprep.subr.bf16.mxu0 %v3094
    %3575 = vmatpush1.bf16.msra.mxu0 %v3093
    %3576 = vmatprep.subr.bf16.mxu0 %v3102
    %3577 = vmatpush1.bf16.msra.mxu0 %v3101
    %3578 = vmatprep.subr.bf16.mxu0 %v3110
    %3579 = vmatpush1.bf16.msra.mxu0 %v3109
    %3580 = vmatprep.subr.bf16.mxu0 %v3118
    %3581 = vmatpush1.bf16.msra.mxu0 %v3117
    %3582 = vmatprep.subr.bf16.mxu0 %v3126
    %3583 = vmatpush1.bf16.msra.mxu0 %v3125
    %3584 = vmatprep.subr.bf16.mxu0 %v3134
    %3585 = vmatpush1.bf16.msra.mxu0 %v3133
    %3586 = vmatprep.subr.bf16.mxu0 %v3142
    %3587 = vmatpush1.bf16.msra.mxu0 %v3141
    %3588 = vmatprep.subr.bf16.mxu0 %v3150
    %3589 = vmatpush1.bf16.msra.mxu0 %v3149
    %3590 = vmatprep.subr.bf16.mxu0 %v3158
    %3591 = vmatpush1.bf16.msra.mxu0 %v3157
    %3592 = vmatprep.subr.bf16.mxu0 %v3166
    %3593 = vmatpush1.bf16.msra.mxu0 %v3165
    %3594 = vmatprep.subr.bf16.mxu0 %v3174
    %3595 = vmatpush1.bf16.msra.mxu0 %v3173
    %3596 = vmatprep.mubr.bf16.mxu0 %v1856
    %3597 = vmatmul.mubr.bf16.gmra.mrb[0].mxu0 %v1855
    %v3598 = vpop.f32.mrb[0].mxu0
    %v3599 = vadd.f32 %v3556, %v3598
    %v3600 = vpop.f32.mrb[0].mxu0
    %v3601 = vadd.f32 %v3558, %v3600
    %v3602 = vpop.f32.mrb[0].mxu0
    %v3603 = vadd.f32 %v3560, %v3602
    %v3604 = vpop.f32.mrb[0].mxu0
    %v3605 = vadd.f32 %v3562, %v3604
    %3606 = vdwg.mxu0
    %3607 = vmatprep.subr.bf16.mxu0 %v2928
    %3608 = vmatpush1.bf16.msra.mxu0 %v2927
    %3609 = vmatprep.subr.bf16.mxu0 %v2936
    %3610 = vmatpush1.bf16.msra.mxu0 %v2935
    %3611 = vmatprep.subr.bf16.mxu0 %v2944
    %3612 = vmatpush1.bf16.msra.mxu0 %v2943
    %3613 = vmatprep.subr.bf16.mxu0 %v2952
    %3614 = vmatpush1.bf16.msra.mxu0 %v2951
    %3615 = vmatprep.subr.bf16.mxu0 %v2960
    %3616 = vmatpush1.bf16.msra.mxu0 %v2959
    %3617 = vmatprep.subr.bf16.mxu0 %v2968
    %3618 = vmatpush1.bf16.msra.mxu0 %v2967
    %3619 = vmatprep.subr.bf16.mxu0 %v2976
    %3620 = vmatpush1.bf16.msra.mxu0 %v2975
    %3621 = vmatprep.subr.bf16.mxu0 %v2984
    %3622 = vmatpush1.bf16.msra.mxu0 %v2983
    %3623 = vmatprep.subr.bf16.mxu0 %v2992
    %3624 = vmatpush1.bf16.msra.mxu0 %v2991
    %3625 = vmatprep.subr.bf16.mxu0 %v3000
    %3626 = vmatpush1.bf16.msra.mxu0 %v2999
    %3627 = vmatprep.subr.bf16.mxu0 %v3008
    %3628 = vmatpush1.bf16.msra.mxu0 %v3007
    %3629 = vmatprep.subr.bf16.mxu0 %v3016
    %3630 = vmatpush1.bf16.msra.mxu0 %v3015
    %3631 = vmatprep.subr.bf16.mxu0 %v3024
    %3632 = vmatpush1.bf16.msra.mxu0 %v3023
    %3633 = vmatprep.subr.bf16.mxu0 %v3032
    %3634 = vmatpush1.bf16.msra.mxu0 %v3031
    %3635 = vmatprep.subr.bf16.mxu0 %v3040
    %3636 = vmatpush1.bf16.msra.mxu0 %v3039
    %3637 = vmatprep.subr.bf16.mxu0 %v3048
    %3638 = vmatpush1.bf16.msra.mxu0 %v3047
    %3639 = vmatprep.mubr.bf16.mxu0 %v1854
    %3640 = vmatmul.mubr.bf16.gmra.mrb[0].mxu0 %v1853
    %v3641 = vpop.f32.mrb[0].mxu0
    %v3642 = vadd.f32 %v2134, %v3641
    %v3643 = vpop.f32.mrb[0].mxu0
    %v3644 = vadd.f32 %v2138, %v3643
    %v3645 = vpop.f32.mrb[0].mxu0
    %v3646 = vadd.f32 %v2134, %v3645
    %v3647 = vpop.f32.mrb[0].mxu0
    %v3648 = vadd.f32 %v2138, %v3647
    %3649 = vdwg.mxu0
    %3650 = vmatprep.subr.bf16.mxu0 %v3056
    %3651 = vmatpush1.bf16.msra.mxu0 %v3055
    %3652 = vmatprep.subr.bf16.mxu0 %v3064
    %3653 = vmatpush1.bf16.msra.mxu0 %v3063
    %3654 = vmatprep.subr.bf16.mxu0 %v3072
    %3655 = vmatpush1.bf16.msra.mxu0 %v3071
    %3656 = vmatprep.subr.bf16.mxu0 %v3080
    %3657 = vmatpush1.bf16.msra.mxu0 %v3079
    %3658 = vmatprep.subr.bf16.mxu0 %v3088
    %3659 = vmatpush1.bf16.msra.mxu0 %v3087
    %3660 = vmatprep.subr.bf16.mxu0 %v3096
    %3661 = vmatpush1.bf16.msra.mxu0 %v3095
    %3662 = vmatprep.subr.bf16.mxu0 %v3104
    %3663 = vmatpush1.bf16.msra.mxu0 %v3103
    %3664 = vmatprep.subr.bf16.mxu0 %v3112
    %3665 = vmatpush1.bf16.msra.mxu0 %v3111
    %3666 = vmatprep.subr.bf16.mxu0 %v3120
    %3667 = vmatpush1.bf16.msra.mxu0 %v3119
    %3668 = vmatprep.subr.bf16.mxu0 %v3128
    %3669 = vmatpush1.bf16.msra.mxu0 %v3127
    %3670 = vmatprep.subr.bf16.mxu0 %v3136
    %3671 = vmatpush1.bf16.msra.mxu0 %v3135
    %3672 = vmatprep.subr.bf16.mxu0 %v3144
    %3673 = vmatpush1.bf16.msra.mxu0 %v3143
    %3674 = vmatprep.subr.bf16.mxu0 %v3152
    %3675 = vmatpush1.bf16.msra.mxu0 %v3151
    %3676 = vmatprep.subr.bf16.mxu0 %v3160
    %3677 = vmatpush1.bf16.msra.mxu0 %v3159
    %3678 = vmatprep.subr.bf16.mxu0 %v3168
    %3679 = vmatpush1.bf16.msra.mxu0 %v3167
    %3680 = vmatprep.subr.bf16.mxu0 %v3176
    %3681 = vmatpush1.bf16.msra.mxu0 %v3175
    %3682 = vmatprep.mubr.bf16.mxu0 %v1856
    %3683 = vmatmul.mubr.bf16.gmra.mrb[0].mxu0 %v1855
    %v3684 = vpop.f32.mrb[0].mxu0
    %v3685 = vadd.f32 %v3642, %v3684
    %v3686 = vpop.f32.mrb[0].mxu0
    %v3687 = vadd.f32 %v3644, %v3686
    %v3688 = vpop.f32.mrb[0].mxu0
    %v3689 = vadd.f32 %v3646, %v3688
    %v3690 = vpop.f32.mrb[0].mxu0
    %v3691 = vadd.f32 %v3648, %v3690
    %3692 = vdwg.mxu0
    %3693 = vmatprep.subr.bf16.mxu0 %v2930
    %3694 = vmatpush1.bf16.msra.mxu0 %v2929
    %3695 = vmatprep.subr.bf16.mxu0 %v2938
    %3696 = vmatpush1.bf16.msra.mxu0 %v2937
    %3697 = vmatprep.subr.bf16.mxu0 %v2946
    %3698 = vmatpush1.bf16.msra.mxu0 %v2945
    %3699 = vmatprep.subr.bf16.mxu0 %v2954
    %3700 = vmatpush1.bf16.msra.mxu0 %v2953
    %3701 = vmatprep.subr.bf16.mxu0 %v2962
    %3702 = vmatpush1.bf16.msra.mxu0 %v2961
    %3703 = vmatprep.subr.bf16.mxu0 %v2970
    %3704 = vmatpush1.bf16.msra.mxu0 %v2969
    %3705 = vmatprep.subr.bf16.mxu0 %v2978
    %3706 = vmatpush1.bf16.msra.mxu0 %v2977
    %3707 = vmatprep.subr.bf16.mxu0 %v2986
    %3708 = vmatpush1.bf16.msra.mxu0 %v2985
    %3709 = vmatprep.subr.bf16.mxu0 %v2994
    %3710 = vmatpush1.bf16.msra.mxu0 %v2993
    %3711 = vmatprep.subr.bf16.mxu0 %v3002
    %3712 = vmatpush1.bf16.msra.mxu0 %v3001
    %3713 = vmatprep.subr.bf16.mxu0 %v3010
    %3714 = vmatpush1.bf16.msra.mxu0 %v3009
    %3715 = vmatprep.subr.bf16.mxu0 %v3018
    %3716 = vmatpush1.bf16.msra.mxu0 %v3017
    %3717 = vmatprep.subr.bf16.mxu0 %v3026
    %3718 = vmatpush1.bf16.msra.mxu0 %v3025
    %3719 = vmatprep.subr.bf16.mxu0 %v3034
    %3720 = vmatpush1.bf16.msra.mxu0 %v3033
    %3721 = vmatprep.subr.bf16.mxu0 %v3042
    %3722 = vmatpush1.bf16.msra.mxu0 %v3041
    %3723 = vmatprep.subr.bf16.mxu0 %v3050
    %3724 = vmatpush1.bf16.msra.mxu0 %v3049
    %3725 = vmatprep.mubr.bf16.mxu0 %v1854
    %3726 = vmatmul.mubr.bf16.gmra.mrb[0].mxu0 %v1853
    %v3727 = vpop.f32.mrb[0].mxu0
    %v3728 = vadd.f32 %v2142, %v3727
    %v3729 = vpop.f32.mrb[0].mxu0
    %v3730 = vadd.f32 %v2146, %v3729
    %v3731 = vpop.f32.mrb[0].mxu0
    %v3732 = vadd.f32 %v2142, %v3731
    %v3733 = vpop.f32.mrb[0].mxu0
    %v3734 = vadd.f32 %v2146, %v3733
    %3735 = vdwg.mxu0
    %3736 = vmatprep.subr.bf16.mxu0 %v3058
    %3737 = vmatpush1.bf16.msra.mxu0 %v3057
    %3738 = vmatprep.subr.bf16.mxu0 %v3066
    %3739 = vmatpush1.bf16.msra.mxu0 %v3065
    %3740 = vmatprep.subr.bf16.mxu0 %v3074
    %3741 = vmatpush1.bf16.msra.mxu0 %v3073
    %3742 = vmatprep.subr.bf16.mxu0 %v3082
    %3743 = vmatpush1.bf16.msra.mxu0 %v3081
    %3744 = vmatprep.subr.bf16.mxu0 %v3090
    %3745 = vmatpush1.bf16.msra.mxu0 %v3089
    %3746 = vmatprep.subr.bf16.mxu0 %v3098
    %3747 = vmatpush1.bf16.msra.mxu0 %v3097
    %3748 = vmatprep.subr.bf16.mxu0 %v3106
    %3749 = vmatpush1.bf16.msra.mxu0 %v3105
    %3750 = vmatprep.subr.bf16.mxu0 %v3114
    %3751 = vmatpush1.bf16.msra.mxu0 %v3113
    %3752 = vmatprep.subr.bf16.mxu0 %v3122
    %3753 = vmatpush1.bf16.msra.mxu0 %v3121
    %3754 = vmatprep.subr.bf16.mxu0 %v3130
    %3755 = vmatpush1.bf16.msra.mxu0 %v3129
    %3756 = vmatprep.subr.bf16.mxu0 %v3138
    %3757 = vmatpush1.bf16.msra.mxu0 %v3137
    %3758 = vmatprep.subr.bf16.mxu0 %v3146
    %3759 = vmatpush1.bf16.msra.mxu0 %v3145
    %3760 = vmatprep.subr.bf16.mxu0 %v3154
    %3761 = vmatpush1.bf16.msra.mxu0 %v3153
    %3762 = vmatprep.subr.bf16.mxu0 %v3162
    %3763 = vmatpush1.bf16.msra.mxu0 %v3161
    %3764 = vmatprep.subr.bf16.mxu0 %v3170
    %3765 = vmatpush1.bf16.msra.mxu0 %v3169
    %3766 = vmatprep.subr.bf16.mxu0 %v3178
    %3767 = vmatpush1.bf16.msra.mxu0 %v3177
    %3768 = vmatprep.mubr.bf16.mxu0 %v1856
    %3769 = vmatmul.mubr.bf16.gmra.mrb[0].mxu0 %v1855
    %v3770 = vpop.f32.mrb[0].mxu0
    %v3771 = vadd.f32 %v3728, %v3770
    %v3772 = vpop.f32.mrb[0].mxu0
    %v3773 = vadd.f32 %v3730, %v3772
    %v3774 = vpop.f32.mrb[0].mxu0
    %v3775 = vadd.f32 %v3732, %v3774
    %v3776 = vpop.f32.mrb[0].mxu0
    %v3777 = vadd.f32 %v3734, %v3776
    %3778 = vdwg.mxu0
    %vm3779 = vcmp.gt.f32.partialorder %v3513, 0.0
    %vm3780 = vcmp.gt.f32.partialorder %v3515, 0.0
    %vm3781 = vcmp.gt.f32.partialorder %v3599, 0.0
    %vm3782 = vcmp.gt.f32.partialorder %v3601, 0.0
    %vm3783 = vcmp.gt.f32.partialorder %v3685, 0.0
    %vm3784 = vcmp.gt.f32.partialorder %v3687, 0.0
    %vm3785 = vcmp.gt.f32.partialorder %v3771, 0.0
    %vm3786 = vcmp.gt.f32.partialorder %v3773, 0.0
    %vm3787 = vcmp.gt.f32.partialorder %v3517, 0.0
    %vm3788 = vcmp.gt.f32.partialorder %v3519, 0.0
    %vm3789 = vcmp.gt.f32.partialorder %v3603, 0.0
    %vm3790 = vcmp.gt.f32.partialorder %v3605, 0.0
    %vm3791 = vcmp.gt.f32.partialorder %v3689, 0.0
    %vm3792 = vcmp.gt.f32.partialorder %v3691, 0.0
    %vm3793 = vcmp.gt.f32.partialorder %v3775, 0.0
    %vm3794 = vcmp.gt.f32.partialorder %v3777, 0.0
    %v3795 = vmul.f32 %v3513, 0.2
    %v3796 = vmul.f32 %v3515, 0.2
    %v3797 = vmul.f32 %v3599, 0.2
    %v3798 = vmul.f32 %v3601, 0.2
    %v3799 = vmul.f32 %v3685, 0.2
    %v3800 = vmul.f32 %v3687, 0.2
    %v3801 = vmul.f32 %v3771, 0.2
    %v3802 = vmul.f32 %v3773, 0.2
    %v3803 = vmul.f32 %v3517, 0.2
    %v3804 = vmul.f32 %v3519, 0.2
    %v3805 = vmul.f32 %v3603, 0.2
    %v3806 = vmul.f32 %v3605, 0.2
    %v3807 = vmul.f32 %v3689, 0.2
    %v3808 = vmul.f32 %v3691, 0.2
    %v3809 = vmul.f32 %v3775, 0.2
    %v3810 = vmul.f32 %v3777, 0.2
    %v3811 = vsel %vm3779, %v3513, %v3795
    %v3812 = vsel %vm3780, %v3515, %v3796
    %v3813 = vsel %vm3781, %v3599, %v3797
    %v3814 = vsel %vm3782, %v3601, %v3798
    %v3815 = vsel %vm3783, %v3685, %v3799
    %v3816 = vsel %vm3784, %v3687, %v3800
    %v3817 = vsel %vm3785, %v3771, %v3801
    %v3818 = vsel %vm3786, %v3773, %v3802
    %v3819 = vsel %vm3787, %v3517, %v3803
    %v3820 = vsel %vm3788, %v3519, %v3804
    %v3821 = vsel %vm3789, %v3603, %v3805
    %v3822 = vsel %vm3790, %v3605, %v3806
    %v3823 = vsel %vm3791, %v3689, %v3807
    %v3824 = vsel %vm3792, %v3691, %v3808
    %v3825 = vsel %vm3793, %v3775, %v3809
    %v3826 = vsel %vm3794, %v3777, %v3810
    %v3827 = vpack.c.bf16 %v3819, %v3811
    %v3828 = vpack.c.bf16 %v3820, %v3812
    %v3829 = vpack.c.bf16 %v3821, %v3813
    %v3830 = vpack.c.bf16 %v3822, %v3814
    %v3831 = vpack.c.bf16 %v3823, %v3815
    %v3832 = vpack.c.bf16 %v3824, %v3816
    %v3833 = vpack.c.bf16 %v3825, %v3817
    %v3834 = vpack.c.bf16 %v3826, %v3818
    %v3835 = vld [vmem:[#allocation17] sm:$0xff]
    %v3836 = vld [vmem:[#allocation17 + $0x8] sm:$0xff]
    %v3837 = vld [vmem:[#allocation17 + $0x10] sm:$0xff]
    %v3838 = vld [vmem:[#allocation17 + $0x18] sm:$0xff]
    %v3839 = vld [vmem:[#allocation17 + $0x20] sm:$0xff]
    %v3840 = vld [vmem:[#allocation17 + $0x28] sm:$0xff]
    %v3841 = vld [vmem:[#allocation17 + $0x30] sm:$0xff]
    %v3842 = vld [vmem:[#allocation17 + $0x38] sm:$0xff]
    %v3843 = vld [vmem:[#allocation17 + $0x40] sm:$0xff]
    %v3844 = vld [vmem:[#allocation17 + $0x48] sm:$0xff]
    %v3845 = vld [vmem:[#allocation17 + $0x50] sm:$0xff]
    %v3846 = vld [vmem:[#allocation17 + $0x58] sm:$0xff]
    %v3847 = vld [vmem:[#allocation17 + $0x60] sm:$0xff]
    %v3848 = vld [vmem:[#allocation17 + $0x68] sm:$0xff]
    %v3849 = vld [vmem:[#allocation17 + $0x70] sm:$0xff]
    %v3850 = vld [vmem:[#allocation17 + $0x78] sm:$0xff]
    %v3851 = vld [vmem:[#allocation17 + $0x80] sm:$0xff]
    %v3852 = vld [vmem:[#allocation17 + $0x88] sm:$0xff]
    %v3853 = vld [vmem:[#allocation17 + $0x90] sm:$0xff]
    %v3854 = vld [vmem:[#allocation17 + $0x98] sm:$0xff]
    %v3855 = vld [vmem:[#allocation17 + $0xa0] sm:$0xff]
    %v3856 = vld [vmem:[#allocation17 + $0xa8] sm:$0xff]
    %v3857 = vld [vmem:[#allocation17 + $0xb0] sm:$0xff]
    %v3858 = vld [vmem:[#allocation17 + $0xb8] sm:$0xff]
    %v3859 = vld [vmem:[#allocation17 + $0xc0] sm:$0xff]
    %v3860 = vld [vmem:[#allocation17 + $0xc8] sm:$0xff]
    %v3861 = vld [vmem:[#allocation17 + $0xd0] sm:$0xff]
    %v3862 = vld [vmem:[#allocation17 + $0xd8] sm:$0xff]
    %v3863 = vld [vmem:[#allocation17 + $0xe0] sm:$0xff]
    %v3864 = vld [vmem:[#allocation17 + $0xe8] sm:$0xff]
    %v3865 = vld [vmem:[#allocation17 + $0xf0] sm:$0xff]
    %v3866 = vld [vmem:[#allocation17 + $0xf8] sm:$0xff]
    %v3867 = vld [vmem:[#allocation17 + $0x100] sm:$0xff]
    %v3868 = vld [vmem:[#allocation17 + $0x108] sm:$0xff]
    %v3869 = vld [vmem:[#allocation17 + $0x110] sm:$0xff]
    %v3870 = vld [vmem:[#allocation17 + $0x118] sm:$0xff]
    %v3871 = vld [vmem:[#allocation17 + $0x120] sm:$0xff]
    %v3872 = vld [vmem:[#allocation17 + $0x128] sm:$0xff]
    %v3873 = vld [vmem:[#allocation17 + $0x130] sm:$0xff]
    %v3874 = vld [vmem:[#allocation17 + $0x138] sm:$0xff]
    %v3875 = vld [vmem:[#allocation17 + $0x140] sm:$0xff]
    %v3876 = vld [vmem:[#allocation17 + $0x148] sm:$0xff]
    %v3877 = vld [vmem:[#allocation17 + $0x150] sm:$0xff]
    %v3878 = vld [vmem:[#allocation17 + $0x158] sm:$0xff]
    %v3879 = vld [vmem:[#allocation17 + $0x160] sm:$0xff]
    %v3880 = vld [vmem:[#allocation17 + $0x168] sm:$0xff]
    %v3881 = vld [vmem:[#allocation17 + $0x170] sm:$0xff]
    %v3882 = vld [vmem:[#allocation17 + $0x178] sm:$0xff]
    %v3883 = vld [vmem:[#allocation17 + $0x180] sm:$0xff]
    %v3884 = vld [vmem:[#allocation17 + $0x188] sm:$0xff]
    %v3885 = vld [vmem:[#allocation17 + $0x190] sm:$0xff]
    %v3886 = vld [vmem:[#allocation17 + $0x198] sm:$0xff]
    %v3887 = vld [vmem:[#allocation17 + $0x1a0] sm:$0xff]
    %v3888 = vld [vmem:[#allocation17 + $0x1a8] sm:$0xff]
    %v3889 = vld [vmem:[#allocation17 + $0x1b0] sm:$0xff]
    %v3890 = vld [vmem:[#allocation17 + $0x1b8] sm:$0xff]
    %v3891 = vld [vmem:[#allocation17 + $0x1c0] sm:$0xff]
    %v3892 = vld [vmem:[#allocation17 + $0x1c8] sm:$0xff]
    %v3893 = vld [vmem:[#allocation17 + $0x1d0] sm:$0xff]
    %v3894 = vld [vmem:[#allocation17 + $0x1d8] sm:$0xff]
    %v3895 = vld [vmem:[#allocation17 + $0x1e0] sm:$0xff]
    %v3896 = vld [vmem:[#allocation17 + $0x1e8] sm:$0xff]
    %v3897 = vld [vmem:[#allocation17 + $0x1f0] sm:$0xff]
    %v3898 = vld [vmem:[#allocation17 + $0x1f8] sm:$0xff]
    %v3899 = vld [vmem:[#allocation17 + $0x200] sm:$0xff]
    %v3900 = vld [vmem:[#allocation17 + $0x208] sm:$0xff]
    %v3901 = vld [vmem:[#allocation17 + $0x210] sm:$0xff]
    %v3902 = vld [vmem:[#allocation17 + $0x218] sm:$0xff]
    %v3903 = vld [vmem:[#allocation17 + $0x220] sm:$0xff]
    %v3904 = vld [vmem:[#allocation17 + $0x228] sm:$0xff]
    %v3905 = vld [vmem:[#allocation17 + $0x230] sm:$0xff]
    %v3906 = vld [vmem:[#allocation17 + $0x238] sm:$0xff]
    %v3907 = vld [vmem:[#allocation17 + $0x240] sm:$0xff]
    %v3908 = vld [vmem:[#allocation17 + $0x248] sm:$0xff]
    %v3909 = vld [vmem:[#allocation17 + $0x250] sm:$0xff]
    %v3910 = vld [vmem:[#allocation17 + $0x258] sm:$0xff]
    %v3911 = vld [vmem:[#allocation17 + $0x260] sm:$0xff]
    %v3912 = vld [vmem:[#allocation17 + $0x268] sm:$0xff]
    %v3913 = vld [vmem:[#allocation17 + $0x270] sm:$0xff]
    %v3914 = vld [vmem:[#allocation17 + $0x278] sm:$0xff]
    %v3915 = vld [vmem:[#allocation17 + $0x280] sm:$0xff]
    %v3916 = vld [vmem:[#allocation17 + $0x288] sm:$0xff]
    %v3917 = vld [vmem:[#allocation17 + $0x290] sm:$0xff]
    %v3918 = vld [vmem:[#allocation17 + $0x298] sm:$0xff]
    %v3919 = vld [vmem:[#allocation17 + $0x2a0] sm:$0xff]
    %v3920 = vld [vmem:[#allocation17 + $0x2a8] sm:$0xff]
    %v3921 = vld [vmem:[#allocation17 + $0x2b0] sm:$0xff]
    %v3922 = vld [vmem:[#allocation17 + $0x2b8] sm:$0xff]
    %v3923 = vld [vmem:[#allocation17 + $0x2c0] sm:$0xff]
    %v3924 = vld [vmem:[#allocation17 + $0x2c8] sm:$0xff]
    %v3925 = vld [vmem:[#allocation17 + $0x2d0] sm:$0xff]
    %v3926 = vld [vmem:[#allocation17 + $0x2d8] sm:$0xff]
    %v3927 = vld [vmem:[#allocation17 + $0x2e0] sm:$0xff]
    %v3928 = vld [vmem:[#allocation17 + $0x2e8] sm:$0xff]
    %v3929 = vld [vmem:[#allocation17 + $0x2f0] sm:$0xff]
    %v3930 = vld [vmem:[#allocation17 + $0x2f8] sm:$0xff]
    %v3931 = vld [vmem:[#allocation17 + $0x300] sm:$0xff]
    %v3932 = vld [vmem:[#allocation17 + $0x308] sm:$0xff]
    %v3933 = vld [vmem:[#allocation17 + $0x310] sm:$0xff]
    %v3934 = vld [vmem:[#allocation17 + $0x318] sm:$0xff]
    %v3935 = vld [vmem:[#allocation17 + $0x320] sm:$0xff]
    %v3936 = vld [vmem:[#allocation17 + $0x328] sm:$0xff]
    %v3937 = vld [vmem:[#allocation17 + $0x330] sm:$0xff]
    %v3938 = vld [vmem:[#allocation17 + $0x338] sm:$0xff]
    %v3939 = vld [vmem:[#allocation17 + $0x340] sm:$0xff]
    %v3940 = vld [vmem:[#allocation17 + $0x348] sm:$0xff]
    %v3941 = vld [vmem:[#allocation17 + $0x350] sm:$0xff]
    %v3942 = vld [vmem:[#allocation17 + $0x358] sm:$0xff]
    %v3943 = vld [vmem:[#allocation17 + $0x360] sm:$0xff]
    %v3944 = vld [vmem:[#allocation17 + $0x368] sm:$0xff]
    %v3945 = vld [vmem:[#allocation17 + $0x370] sm:$0xff]
    %v3946 = vld [vmem:[#allocation17 + $0x378] sm:$0xff]
    %v3947 = vld [vmem:[#allocation17 + $0x380] sm:$0xff]
    %v3948 = vld [vmem:[#allocation17 + $0x388] sm:$0xff]
    %v3949 = vld [vmem:[#allocation17 + $0x390] sm:$0xff]
    %v3950 = vld [vmem:[#allocation17 + $0x398] sm:$0xff]
    %v3951 = vld [vmem:[#allocation17 + $0x3a0] sm:$0xff]
    %v3952 = vld [vmem:[#allocation17 + $0x3a8] sm:$0xff]
    %v3953 = vld [vmem:[#allocation17 + $0x3b0] sm:$0xff]
    %v3954 = vld [vmem:[#allocation17 + $0x3b8] sm:$0xff]
    %v3955 = vld [vmem:[#allocation17 + $0x3c0] sm:$0xff]
    %v3956 = vld [vmem:[#allocation17 + $0x3c8] sm:$0xff]
    %v3957 = vld [vmem:[#allocation17 + $0x3d0] sm:$0xff]
    %v3958 = vld [vmem:[#allocation17 + $0x3d8] sm:$0xff]
    %v3959 = vld [vmem:[#allocation17 + $0x3e0] sm:$0xff]
    %v3960 = vld [vmem:[#allocation17 + $0x3e8] sm:$0xff]
    %v3961 = vld [vmem:[#allocation17 + $0x3f0] sm:$0xff]
    %v3962 = vld [vmem:[#allocation17 + $0x3f8] sm:$0xff]
    %v3963 = vld [vmem:[#allocation17 + $0x400] sm:$0xff]
    %v3964 = vld [vmem:[#allocation17 + $0x408] sm:$0xff]
    %v3965 = vld [vmem:[#allocation17 + $0x410] sm:$0xff]
    %v3966 = vld [vmem:[#allocation17 + $0x418] sm:$0xff]
    %v3967 = vld [vmem:[#allocation17 + $0x420] sm:$0xff]
    %v3968 = vld [vmem:[#allocation17 + $0x428] sm:$0xff]
    %v3969 = vld [vmem:[#allocation17 + $0x430] sm:$0xff]
    %v3970 = vld [vmem:[#allocation17 + $0x438] sm:$0xff]
    %v3971 = vld [vmem:[#allocation17 + $0x440] sm:$0xff]
    %v3972 = vld [vmem:[#allocation17 + $0x448] sm:$0xff]
    %v3973 = vld [vmem:[#allocation17 + $0x450] sm:$0xff]
    %v3974 = vld [vmem:[#allocation17 + $0x458] sm:$0xff]
    %v3975 = vld [vmem:[#allocation17 + $0x460] sm:$0xff]
    %v3976 = vld [vmem:[#allocation17 + $0x468] sm:$0xff]
    %v3977 = vld [vmem:[#allocation17 + $0x470] sm:$0xff]
    %v3978 = vld [vmem:[#allocation17 + $0x478] sm:$0xff]
    %v3979 = vld [vmem:[#allocation17 + $0x480] sm:$0xff]
    %v3980 = vld [vmem:[#allocation17 + $0x488] sm:$0xff]
    %v3981 = vld [vmem:[#allocation17 + $0x490] sm:$0xff]
    %v3982 = vld [vmem:[#allocation17 + $0x498] sm:$0xff]
    %v3983 = vld [vmem:[#allocation17 + $0x4a0] sm:$0xff]
    %v3984 = vld [vmem:[#allocation17 + $0x4a8] sm:$0xff]
    %v3985 = vld [vmem:[#allocation17 + $0x4b0] sm:$0xff]
    %v3986 = vld [vmem:[#allocation17 + $0x4b8] sm:$0xff]
    %v3987 = vld [vmem:[#allocation17 + $0x4c0] sm:$0xff]
    %v3988 = vld [vmem:[#allocation17 + $0x4c8] sm:$0xff]
    %v3989 = vld [vmem:[#allocation17 + $0x4d0] sm:$0xff]
    %v3990 = vld [vmem:[#allocation17 + $0x4d8] sm:$0xff]
    %v3991 = vld [vmem:[#allocation17 + $0x4e0] sm:$0xff]
    %v3992 = vld [vmem:[#allocation17 + $0x4e8] sm:$0xff]
    %v3993 = vld [vmem:[#allocation17 + $0x4f0] sm:$0xff]
    %v3994 = vld [vmem:[#allocation17 + $0x4f8] sm:$0xff]
    %v3995 = vld [vmem:[#allocation17 + $0x500] sm:$0xff]
    %v3996 = vld [vmem:[#allocation17 + $0x508] sm:$0xff]
    %v3997 = vld [vmem:[#allocation17 + $0x510] sm:$0xff]
    %v3998 = vld [vmem:[#allocation17 + $0x518] sm:$0xff]
    %v3999 = vld [vmem:[#allocation17 + $0x520] sm:$0xff]
    %v4000 = vld [vmem:[#allocation17 + $0x528] sm:$0xff]
    %v4001 = vld [vmem:[#allocation17 + $0x530] sm:$0xff]
    %v4002 = vld [vmem:[#allocation17 + $0x538] sm:$0xff]
    %v4003 = vld [vmem:[#allocation17 + $0x540] sm:$0xff]
    %v4004 = vld [vmem:[#allocation17 + $0x548] sm:$0xff]
    %v4005 = vld [vmem:[#allocation17 + $0x550] sm:$0xff]
    %v4006 = vld [vmem:[#allocation17 + $0x558] sm:$0xff]
    %v4007 = vld [vmem:[#allocation17 + $0x560] sm:$0xff]
    %v4008 = vld [vmem:[#allocation17 + $0x568] sm:$0xff]
    %v4009 = vld [vmem:[#allocation17 + $0x570] sm:$0xff]
    %v4010 = vld [vmem:[#allocation17 + $0x578] sm:$0xff]
    %v4011 = vld [vmem:[#allocation17 + $0x580] sm:$0xff]
    %v4012 = vld [vmem:[#allocation17 + $0x588] sm:$0xff]
    %v4013 = vld [vmem:[#allocation17 + $0x590] sm:$0xff]
    %v4014 = vld [vmem:[#allocation17 + $0x598] sm:$0xff]
    %v4015 = vld [vmem:[#allocation17 + $0x5a0] sm:$0xff]
    %v4016 = vld [vmem:[#allocation17 + $0x5a8] sm:$0xff]
    %v4017 = vld [vmem:[#allocation17 + $0x5b0] sm:$0xff]
    %v4018 = vld [vmem:[#allocation17 + $0x5b8] sm:$0xff]
    %v4019 = vld [vmem:[#allocation17 + $0x5c0] sm:$0xff]
    %v4020 = vld [vmem:[#allocation17 + $0x5c8] sm:$0xff]
    %v4021 = vld [vmem:[#allocation17 + $0x5d0] sm:$0xff]
    %v4022 = vld [vmem:[#allocation17 + $0x5d8] sm:$0xff]
    %v4023 = vld [vmem:[#allocation17 + $0x5e0] sm:$0xff]
    %v4024 = vld [vmem:[#allocation17 + $0x5e8] sm:$0xff]
    %v4025 = vld [vmem:[#allocation17 + $0x5f0] sm:$0xff]
    %v4026 = vld [vmem:[#allocation17 + $0x5f8] sm:$0xff]
    %v4027 = vld [vmem:[#allocation17 + $0x600] sm:$0xff]
    %v4028 = vld [vmem:[#allocation17 + $0x608] sm:$0xff]
    %v4029 = vld [vmem:[#allocation17 + $0x610] sm:$0xff]
    %v4030 = vld [vmem:[#allocation17 + $0x618] sm:$0xff]
    %v4031 = vld [vmem:[#allocation17 + $0x620] sm:$0xff]
    %v4032 = vld [vmem:[#allocation17 + $0x628] sm:$0xff]
    %v4033 = vld [vmem:[#allocation17 + $0x630] sm:$0xff]
    %v4034 = vld [vmem:[#allocation17 + $0x638] sm:$0xff]
    %v4035 = vld [vmem:[#allocation17 + $0x640] sm:$0xff]
    %v4036 = vld [vmem:[#allocation17 + $0x648] sm:$0xff]
    %v4037 = vld [vmem:[#allocation17 + $0x650] sm:$0xff]
    %v4038 = vld [vmem:[#allocation17 + $0x658] sm:$0xff]
    %v4039 = vld [vmem:[#allocation17 + $0x660] sm:$0xff]
    %v4040 = vld [vmem:[#allocation17 + $0x668] sm:$0xff]
    %v4041 = vld [vmem:[#allocation17 + $0x670] sm:$0xff]
    %v4042 = vld [vmem:[#allocation17 + $0x678] sm:$0xff]
    %v4043 = vld [vmem:[#allocation17 + $0x680] sm:$0xff]
    %v4044 = vld [vmem:[#allocation17 + $0x688] sm:$0xff]
    %v4045 = vld [vmem:[#allocation17 + $0x690] sm:$0xff]
    %v4046 = vld [vmem:[#allocation17 + $0x698] sm:$0xff]
    %v4047 = vld [vmem:[#allocation17 + $0x6a0] sm:$0xff]
    %v4048 = vld [vmem:[#allocation17 + $0x6a8] sm:$0xff]
    %v4049 = vld [vmem:[#allocation17 + $0x6b0] sm:$0xff]
    %v4050 = vld [vmem:[#allocation17 + $0x6b8] sm:$0xff]
    %v4051 = vld [vmem:[#allocation17 + $0x6c0] sm:$0xff]
    %v4052 = vld [vmem:[#allocation17 + $0x6c8] sm:$0xff]
    %v4053 = vld [vmem:[#allocation17 + $0x6d0] sm:$0xff]
    %v4054 = vld [vmem:[#allocation17 + $0x6d8] sm:$0xff]
    %v4055 = vld [vmem:[#allocation17 + $0x6e0] sm:$0xff]
    %v4056 = vld [vmem:[#allocation17 + $0x6e8] sm:$0xff]
    %v4057 = vld [vmem:[#allocation17 + $0x6f0] sm:$0xff]
    %v4058 = vld [vmem:[#allocation17 + $0x6f8] sm:$0xff]
    %v4059 = vld [vmem:[#allocation17 + $0x700] sm:$0xff]
    %v4060 = vld [vmem:[#allocation17 + $0x708] sm:$0xff]
    %v4061 = vld [vmem:[#allocation17 + $0x710] sm:$0xff]
    %v4062 = vld [vmem:[#allocation17 + $0x718] sm:$0xff]
    %v4063 = vld [vmem:[#allocation17 + $0x720] sm:$0xff]
    %v4064 = vld [vmem:[#allocation17 + $0x728] sm:$0xff]
    %v4065 = vld [vmem:[#allocation17 + $0x730] sm:$0xff]
    %v4066 = vld [vmem:[#allocation17 + $0x738] sm:$0xff]
    %v4067 = vld [vmem:[#allocation17 + $0x740] sm:$0xff]
    %v4068 = vld [vmem:[#allocation17 + $0x748] sm:$0xff]
    %v4069 = vld [vmem:[#allocation17 + $0x750] sm:$0xff]
    %v4070 = vld [vmem:[#allocation17 + $0x758] sm:$0xff]
    %v4071 = vld [vmem:[#allocation17 + $0x760] sm:$0xff]
    %v4072 = vld [vmem:[#allocation17 + $0x768] sm:$0xff]
    %v4073 = vld [vmem:[#allocation17 + $0x770] sm:$0xff]
    %v4074 = vld [vmem:[#allocation17 + $0x778] sm:$0xff]
    %v4075 = vld [vmem:[#allocation17 + $0x780] sm:$0xff]
    %v4076 = vld [vmem:[#allocation17 + $0x788] sm:$0xff]
    %v4077 = vld [vmem:[#allocation17 + $0x790] sm:$0xff]
    %v4078 = vld [vmem:[#allocation17 + $0x798] sm:$0xff]
    %v4079 = vld [vmem:[#allocation17 + $0x7a0] sm:$0xff]
    %v4080 = vld [vmem:[#allocation17 + $0x7a8] sm:$0xff]
    %v4081 = vld [vmem:[#allocation17 + $0x7b0] sm:$0xff]
    %v4082 = vld [vmem:[#allocation17 + $0x7b8] sm:$0xff]
    %v4083 = vld [vmem:[#allocation17 + $0x7c0] sm:$0xff]
    %v4084 = vld [vmem:[#allocation17 + $0x7c8] sm:$0xff]
    %v4085 = vld [vmem:[#allocation17 + $0x7d0] sm:$0xff]
    %v4086 = vld [vmem:[#allocation17 + $0x7d8] sm:$0xff]
    %v4087 = vld [vmem:[#allocation17 + $0x7e0] sm:$0xff]
    %v4088 = vld [vmem:[#allocation17 + $0x7e8] sm:$0xff]
    %v4089 = vld [vmem:[#allocation17 + $0x7f0] sm:$0xff]
    %v4090 = vld [vmem:[#allocation17 + $0x7f8] sm:$0xff]
    %v4091 = vld [vmem:[#allocation17 + $0x800] sm:$0xff]
    %v4092 = vld [vmem:[#allocation17 + $0x808] sm:$0xff]
    %v4093 = vld [vmem:[#allocation17 + $0x810] sm:$0xff]
    %v4094 = vld [vmem:[#allocation17 + $0x818] sm:$0xff]
    %v4095 = vld [vmem:[#allocation17 + $0x820] sm:$0xff]
    %v4096 = vld [vmem:[#allocation17 + $0x828] sm:$0xff]
    %v4097 = vld [vmem:[#allocation17 + $0x830] sm:$0xff]
    %v4098 = vld [vmem:[#allocation17 + $0x838] sm:$0xff]
    %v4099 = vld [vmem:[#allocation17 + $0x840] sm:$0xff]
    %v4100 = vld [vmem:[#allocation17 + $0x848] sm:$0xff]
    %v4101 = vld [vmem:[#allocation17 + $0x850] sm:$0xff]
    %v4102 = vld [vmem:[#allocation17 + $0x858] sm:$0xff]
    %v4103 = vld [vmem:[#allocation17 + $0x860] sm:$0xff]
    %v4104 = vld [vmem:[#allocation17 + $0x868] sm:$0xff]
    %v4105 = vld [vmem:[#allocation17 + $0x870] sm:$0xff]
    %v4106 = vld [vmem:[#allocation17 + $0x878] sm:$0xff]
    %v4107 = vld [vmem:[#allocation17 + $0x880] sm:$0xff]
    %v4108 = vld [vmem:[#allocation17 + $0x888] sm:$0xff]
    %v4109 = vld [vmem:[#allocation17 + $0x890] sm:$0xff]
    %v4110 = vld [vmem:[#allocation17 + $0x898] sm:$0xff]
    %v4111 = vld [vmem:[#allocation17 + $0x8a0] sm:$0xff]
    %v4112 = vld [vmem:[#allocation17 + $0x8a8] sm:$0xff]
    %v4113 = vld [vmem:[#allocation17 + $0x8b0] sm:$0xff]
    %v4114 = vld [vmem:[#allocation17 + $0x8b8] sm:$0xff]
    %v4115 = vld [vmem:[#allocation17 + $0x8c0] sm:$0xff]
    %v4116 = vld [vmem:[#allocation17 + $0x8c8] sm:$0xff]
    %v4117 = vld [vmem:[#allocation17 + $0x8d0] sm:$0xff]
    %v4118 = vld [vmem:[#allocation17 + $0x8d8] sm:$0xff]
    %v4119 = vld [vmem:[#allocation17 + $0x8e0] sm:$0xff]
    %v4120 = vld [vmem:[#allocation17 + $0x8e8] sm:$0xff]
    %v4121 = vld [vmem:[#allocation17 + $0x8f0] sm:$0xff]
    %v4122 = vld [vmem:[#allocation17 + $0x8f8] sm:$0xff]
    %v4123 = vld [vmem:[#allocation17 + $0x900] sm:$0xff]
    %v4124 = vld [vmem:[#allocation17 + $0x908] sm:$0xff]
    %v4125 = vld [vmem:[#allocation17 + $0x910] sm:$0xff]
    %v4126 = vld [vmem:[#allocation17 + $0x918] sm:$0xff]
    %v4127 = vld [vmem:[#allocation17 + $0x920] sm:$0xff]
    %v4128 = vld [vmem:[#allocation17 + $0x928] sm:$0xff]
    %v4129 = vld [vmem:[#allocation17 + $0x930] sm:$0xff]
    %v4130 = vld [vmem:[#allocation17 + $0x938] sm:$0xff]
    %v4131 = vld [vmem:[#allocation17 + $0x940] sm:$0xff]
    %v4132 = vld [vmem:[#allocation17 + $0x948] sm:$0xff]
    %v4133 = vld [vmem:[#allocation17 + $0x950] sm:$0xff]
    %v4134 = vld [vmem:[#allocation17 + $0x958] sm:$0xff]
    %v4135 = vld [vmem:[#allocation17 + $0x960] sm:$0xff]
    %v4136 = vld [vmem:[#allocation17 + $0x968] sm:$0xff]
    %v4137 = vld [vmem:[#allocation17 + $0x970] sm:$0xff]
    %v4138 = vld [vmem:[#allocation17 + $0x978] sm:$0xff]
    %v4139 = vld [vmem:[#allocation17 + $0x980] sm:$0xff]
    %v4140 = vld [vmem:[#allocation17 + $0x988] sm:$0xff]
    %v4141 = vld [vmem:[#allocation17 + $0x990] sm:$0xff]
    %v4142 = vld [vmem:[#allocation17 + $0x998] sm:$0xff]
    %v4143 = vld [vmem:[#allocation17 + $0x9a0] sm:$0xff]
    %v4144 = vld [vmem:[#allocation17 + $0x9a8] sm:$0xff]
    %v4145 = vld [vmem:[#allocation17 + $0x9b0] sm:$0xff]
    %v4146 = vld [vmem:[#allocation17 + $0x9b8] sm:$0xff]
    %v4147 = vld [vmem:[#allocation17 + $0x9c0] sm:$0xff]
    %v4148 = vld [vmem:[#allocation17 + $0x9c8] sm:$0xff]
    %v4149 = vld [vmem:[#allocation17 + $0x9d0] sm:$0xff]
    %v4150 = vld [vmem:[#allocation17 + $0x9d8] sm:$0xff]
    %v4151 = vld [vmem:[#allocation17 + $0x9e0] sm:$0xff]
    %v4152 = vld [vmem:[#allocation17 + $0x9e8] sm:$0xff]
    %v4153 = vld [vmem:[#allocation17 + $0x9f0] sm:$0xff]
    %v4154 = vld [vmem:[#allocation17 + $0x9f8] sm:$0xff]
    %v4155 = vld [vmem:[#allocation17 + $0xa00] sm:$0xff]
    %v4156 = vld [vmem:[#allocation17 + $0xa08] sm:$0xff]
    %v4157 = vld [vmem:[#allocation17 + $0xa10] sm:$0xff]
    %v4158 = vld [vmem:[#allocation17 + $0xa18] sm:$0xff]
    %v4159 = vld [vmem:[#allocation17 + $0xa20] sm:$0xff]
    %v4160 = vld [vmem:[#allocation17 + $0xa28] sm:$0xff]
    %v4161 = vld [vmem:[#allocation17 + $0xa30] sm:$0xff]
    %v4162 = vld [vmem:[#allocation17 + $0xa38] sm:$0xff]
    %v4163 = vld [vmem:[#allocation17 + $0xa40] sm:$0xff]
    %v4164 = vld [vmem:[#allocation17 + $0xa48] sm:$0xff]
    %v4165 = vld [vmem:[#allocation17 + $0xa50] sm:$0xff]
    %v4166 = vld [vmem:[#allocation17 + $0xa58] sm:$0xff]
    %v4167 = vld [vmem:[#allocation17 + $0xa60] sm:$0xff]
    %v4168 = vld [vmem:[#allocation17 + $0xa68] sm:$0xff]
    %v4169 = vld [vmem:[#allocation17 + $0xa70] sm:$0xff]
    %v4170 = vld [vmem:[#allocation17 + $0xa78] sm:$0xff]
    %v4171 = vld [vmem:[#allocation17 + $0xa80] sm:$0xff]
    %v4172 = vld [vmem:[#allocation17 + $0xa88] sm:$0xff]
    %v4173 = vld [vmem:[#allocation17 + $0xa90] sm:$0xff]
    %v4174 = vld [vmem:[#allocation17 + $0xa98] sm:$0xff]
    %v4175 = vld [vmem:[#allocation17 + $0xaa0] sm:$0xff]
    %v4176 = vld [vmem:[#allocation17 + $0xaa8] sm:$0xff]
    %v4177 = vld [vmem:[#allocation17 + $0xab0] sm:$0xff]
    %v4178 = vld [vmem:[#allocation17 + $0xab8] sm:$0xff]
    %v4179 = vld [vmem:[#allocation17 + $0xac0] sm:$0xff]
    %v4180 = vld [vmem:[#allocation17 + $0xac8] sm:$0xff]
    %v4181 = vld [vmem:[#allocation17 + $0xad0] sm:$0xff]
    %v4182 = vld [vmem:[#allocation17 + $0xad8] sm:$0xff]
    %v4183 = vld [vmem:[#allocation17 + $0xae0] sm:$0xff]
    %v4184 = vld [vmem:[#allocation17 + $0xae8] sm:$0xff]
    %v4185 = vld [vmem:[#allocation17 + $0xaf0] sm:$0xff]
    %v4186 = vld [vmem:[#allocation17 + $0xaf8] sm:$0xff]
    %v4187 = vld [vmem:[#allocation17 + $0xb00] sm:$0xff]
    %v4188 = vld [vmem:[#allocation17 + $0xb08] sm:$0xff]
    %v4189 = vld [vmem:[#allocation17 + $0xb10] sm:$0xff]
    %v4190 = vld [vmem:[#allocation17 + $0xb18] sm:$0xff]
    %v4191 = vld [vmem:[#allocation17 + $0xb20] sm:$0xff]
    %v4192 = vld [vmem:[#allocation17 + $0xb28] sm:$0xff]
    %v4193 = vld [vmem:[#allocation17 + $0xb30] sm:$0xff]
    %v4194 = vld [vmem:[#allocation17 + $0xb38] sm:$0xff]
    %v4195 = vld [vmem:[#allocation17 + $0xb40] sm:$0xff]
    %v4196 = vld [vmem:[#allocation17 + $0xb48] sm:$0xff]
    %v4197 = vld [vmem:[#allocation17 + $0xb50] sm:$0xff]
    %v4198 = vld [vmem:[#allocation17 + $0xb58] sm:$0xff]
    %v4199 = vld [vmem:[#allocation17 + $0xb60] sm:$0xff]
    %v4200 = vld [vmem:[#allocation17 + $0xb68] sm:$0xff]
    %v4201 = vld [vmem:[#allocation17 + $0xb70] sm:$0xff]
    %v4202 = vld [vmem:[#allocation17 + $0xb78] sm:$0xff]
    %v4203 = vld [vmem:[#allocation17 + $0xb80] sm:$0xff]
    %v4204 = vld [vmem:[#allocation17 + $0xb88] sm:$0xff]
    %v4205 = vld [vmem:[#allocation17 + $0xb90] sm:$0xff]
    %v4206 = vld [vmem:[#allocation17 + $0xb98] sm:$0xff]
    %v4207 = vld [vmem:[#allocation17 + $0xba0] sm:$0xff]
    %v4208 = vld [vmem:[#allocation17 + $0xba8] sm:$0xff]
    %v4209 = vld [vmem:[#allocation17 + $0xbb0] sm:$0xff]
    %v4210 = vld [vmem:[#allocation17 + $0xbb8] sm:$0xff]
    %v4211 = vld [vmem:[#allocation17 + $0xbc0] sm:$0xff]
    %v4212 = vld [vmem:[#allocation17 + $0xbc8] sm:$0xff]
    %v4213 = vld [vmem:[#allocation17 + $0xbd0] sm:$0xff]
    %v4214 = vld [vmem:[#allocation17 + $0xbd8] sm:$0xff]
    %v4215 = vld [vmem:[#allocation17 + $0xbe0] sm:$0xff]
    %v4216 = vld [vmem:[#allocation17 + $0xbe8] sm:$0xff]
    %v4217 = vld [vmem:[#allocation17 + $0xbf0] sm:$0xff]
    %v4218 = vld [vmem:[#allocation17 + $0xbf8] sm:$0xff]
    %v4219 = vld [vmem:[#allocation17 + $0xc00] sm:$0xff]
    %v4220 = vld [vmem:[#allocation17 + $0xc08] sm:$0xff]
    %v4221 = vld [vmem:[#allocation17 + $0xc10] sm:$0xff]
    %v4222 = vld [vmem:[#allocation17 + $0xc18] sm:$0xff]
    %v4223 = vld [vmem:[#allocation17 + $0xc20] sm:$0xff]
    %v4224 = vld [vmem:[#allocation17 + $0xc28] sm:$0xff]
    %v4225 = vld [vmem:[#allocation17 + $0xc30] sm:$0xff]
    %v4226 = vld [vmem:[#allocation17 + $0xc38] sm:$0xff]
    %v4227 = vld [vmem:[#allocation17 + $0xc40] sm:$0xff]
    %v4228 = vld [vmem:[#allocation17 + $0xc48] sm:$0xff]
    %v4229 = vld [vmem:[#allocation17 + $0xc50] sm:$0xff]
    %v4230 = vld [vmem:[#allocation17 + $0xc58] sm:$0xff]
    %v4231 = vld [vmem:[#allocation17 + $0xc60] sm:$0xff]
    %v4232 = vld [vmem:[#allocation17 + $0xc68] sm:$0xff]
    %v4233 = vld [vmem:[#allocation17 + $0xc70] sm:$0xff]
    %v4234 = vld [vmem:[#allocation17 + $0xc78] sm:$0xff]
    %v4235 = vld [vmem:[#allocation17 + $0xc80] sm:$0xff]
    %v4236 = vld [vmem:[#allocation17 + $0xc88] sm:$0xff]
    %v4237 = vld [vmem:[#allocation17 + $0xc90] sm:$0xff]
    %v4238 = vld [vmem:[#allocation17 + $0xc98] sm:$0xff]
    %v4239 = vld [vmem:[#allocation17 + $0xca0] sm:$0xff]
    %v4240 = vld [vmem:[#allocation17 + $0xca8] sm:$0xff]
    %v4241 = vld [vmem:[#allocation17 + $0xcb0] sm:$0xff]
    %v4242 = vld [vmem:[#allocation17 + $0xcb8] sm:$0xff]
    %v4243 = vld [vmem:[#allocation17 + $0xcc0] sm:$0xff]
    %v4244 = vld [vmem:[#allocation17 + $0xcc8] sm:$0xff]
    %v4245 = vld [vmem:[#allocation17 + $0xcd0] sm:$0xff]
    %v4246 = vld [vmem:[#allocation17 + $0xcd8] sm:$0xff]
    %v4247 = vld [vmem:[#allocation17 + $0xce0] sm:$0xff]
    %v4248 = vld [vmem:[#allocation17 + $0xce8] sm:$0xff]
    %v4249 = vld [vmem:[#allocation17 + $0xcf0] sm:$0xff]
    %v4250 = vld [vmem:[#allocation17 + $0xcf8] sm:$0xff]
    %v4251 = vld [vmem:[#allocation17 + $0xd00] sm:$0xff]
    %v4252 = vld [vmem:[#allocation17 + $0xd08] sm:$0xff]
    %v4253 = vld [vmem:[#allocation17 + $0xd10] sm:$0xff]
    %v4254 = vld [vmem:[#allocation17 + $0xd18] sm:$0xff]
    %v4255 = vld [vmem:[#allocation17 + $0xd20] sm:$0xff]
    %v4256 = vld [vmem:[#allocation17 + $0xd28] sm:$0xff]
    %v4257 = vld [vmem:[#allocation17 + $0xd30] sm:$0xff]
    %v4258 = vld [vmem:[#allocation17 + $0xd38] sm:$0xff]
    %v4259 = vld [vmem:[#allocation17 + $0xd40] sm:$0xff]
    %v4260 = vld [vmem:[#allocation17 + $0xd48] sm:$0xff]
    %v4261 = vld [vmem:[#allocation17 + $0xd50] sm:$0xff]
    %v4262 = vld [vmem:[#allocation17 + $0xd58] sm:$0xff]
    %v4263 = vld [vmem:[#allocation17 + $0xd60] sm:$0xff]
    %v4264 = vld [vmem:[#allocation17 + $0xd68] sm:$0xff]
    %v4265 = vld [vmem:[#allocation17 + $0xd70] sm:$0xff]
    %v4266 = vld [vmem:[#allocation17 + $0xd78] sm:$0xff]
    %v4267 = vld [vmem:[#allocation17 + $0xd80] sm:$0xff]
    %v4268 = vld [vmem:[#allocation17 + $0xd88] sm:$0xff]
    %v4269 = vld [vmem:[#allocation17 + $0xd90] sm:$0xff]
    %v4270 = vld [vmem:[#allocation17 + $0xd98] sm:$0xff]
    %v4271 = vld [vmem:[#allocation17 + $0xda0] sm:$0xff]
    %v4272 = vld [vmem:[#allocation17 + $0xda8] sm:$0xff]
    %v4273 = vld [vmem:[#allocation17 + $0xdb0] sm:$0xff]
    %v4274 = vld [vmem:[#allocation17 + $0xdb8] sm:$0xff]
    %v4275 = vld [vmem:[#allocation17 + $0xdc0] sm:$0xff]
    %v4276 = vld [vmem:[#allocation17 + $0xdc8] sm:$0xff]
    %v4277 = vld [vmem:[#allocation17 + $0xdd0] sm:$0xff]
    %v4278 = vld [vmem:[#allocation17 + $0xdd8] sm:$0xff]
    %v4279 = vld [vmem:[#allocation17 + $0xde0] sm:$0xff]
    %v4280 = vld [vmem:[#allocation17 + $0xde8] sm:$0xff]
    %v4281 = vld [vmem:[#allocation17 + $0xdf0] sm:$0xff]
    %v4282 = vld [vmem:[#allocation17 + $0xdf8] sm:$0xff]
    %v4283 = vld [vmem:[#allocation17 + $0xe00] sm:$0xff]
    %v4284 = vld [vmem:[#allocation17 + $0xe08] sm:$0xff]
    %v4285 = vld [vmem:[#allocation17 + $0xe10] sm:$0xff]
    %v4286 = vld [vmem:[#allocation17 + $0xe18] sm:$0xff]
    %v4287 = vld [vmem:[#allocation17 + $0xe20] sm:$0xff]
    %v4288 = vld [vmem:[#allocation17 + $0xe28] sm:$0xff]
    %v4289 = vld [vmem:[#allocation17 + $0xe30] sm:$0xff]
    %v4290 = vld [vmem:[#allocation17 + $0xe38] sm:$0xff]
    %v4291 = vld [vmem:[#allocation17 + $0xe40] sm:$0xff]
    %v4292 = vld [vmem:[#allocation17 + $0xe48] sm:$0xff]
    %v4293 = vld [vmem:[#allocation17 + $0xe50] sm:$0xff]
    %v4294 = vld [vmem:[#allocation17 + $0xe58] sm:$0xff]
    %v4295 = vld [vmem:[#allocation17 + $0xe60] sm:$0xff]
    %v4296 = vld [vmem:[#allocation17 + $0xe68] sm:$0xff]
    %v4297 = vld [vmem:[#allocation17 + $0xe70] sm:$0xff]
    %v4298 = vld [vmem:[#allocation17 + $0xe78] sm:$0xff]
    %v4299 = vld [vmem:[#allocation17 + $0xe80] sm:$0xff]
    %v4300 = vld [vmem:[#allocation17 + $0xe88] sm:$0xff]
    %v4301 = vld [vmem:[#allocation17 + $0xe90] sm:$0xff]
    %v4302 = vld [vmem:[#allocation17 + $0xe98] sm:$0xff]
    %v4303 = vld [vmem:[#allocation17 + $0xea0] sm:$0xff]
    %v4304 = vld [vmem:[#allocation17 + $0xea8] sm:$0xff]
    %v4305 = vld [vmem:[#allocation17 + $0xeb0] sm:$0xff]
    %v4306 = vld [vmem:[#allocation17 + $0xeb8] sm:$0xff]
    %v4307 = vld [vmem:[#allocation17 + $0xec0] sm:$0xff]
    %v4308 = vld [vmem:[#allocation17 + $0xec8] sm:$0xff]
    %v4309 = vld [vmem:[#allocation17 + $0xed0] sm:$0xff]
    %v4310 = vld [vmem:[#allocation17 + $0xed8] sm:$0xff]
    %v4311 = vld [vmem:[#allocation17 + $0xee0] sm:$0xff]
    %v4312 = vld [vmem:[#allocation17 + $0xee8] sm:$0xff]
    %v4313 = vld [vmem:[#allocation17 + $0xef0] sm:$0xff]
    %v4314 = vld [vmem:[#allocation17 + $0xef8] sm:$0xff]
    %v4315 = vld [vmem:[#allocation17 + $0xf00] sm:$0xff]
    %v4316 = vld [vmem:[#allocation17 + $0xf08] sm:$0xff]
    %v4317 = vld [vmem:[#allocation17 + $0xf10] sm:$0xff]
    %v4318 = vld [vmem:[#allocation17 + $0xf18] sm:$0xff]
    %v4319 = vld [vmem:[#allocation17 + $0xf20] sm:$0xff]
    %v4320 = vld [vmem:[#allocation17 + $0xf28] sm:$0xff]
    %v4321 = vld [vmem:[#allocation17 + $0xf30] sm:$0xff]
    %v4322 = vld [vmem:[#allocation17 + $0xf38] sm:$0xff]
    %v4323 = vld [vmem:[#allocation17 + $0xf40] sm:$0xff]
    %v4324 = vld [vmem:[#allocation17 + $0xf48] sm:$0xff]
    %v4325 = vld [vmem:[#allocation17 + $0xf50] sm:$0xff]
    %v4326 = vld [vmem:[#allocation17 + $0xf58] sm:$0xff]
    %v4327 = vld [vmem:[#allocation17 + $0xf60] sm:$0xff]
    %v4328 = vld [vmem:[#allocation17 + $0xf68] sm:$0xff]
    %v4329 = vld [vmem:[#allocation17 + $0xf70] sm:$0xff]
    %v4330 = vld [vmem:[#allocation17 + $0xf78] sm:$0xff]
    %v4331 = vld [vmem:[#allocation17 + $0xf80] sm:$0xff]
    %v4332 = vld [vmem:[#allocation17 + $0xf88] sm:$0xff]
    %v4333 = vld [vmem:[#allocation17 + $0xf90] sm:$0xff]
    %v4334 = vld [vmem:[#allocation17 + $0xf98] sm:$0xff]
    %v4335 = vld [vmem:[#allocation17 + $0xfa0] sm:$0xff]
    %v4336 = vld [vmem:[#allocation17 + $0xfa8] sm:$0xff]
    %v4337 = vld [vmem:[#allocation17 + $0xfb0] sm:$0xff]
    %v4338 = vld [vmem:[#allocation17 + $0xfb8] sm:$0xff]
    %v4339 = vld [vmem:[#allocation17 + $0xfc0] sm:$0xff]
    %v4340 = vld [vmem:[#allocation17 + $0xfc8] sm:$0xff]
    %v4341 = vld [vmem:[#allocation17 + $0xfd0] sm:$0xff]
    %v4342 = vld [vmem:[#allocation17 + $0xfd8] sm:$0xff]
    %v4343 = vld [vmem:[#allocation17 + $0xfe0] sm:$0xff]
    %v4344 = vld [vmem:[#allocation17 + $0xfe8] sm:$0xff]
    %v4345 = vld [vmem:[#allocation17 + $0xff0] sm:$0xff]
    %v4346 = vld [vmem:[#allocation17 + $0xff8] sm:$0xff]
    %v4347 = vld [vmem:[#allocation19] sm:$0xff]
    %v4349 = vlaneseq
    %v4350 = vshrl.u32 %v4349, 7
    %v4351 = vsub.s32 0, %v4350
    %v4352 = vrot.slane %v4347, %v4351
    %v4353 = vlaneseq
    %v4354 = vshrl.u32 %v4353, 7
    %v4355 = vsub.s32 1, %v4354
    %v4356 = vrot.slane %v4347, %v4355
    %v4357 = vlaneseq
    %v4358 = vshrl.u32 %v4357, 7
    %v4359 = vsub.s32 2, %v4358
    %v4360 = vrot.slane %v4347, %v4359
    %v4361 = vlaneseq
    %v4362 = vshrl.u32 %v4361, 7
    %v4363 = vsub.s32 3, %v4362
    %v4364 = vrot.slane %v4347, %v4363
    %v4365 = vlaneseq
    %v4366 = vshrl.u32 %v4365, 7
    %v4367 = vsub.s32 4, %v4366
    %v4368 = vrot.slane %v4347, %v4367
    %v4369 = vlaneseq
    %v4370 = vshrl.u32 %v4369, 7
    %v4371 = vsub.s32 5, %v4370
    %v4372 = vrot.slane %v4347, %v4371
    %v4373 = vlaneseq
    %v4374 = vshrl.u32 %v4373, 7
    %v4375 = vsub.s32 6, %v4374
    %v4376 = vrot.slane %v4347, %v4375
    %v4377 = vlaneseq
    %v4378 = vshrl.u32 %v4377, 7
    %v4379 = vsub.s32 7, %v4378
    %v4380 = vrot.slane %v4347, %v4379
    %v4901 = vunpack.c.l.b16 %v3835
    %v4902 = vunpack.c.h.b16 %v3835
    %v4903 = vunpack.c.l.b16 %v3836
    %v4904 = vunpack.c.h.b16 %v3836
    %v4905 = vunpack.c.l.b16 %v3837
    %v4906 = vunpack.c.h.b16 %v3837
    %v4907 = vunpack.c.l.b16 %v3838
    %v4908 = vunpack.c.h.b16 %v3838
    %v4909 = vunpack.c.l.b16 %v3839
    %v4910 = vunpack.c.h.b16 %v3839
    %v4911 = vunpack.c.l.b16 %v3840
    %v4912 = vunpack.c.h.b16 %v3840
    %v4913 = vunpack.c.l.b16 %v3841
    %v4914 = vunpack.c.h.b16 %v3841
    %v4915 = vunpack.c.l.b16 %v3842
    %v4916 = vunpack.c.h.b16 %v3842
    %v4917 = vunpack.c.l.b16 %v3843
    %v4918 = vunpack.c.h.b16 %v3843
    %v4919 = vunpack.c.l.b16 %v3844
    %v4920 = vunpack.c.h.b16 %v3844
    %v4921 = vunpack.c.l.b16 %v3845
    %v4922 = vunpack.c.h.b16 %v3845
    %v4923 = vunpack.c.l.b16 %v3846
    %v4924 = vunpack.c.h.b16 %v3846
    %v4925 = vunpack.c.l.b16 %v3847
    %v4926 = vunpack.c.h.b16 %v3847
    %v4927 = vunpack.c.l.b16 %v3848
    %v4928 = vunpack.c.h.b16 %v3848
    %v4929 = vunpack.c.l.b16 %v3849
    %v4930 = vunpack.c.h.b16 %v3849
    %v4931 = vunpack.c.l.b16 %v3850
    %v4932 = vunpack.c.h.b16 %v3850
    %v4933 = vunpack.c.l.b16 %v3851
    %v4934 = vunpack.c.h.b16 %v3851
    %v4935 = vunpack.c.l.b16 %v3852
    %v4936 = vunpack.c.h.b16 %v3852
    %v4937 = vunpack.c.l.b16 %v3853
    %v4938 = vunpack.c.h.b16 %v3853
    %v4939 = vunpack.c.l.b16 %v3854
    %v4940 = vunpack.c.h.b16 %v3854
    %v4941 = vunpack.c.l.b16 %v3855
    %v4942 = vunpack.c.h.b16 %v3855
    %v4943 = vunpack.c.l.b16 %v3856
    %v4944 = vunpack.c.h.b16 %v3856
    %v4945 = vunpack.c.l.b16 %v3857
    %v4946 = vunpack.c.h.b16 %v3857
    %v4947 = vunpack.c.l.b16 %v3858
    %v4948 = vunpack.c.h.b16 %v3858
    %v4949 = vunpack.c.l.b16 %v3859
    %v4950 = vunpack.c.h.b16 %v3859
    %v4951 = vunpack.c.l.b16 %v3860
    %v4952 = vunpack.c.h.b16 %v3860
    %v4953 = vunpack.c.l.b16 %v3861
    %v4954 = vunpack.c.h.b16 %v3861
    %v4955 = vunpack.c.l.b16 %v3862
    %v4956 = vunpack.c.h.b16 %v3862
    %v4957 = vunpack.c.l.b16 %v3863
    %v4958 = vunpack.c.h.b16 %v3863
    %v4959 = vunpack.c.l.b16 %v3864
    %v4960 = vunpack.c.h.b16 %v3864
    %v4961 = vunpack.c.l.b16 %v3865
    %v4962 = vunpack.c.h.b16 %v3865
    %v4963 = vunpack.c.l.b16 %v3866
    %v4964 = vunpack.c.h.b16 %v3866
    %v4965 = vunpack.c.l.b16 %v3867
    %v4966 = vunpack.c.h.b16 %v3867
    %v4967 = vunpack.c.l.b16 %v3868
    %v4968 = vunpack.c.h.b16 %v3868
    %v4969 = vunpack.c.l.b16 %v3869
    %v4970 = vunpack.c.h.b16 %v3869
    %v4971 = vunpack.c.l.b16 %v3870
    %v4972 = vunpack.c.h.b16 %v3870
    %v4973 = vunpack.c.l.b16 %v3871
    %v4974 = vunpack.c.h.b16 %v3871
    %v4975 = vunpack.c.l.b16 %v3872
    %v4976 = vunpack.c.h.b16 %v3872
    %v4977 = vunpack.c.l.b16 %v3873
    %v4978 = vunpack.c.h.b16 %v3873
    %v4979 = vunpack.c.l.b16 %v3874
    %v4980 = vunpack.c.h.b16 %v3874
    %v4981 = vunpack.c.l.b16 %v3875
    %v4982 = vunpack.c.h.b16 %v3875
    %v4983 = vunpack.c.l.b16 %v3876
    %v4984 = vunpack.c.h.b16 %v3876
    %v4985 = vunpack.c.l.b16 %v3877
    %v4986 = vunpack.c.h.b16 %v3877
    %v4987 = vunpack.c.l.b16 %v3878
    %v4988 = vunpack.c.h.b16 %v3878
    %v4989 = vunpack.c.l.b16 %v3879
    %v4990 = vunpack.c.h.b16 %v3879
    %v4991 = vunpack.c.l.b16 %v3880
    %v4992 = vunpack.c.h.b16 %v3880
    %v4993 = vunpack.c.l.b16 %v3881
    %v4994 = vunpack.c.h.b16 %v3881
    %v4995 = vunpack.c.l.b16 %v3882
    %v4996 = vunpack.c.h.b16 %v3882
    %v4997 = vunpack.c.l.b16 %v3883
    %v4998 = vunpack.c.h.b16 %v3883
    %v4999 = vunpack.c.l.b16 %v3884
    %v5000 = vunpack.c.h.b16 %v3884
    %v5001 = vunpack.c.l.b16 %v3885
    %v5002 = vunpack.c.h.b16 %v3885
    %v5003 = vunpack.c.l.b16 %v3886
    %v5004 = vunpack.c.h.b16 %v3886
    %v5005 = vunpack.c.l.b16 %v3887
    %v5006 = vunpack.c.h.b16 %v3887
    %v5007 = vunpack.c.l.b16 %v3888
    %v5008 = vunpack.c.h.b16 %v3888
    %v5009 = vunpack.c.l.b16 %v3889
    %v5010 = vunpack.c.h.b16 %v3889
    %v5011 = vunpack.c.l.b16 %v3890
    %v5012 = vunpack.c.h.b16 %v3890
    %v5013 = vunpack.c.l.b16 %v3891
    %v5014 = vunpack.c.h.b16 %v3891
    %v5015 = vunpack.c.l.b16 %v3892
    %v5016 = vunpack.c.h.b16 %v3892
    %v5017 = vunpack.c.l.b16 %v3893
    %v5018 = vunpack.c.h.b16 %v3893
    %v5019 = vunpack.c.l.b16 %v3894
    %v5020 = vunpack.c.h.b16 %v3894
    %v5021 = vunpack.c.l.b16 %v3895
    %v5022 = vunpack.c.h.b16 %v3895
    %v5023 = vunpack.c.l.b16 %v3896
    %v5024 = vunpack.c.h.b16 %v3896
    %v5025 = vunpack.c.l.b16 %v3897
    %v5026 = vunpack.c.h.b16 %v3897
    %v5027 = vunpack.c.l.b16 %v3898
    %v5028 = vunpack.c.h.b16 %v3898
    %v5029 = vunpack.c.l.b16 %v3899
    %v5030 = vunpack.c.h.b16 %v3899
    %v5031 = vunpack.c.l.b16 %v3900
    %v5032 = vunpack.c.h.b16 %v3900
    %v5033 = vunpack.c.l.b16 %v3901
    %v5034 = vunpack.c.h.b16 %v3901
    %v5035 = vunpack.c.l.b16 %v3902
    %v5036 = vunpack.c.h.b16 %v3902
    %v5037 = vunpack.c.l.b16 %v3903
    %v5038 = vunpack.c.h.b16 %v3903
    %v5039 = vunpack.c.l.b16 %v3904
    %v5040 = vunpack.c.h.b16 %v3904
    %v5041 = vunpack.c.l.b16 %v3905
    %v5042 = vunpack.c.h.b16 %v3905
    %v5043 = vunpack.c.l.b16 %v3906
    %v5044 = vunpack.c.h.b16 %v3906
    %v5045 = vunpack.c.l.b16 %v3907
    %v5046 = vunpack.c.h.b16 %v3907
    %v5047 = vunpack.c.l.b16 %v3908
    %v5048 = vunpack.c.h.b16 %v3908
    %v5049 = vunpack.c.l.b16 %v3909
    %v5050 = vunpack.c.h.b16 %v3909
    %v5051 = vunpack.c.l.b16 %v3910
    %v5052 = vunpack.c.h.b16 %v3910
    %v5053 = vunpack.c.l.b16 %v3911
    %v5054 = vunpack.c.h.b16 %v3911
    %v5055 = vunpack.c.l.b16 %v3912
    %v5056 = vunpack.c.h.b16 %v3912
    %v5057 = vunpack.c.l.b16 %v3913
    %v5058 = vunpack.c.h.b16 %v3913
    %v5059 = vunpack.c.l.b16 %v3914
    %v5060 = vunpack.c.h.b16 %v3914
    %v5061 = vunpack.c.l.b16 %v3915
    %v5062 = vunpack.c.h.b16 %v3915
    %v5063 = vunpack.c.l.b16 %v3916
    %v5064 = vunpack.c.h.b16 %v3916
    %v5065 = vunpack.c.l.b16 %v3917
    %v5066 = vunpack.c.h.b16 %v3917
    %v5067 = vunpack.c.l.b16 %v3918
    %v5068 = vunpack.c.h.b16 %v3918
    %v5069 = vunpack.c.l.b16 %v3919
    %v5070 = vunpack.c.h.b16 %v3919
    %v5071 = vunpack.c.l.b16 %v3920
    %v5072 = vunpack.c.h.b16 %v3920
    %v5073 = vunpack.c.l.b16 %v3921
    %v5074 = vunpack.c.h.b16 %v3921
    %v5075 = vunpack.c.l.b16 %v3922
    %v5076 = vunpack.c.h.b16 %v3922
    %v5077 = vunpack.c.l.b16 %v3923
    %v5078 = vunpack.c.h.b16 %v3923
    %v5079 = vunpack.c.l.b16 %v3924
    %v5080 = vunpack.c.h.b16 %v3924
    %v5081 = vunpack.c.l.b16 %v3925
    %v5082 = vunpack.c.h.b16 %v3925
    %v5083 = vunpack.c.l.b16 %v3926
    %v5084 = vunpack.c.h.b16 %v3926
    %v5085 = vunpack.c.l.b16 %v3927
    %v5086 = vunpack.c.h.b16 %v3927
    %v5087 = vunpack.c.l.b16 %v3928
    %v5088 = vunpack.c.h.b16 %v3928
    %v5089 = vunpack.c.l.b16 %v3929
    %v5090 = vunpack.c.h.b16 %v3929
    %v5091 = vunpack.c.l.b16 %v3930
    %v5092 = vunpack.c.h.b16 %v3930
    %v5093 = vunpack.c.l.b16 %v3931
    %v5094 = vunpack.c.h.b16 %v3931
    %v5095 = vunpack.c.l.b16 %v3932
    %v5096 = vunpack.c.h.b16 %v3932
    %v5097 = vunpack.c.l.b16 %v3933
    %v5098 = vunpack.c.h.b16 %v3933
    %v5099 = vunpack.c.l.b16 %v3934
    %v5100 = vunpack.c.h.b16 %v3934
    %v5101 = vunpack.c.l.b16 %v3935
    %v5102 = vunpack.c.h.b16 %v3935
    %v5103 = vunpack.c.l.b16 %v3936
    %v5104 = vunpack.c.h.b16 %v3936
    %v5105 = vunpack.c.l.b16 %v3937
    %v5106 = vunpack.c.h.b16 %v3937
    %v5107 = vunpack.c.l.b16 %v3938
    %v5108 = vunpack.c.h.b16 %v3938
    %v5109 = vunpack.c.l.b16 %v3939
    %v5110 = vunpack.c.h.b16 %v3939
    %v5111 = vunpack.c.l.b16 %v3940
    %v5112 = vunpack.c.h.b16 %v3940
    %v5113 = vunpack.c.l.b16 %v3941
    %v5114 = vunpack.c.h.b16 %v3941
    %v5115 = vunpack.c.l.b16 %v3942
    %v5116 = vunpack.c.h.b16 %v3942
    %v5117 = vunpack.c.l.b16 %v3943
    %v5118 = vunpack.c.h.b16 %v3943
    %v5119 = vunpack.c.l.b16 %v3944
    %v5120 = vunpack.c.h.b16 %v3944
    %v5121 = vunpack.c.l.b16 %v3945
    %v5122 = vunpack.c.h.b16 %v3945
    %v5123 = vunpack.c.l.b16 %v3946
    %v5124 = vunpack.c.h.b16 %v3946
    %v5125 = vunpack.c.l.b16 %v3947
    %v5126 = vunpack.c.h.b16 %v3947
    %v5127 = vunpack.c.l.b16 %v3948
    %v5128 = vunpack.c.h.b16 %v3948
    %v5129 = vunpack.c.l.b16 %v3949
    %v5130 = vunpack.c.h.b16 %v3949
    %v5131 = vunpack.c.l.b16 %v3950
    %v5132 = vunpack.c.h.b16 %v3950
    %v5133 = vunpack.c.l.b16 %v3951
    %v5134 = vunpack.c.h.b16 %v3951
    %v5135 = vunpack.c.l.b16 %v3952
    %v5136 = vunpack.c.h.b16 %v3952
    %v5137 = vunpack.c.l.b16 %v3953
    %v5138 = vunpack.c.h.b16 %v3953
    %v5139 = vunpack.c.l.b16 %v3954
    %v5140 = vunpack.c.h.b16 %v3954
    %v5141 = vunpack.c.l.b16 %v3955
    %v5142 = vunpack.c.h.b16 %v3955
    %v5143 = vunpack.c.l.b16 %v3956
    %v5144 = vunpack.c.h.b16 %v3956
    %v5145 = vunpack.c.l.b16 %v3957
    %v5146 = vunpack.c.h.b16 %v3957
    %v5147 = vunpack.c.l.b16 %v3958
    %v5148 = vunpack.c.h.b16 %v3958
    %v5149 = vunpack.c.l.b16 %v3959
    %v5150 = vunpack.c.h.b16 %v3959
    %v5151 = vunpack.c.l.b16 %v3960
    %v5152 = vunpack.c.h.b16 %v3960
    %v5153 = vunpack.c.l.b16 %v3961
    %v5154 = vunpack.c.h.b16 %v3961
    %v5155 = vunpack.c.l.b16 %v3962
    %v5156 = vunpack.c.h.b16 %v3962
    %v5157 = vunpack.c.l.b16 %v3963
    %v5158 = vunpack.c.h.b16 %v3963
    %v5159 = vunpack.c.l.b16 %v3964
    %v5160 = vunpack.c.h.b16 %v3964
    %v5161 = vunpack.c.l.b16 %v3965
    %v5162 = vunpack.c.h.b16 %v3965
    %v5163 = vunpack.c.l.b16 %v3966
    %v5164 = vunpack.c.h.b16 %v3966
    %v5165 = vunpack.c.l.b16 %v3967
    %v5166 = vunpack.c.h.b16 %v3967
    %v5167 = vunpack.c.l.b16 %v3968
    %v5168 = vunpack.c.h.b16 %v3968
    %v5169 = vunpack.c.l.b16 %v3969
    %v5170 = vunpack.c.h.b16 %v3969
    %v5171 = vunpack.c.l.b16 %v3970
    %v5172 = vunpack.c.h.b16 %v3970
    %v5173 = vunpack.c.l.b16 %v3971
    %v5174 = vunpack.c.h.b16 %v3971
    %v5175 = vunpack.c.l.b16 %v3972
    %v5176 = vunpack.c.h.b16 %v3972
    %v5177 = vunpack.c.l.b16 %v3973
    %v5178 = vunpack.c.h.b16 %v3973
    %v5179 = vunpack.c.l.b16 %v3974
    %v5180 = vunpack.c.h.b16 %v3974
    %v5181 = vunpack.c.l.b16 %v3975
    %v5182 = vunpack.c.h.b16 %v3975
    %v5183 = vunpack.c.l.b16 %v3976
    %v5184 = vunpack.c.h.b16 %v3976
    %v5185 = vunpack.c.l.b16 %v3977
    %v5186 = vunpack.c.h.b16 %v3977
    %v5187 = vunpack.c.l.b16 %v3978
    %v5188 = vunpack.c.h.b16 %v3978
    %v5189 = vunpack.c.l.b16 %v3979
    %v5190 = vunpack.c.h.b16 %v3979
    %v5191 = vunpack.c.l.b16 %v3980
    %v5192 = vunpack.c.h.b16 %v3980
    %v5193 = vunpack.c.l.b16 %v3981
    %v5194 = vunpack.c.h.b16 %v3981
    %v5195 = vunpack.c.l.b16 %v3982
    %v5196 = vunpack.c.h.b16 %v3982
    %v5197 = vunpack.c.l.b16 %v3983
    %v5198 = vunpack.c.h.b16 %v3983
    %v5199 = vunpack.c.l.b16 %v3984
    %v5200 = vunpack.c.h.b16 %v3984
    %v5201 = vunpack.c.l.b16 %v3985
    %v5202 = vunpack.c.h.b16 %v3985
    %v5203 = vunpack.c.l.b16 %v3986
    %v5204 = vunpack.c.h.b16 %v3986
    %v5205 = vunpack.c.l.b16 %v3987
    %v5206 = vunpack.c.h.b16 %v3987
    %v5207 = vunpack.c.l.b16 %v3988
    %v5208 = vunpack.c.h.b16 %v3988
    %v5209 = vunpack.c.l.b16 %v3989
    %v5210 = vunpack.c.h.b16 %v3989
    %v5211 = vunpack.c.l.b16 %v3990
    %v5212 = vunpack.c.h.b16 %v3990
    %v5213 = vunpack.c.l.b16 %v3991
    %v5214 = vunpack.c.h.b16 %v3991
    %v5215 = vunpack.c.l.b16 %v3992
    %v5216 = vunpack.c.h.b16 %v3992
    %v5217 = vunpack.c.l.b16 %v3993
    %v5218 = vunpack.c.h.b16 %v3993
    %v5219 = vunpack.c.l.b16 %v3994
    %v5220 = vunpack.c.h.b16 %v3994
    %v5221 = vunpack.c.l.b16 %v3995
    %v5222 = vunpack.c.h.b16 %v3995
    %v5223 = vunpack.c.l.b16 %v3996
    %v5224 = vunpack.c.h.b16 %v3996
    %v5225 = vunpack.c.l.b16 %v3997
    %v5226 = vunpack.c.h.b16 %v3997
    %v5227 = vunpack.c.l.b16 %v3998
    %v5228 = vunpack.c.h.b16 %v3998
    %v5229 = vunpack.c.l.b16 %v3999
    %v5230 = vunpack.c.h.b16 %v3999
    %v5231 = vunpack.c.l.b16 %v4000
    %v5232 = vunpack.c.h.b16 %v4000
    %v5233 = vunpack.c.l.b16 %v4001
    %v5234 = vunpack.c.h.b16 %v4001
    %v5235 = vunpack.c.l.b16 %v4002
    %v5236 = vunpack.c.h.b16 %v4002
    %v5237 = vunpack.c.l.b16 %v4003
    %v5238 = vunpack.c.h.b16 %v4003
    %v5239 = vunpack.c.l.b16 %v4004
    %v5240 = vunpack.c.h.b16 %v4004
    %v5241 = vunpack.c.l.b16 %v4005
    %v5242 = vunpack.c.h.b16 %v4005
    %v5243 = vunpack.c.l.b16 %v4006
    %v5244 = vunpack.c.h.b16 %v4006
    %v5245 = vunpack.c.l.b16 %v4007
    %v5246 = vunpack.c.h.b16 %v4007
    %v5247 = vunpack.c.l.b16 %v4008
    %v5248 = vunpack.c.h.b16 %v4008
    %v5249 = vunpack.c.l.b16 %v4009
    %v5250 = vunpack.c.h.b16 %v4009
    %v5251 = vunpack.c.l.b16 %v4010
    %v5252 = vunpack.c.h.b16 %v4010
    %v5253 = vunpack.c.l.b16 %v4011
    %v5254 = vunpack.c.h.b16 %v4011
    %v5255 = vunpack.c.l.b16 %v4012
    %v5256 = vunpack.c.h.b16 %v4012
    %v5257 = vunpack.c.l.b16 %v4013
    %v5258 = vunpack.c.h.b16 %v4013
    %v5259 = vunpack.c.l.b16 %v4014
    %v5260 = vunpack.c.h.b16 %v4014
    %v5261 = vunpack.c.l.b16 %v4015
    %v5262 = vunpack.c.h.b16 %v4015
    %v5263 = vunpack.c.l.b16 %v4016
    %v5264 = vunpack.c.h.b16 %v4016
    %v5265 = vunpack.c.l.b16 %v4017
    %v5266 = vunpack.c.h.b16 %v4017
    %v5267 = vunpack.c.l.b16 %v4018
    %v5268 = vunpack.c.h.b16 %v4018
    %v5269 = vunpack.c.l.b16 %v4019
    %v5270 = vunpack.c.h.b16 %v4019
    %v5271 = vunpack.c.l.b16 %v4020
    %v5272 = vunpack.c.h.b16 %v4020
    %v5273 = vunpack.c.l.b16 %v4021
    %v5274 = vunpack.c.h.b16 %v4021
    %v5275 = vunpack.c.l.b16 %v4022
    %v5276 = vunpack.c.h.b16 %v4022
    %v5277 = vunpack.c.l.b16 %v4023
    %v5278 = vunpack.c.h.b16 %v4023
    %v5279 = vunpack.c.l.b16 %v4024
    %v5280 = vunpack.c.h.b16 %v4024
    %v5281 = vunpack.c.l.b16 %v4025
    %v5282 = vunpack.c.h.b16 %v4025
    %v5283 = vunpack.c.l.b16 %v4026
    %v5284 = vunpack.c.h.b16 %v4026
    %v5285 = vunpack.c.l.b16 %v4027
    %v5286 = vunpack.c.h.b16 %v4027
    %v5287 = vunpack.c.l.b16 %v4028
    %v5288 = vunpack.c.h.b16 %v4028
    %v5289 = vunpack.c.l.b16 %v4029
    %v5290 = vunpack.c.h.b16 %v4029
    %v5291 = vunpack.c.l.b16 %v4030
    %v5292 = vunpack.c.h.b16 %v4030
    %v5293 = vunpack.c.l.b16 %v4031
    %v5294 = vunpack.c.h.b16 %v4031
    %v5295 = vunpack.c.l.b16 %v4032
    %v5296 = vunpack.c.h.b16 %v4032
    %v5297 = vunpack.c.l.b16 %v4033
    %v5298 = vunpack.c.h.b16 %v4033
    %v5299 = vunpack.c.l.b16 %v4034
    %v5300 = vunpack.c.h.b16 %v4034
    %v5301 = vunpack.c.l.b16 %v4035
    %v5302 = vunpack.c.h.b16 %v4035
    %v5303 = vunpack.c.l.b16 %v4036
    %v5304 = vunpack.c.h.b16 %v4036
    %v5305 = vunpack.c.l.b16 %v4037
    %v5306 = vunpack.c.h.b16 %v4037
    %v5307 = vunpack.c.l.b16 %v4038
    %v5308 = vunpack.c.h.b16 %v4038
    %v5309 = vunpack.c.l.b16 %v4039
    %v5310 = vunpack.c.h.b16 %v4039
    %v5311 = vunpack.c.l.b16 %v4040
    %v5312 = vunpack.c.h.b16 %v4040
    %v5313 = vunpack.c.l.b16 %v4041
    %v5314 = vunpack.c.h.b16 %v4041
    %v5315 = vunpack.c.l.b16 %v4042
    %v5316 = vunpack.c.h.b16 %v4042
    %v5317 = vunpack.c.l.b16 %v4043
    %v5318 = vunpack.c.h.b16 %v4043
    %v5319 = vunpack.c.l.b16 %v4044
    %v5320 = vunpack.c.h.b16 %v4044
    %v5321 = vunpack.c.l.b16 %v4045
    %v5322 = vunpack.c.h.b16 %v4045
    %v5323 = vunpack.c.l.b16 %v4046
    %v5324 = vunpack.c.h.b16 %v4046
    %v5325 = vunpack.c.l.b16 %v4047
    %v5326 = vunpack.c.h.b16 %v4047
    %v5327 = vunpack.c.l.b16 %v4048
    %v5328 = vunpack.c.h.b16 %v4048
    %v5329 = vunpack.c.l.b16 %v4049
    %v5330 = vunpack.c.h.b16 %v4049
    %v5331 = vunpack.c.l.b16 %v4050
    %v5332 = vunpack.c.h.b16 %v4050
    %v5333 = vunpack.c.l.b16 %v4051
    %v5334 = vunpack.c.h.b16 %v4051
    %v5335 = vunpack.c.l.b16 %v4052
    %v5336 = vunpack.c.h.b16 %v4052
    %v5337 = vunpack.c.l.b16 %v4053
    %v5338 = vunpack.c.h.b16 %v4053
    %v5339 = vunpack.c.l.b16 %v4054
    %v5340 = vunpack.c.h.b16 %v4054
    %v5341 = vunpack.c.l.b16 %v4055
    %v5342 = vunpack.c.h.b16 %v4055
    %v5343 = vunpack.c.l.b16 %v4056
    %v5344 = vunpack.c.h.b16 %v4056
    %v5345 = vunpack.c.l.b16 %v4057
    %v5346 = vunpack.c.h.b16 %v4057
    %v5347 = vunpack.c.l.b16 %v4058
    %v5348 = vunpack.c.h.b16 %v4058
    %v5349 = vunpack.c.l.b16 %v4059
    %v5350 = vunpack.c.h.b16 %v4059
    %v5351 = vunpack.c.l.b16 %v4060
    %v5352 = vunpack.c.h.b16 %v4060
    %v5353 = vunpack.c.l.b16 %v4061
    %v5354 = vunpack.c.h.b16 %v4061
    %v5355 = vunpack.c.l.b16 %v4062
    %v5356 = vunpack.c.h.b16 %v4062
    %v5357 = vunpack.c.l.b16 %v4063
    %v5358 = vunpack.c.h.b16 %v4063
    %v5359 = vunpack.c.l.b16 %v4064
    %v5360 = vunpack.c.h.b16 %v4064
    %v5361 = vunpack.c.l.b16 %v4065
    %v5362 = vunpack.c.h.b16 %v4065
    %v5363 = vunpack.c.l.b16 %v4066
    %v5364 = vunpack.c.h.b16 %v4066
    %v5365 = vunpack.c.l.b16 %v4067
    %v5366 = vunpack.c.h.b16 %v4067
    %v5367 = vunpack.c.l.b16 %v4068
    %v5368 = vunpack.c.h.b16 %v4068
    %v5369 = vunpack.c.l.b16 %v4069
    %v5370 = vunpack.c.h.b16 %v4069
    %v5371 = vunpack.c.l.b16 %v4070
    %v5372 = vunpack.c.h.b16 %v4070
    %v5373 = vunpack.c.l.b16 %v4071
    %v5374 = vunpack.c.h.b16 %v4071
    %v5375 = vunpack.c.l.b16 %v4072
    %v5376 = vunpack.c.h.b16 %v4072
    %v5377 = vunpack.c.l.b16 %v4073
    %v5378 = vunpack.c.h.b16 %v4073
    %v5379 = vunpack.c.l.b16 %v4074
    %v5380 = vunpack.c.h.b16 %v4074
    %v5381 = vunpack.c.l.b16 %v4075
    %v5382 = vunpack.c.h.b16 %v4075
    %v5383 = vunpack.c.l.b16 %v4076
    %v5384 = vunpack.c.h.b16 %v4076
    %v5385 = vunpack.c.l.b16 %v4077
    %v5386 = vunpack.c.h.b16 %v4077
    %v5387 = vunpack.c.l.b16 %v4078
    %v5388 = vunpack.c.h.b16 %v4078
    %v5389 = vunpack.c.l.b16 %v4079
    %v5390 = vunpack.c.h.b16 %v4079
    %v5391 = vunpack.c.l.b16 %v4080
    %v5392 = vunpack.c.h.b16 %v4080
    %v5393 = vunpack.c.l.b16 %v4081
    %v5394 = vunpack.c.h.b16 %v4081
    %v5395 = vunpack.c.l.b16 %v4082
    %v5396 = vunpack.c.h.b16 %v4082
    %v5397 = vunpack.c.l.b16 %v4083
    %v5398 = vunpack.c.h.b16 %v4083
    %v5399 = vunpack.c.l.b16 %v4084
    %v5400 = vunpack.c.h.b16 %v4084
    %v5401 = vunpack.c.l.b16 %v4085
    %v5402 = vunpack.c.h.b16 %v4085
    %v5403 = vunpack.c.l.b16 %v4086
    %v5404 = vunpack.c.h.b16 %v4086
    %v5405 = vunpack.c.l.b16 %v4087
    %v5406 = vunpack.c.h.b16 %v4087
    %v5407 = vunpack.c.l.b16 %v4088
    %v5408 = vunpack.c.h.b16 %v4088
    %v5409 = vunpack.c.l.b16 %v4089
    %v5410 = vunpack.c.h.b16 %v4089
    %v5411 = vunpack.c.l.b16 %v4090
    %v5412 = vunpack.c.h.b16 %v4090
    %v5413 = vunpack.c.l.b16 %v4091
    %v5414 = vunpack.c.h.b16 %v4091
    %v5415 = vunpack.c.l.b16 %v4092
    %v5416 = vunpack.c.h.b16 %v4092
    %v5417 = vunpack.c.l.b16 %v4093
    %v5418 = vunpack.c.h.b16 %v4093
    %v5419 = vunpack.c.l.b16 %v4094
    %v5420 = vunpack.c.h.b16 %v4094
    %v5421 = vunpack.c.l.b16 %v4095
    %v5422 = vunpack.c.h.b16 %v4095
    %v5423 = vunpack.c.l.b16 %v4096
    %v5424 = vunpack.c.h.b16 %v4096
    %v5425 = vunpack.c.l.b16 %v4097
    %v5426 = vunpack.c.h.b16 %v4097
    %v5427 = vunpack.c.l.b16 %v4098
    %v5428 = vunpack.c.h.b16 %v4098
    %v5429 = vunpack.c.l.b16 %v4099
    %v5430 = vunpack.c.h.b16 %v4099
    %v5431 = vunpack.c.l.b16 %v4100
    %v5432 = vunpack.c.h.b16 %v4100
    %v5433 = vunpack.c.l.b16 %v4101
    %v5434 = vunpack.c.h.b16 %v4101
    %v5435 = vunpack.c.l.b16 %v4102
    %v5436 = vunpack.c.h.b16 %v4102
    %v5437 = vunpack.c.l.b16 %v4103
    %v5438 = vunpack.c.h.b16 %v4103
    %v5439 = vunpack.c.l.b16 %v4104
    %v5440 = vunpack.c.h.b16 %v4104
    %v5441 = vunpack.c.l.b16 %v4105
    %v5442 = vunpack.c.h.b16 %v4105
    %v5443 = vunpack.c.l.b16 %v4106
    %v5444 = vunpack.c.h.b16 %v4106
    %v5445 = vunpack.c.l.b16 %v4107
    %v5446 = vunpack.c.h.b16 %v4107
    %v5447 = vunpack.c.l.b16 %v4108
    %v5448 = vunpack.c.h.b16 %v4108
    %v5449 = vunpack.c.l.b16 %v4109
    %v5450 = vunpack.c.h.b16 %v4109
    %v5451 = vunpack.c.l.b16 %v4110
    %v5452 = vunpack.c.h.b16 %v4110
    %v5453 = vunpack.c.l.b16 %v4111
    %v5454 = vunpack.c.h.b16 %v4111
    %v5455 = vunpack.c.l.b16 %v4112
    %v5456 = vunpack.c.h.b16 %v4112
    %v5457 = vunpack.c.l.b16 %v4113
    %v5458 = vunpack.c.h.b16 %v4113
    %v5459 = vunpack.c.l.b16 %v4114
    %v5460 = vunpack.c.h.b16 %v4114
    %v5461 = vunpack.c.l.b16 %v4115
    %v5462 = vunpack.c.h.b16 %v4115
    %v5463 = vunpack.c.l.b16 %v4116
    %v5464 = vunpack.c.h.b16 %v4116
    %v5465 = vunpack.c.l.b16 %v4117
    %v5466 = vunpack.c.h.b16 %v4117
    %v5467 = vunpack.c.l.b16 %v4118
    %v5468 = vunpack.c.h.b16 %v4118
    %v5469 = vunpack.c.l.b16 %v4119
    %v5470 = vunpack.c.h.b16 %v4119
    %v5471 = vunpack.c.l.b16 %v4120
    %v5472 = vunpack.c.h.b16 %v4120
    %v5473 = vunpack.c.l.b16 %v4121
    %v5474 = vunpack.c.h.b16 %v4121
    %v5475 = vunpack.c.l.b16 %v4122
    %v5476 = vunpack.c.h.b16 %v4122
    %v5477 = vunpack.c.l.b16 %v4123
    %v5478 = vunpack.c.h.b16 %v4123
    %v5479 = vunpack.c.l.b16 %v4124
    %v5480 = vunpack.c.h.b16 %v4124
    %v5481 = vunpack.c.l.b16 %v4125
    %v5482 = vunpack.c.h.b16 %v4125
    %v5483 = vunpack.c.l.b16 %v4126
    %v5484 = vunpack.c.h.b16 %v4126
    %v5485 = vunpack.c.l.b16 %v4127
    %v5486 = vunpack.c.h.b16 %v4127
    %v5487 = vunpack.c.l.b16 %v4128
    %v5488 = vunpack.c.h.b16 %v4128
    %v5489 = vunpack.c.l.b16 %v4129
    %v5490 = vunpack.c.h.b16 %v4129
    %v5491 = vunpack.c.l.b16 %v4130
    %v5492 = vunpack.c.h.b16 %v4130
    %v5493 = vunpack.c.l.b16 %v4131
    %v5494 = vunpack.c.h.b16 %v4131
    %v5495 = vunpack.c.l.b16 %v4132
    %v5496 = vunpack.c.h.b16 %v4132
    %v5497 = vunpack.c.l.b16 %v4133
    %v5498 = vunpack.c.h.b16 %v4133
    %v5499 = vunpack.c.l.b16 %v4134
    %v5500 = vunpack.c.h.b16 %v4134
    %v5501 = vunpack.c.l.b16 %v4135
    %v5502 = vunpack.c.h.b16 %v4135
    %v5503 = vunpack.c.l.b16 %v4136
    %v5504 = vunpack.c.h.b16 %v4136
    %v5505 = vunpack.c.l.b16 %v4137
    %v5506 = vunpack.c.h.b16 %v4137
    %v5507 = vunpack.c.l.b16 %v4138
    %v5508 = vunpack.c.h.b16 %v4138
    %v5509 = vunpack.c.l.b16 %v4139
    %v5510 = vunpack.c.h.b16 %v4139
    %v5511 = vunpack.c.l.b16 %v4140
    %v5512 = vunpack.c.h.b16 %v4140
    %v5513 = vunpack.c.l.b16 %v4141
    %v5514 = vunpack.c.h.b16 %v4141
    %v5515 = vunpack.c.l.b16 %v4142
    %v5516 = vunpack.c.h.b16 %v4142
    %v5517 = vunpack.c.l.b16 %v4143
    %v5518 = vunpack.c.h.b16 %v4143
    %v5519 = vunpack.c.l.b16 %v4144
    %v5520 = vunpack.c.h.b16 %v4144
    %v5521 = vunpack.c.l.b16 %v4145
    %v5522 = vunpack.c.h.b16 %v4145
    %v5523 = vunpack.c.l.b16 %v4146
    %v5524 = vunpack.c.h.b16 %v4146
    %v5525 = vunpack.c.l.b16 %v4147
    %v5526 = vunpack.c.h.b16 %v4147
    %v5527 = vunpack.c.l.b16 %v4148
    %v5528 = vunpack.c.h.b16 %v4148
    %v5529 = vunpack.c.l.b16 %v4149
    %v5530 = vunpack.c.h.b16 %v4149
    %v5531 = vunpack.c.l.b16 %v4150
    %v5532 = vunpack.c.h.b16 %v4150
    %v5533 = vunpack.c.l.b16 %v4151
    %v5534 = vunpack.c.h.b16 %v4151
    %v5535 = vunpack.c.l.b16 %v4152
    %v5536 = vunpack.c.h.b16 %v4152
    %v5537 = vunpack.c.l.b16 %v4153
    %v5538 = vunpack.c.h.b16 %v4153
    %v5539 = vunpack.c.l.b16 %v4154
    %v5540 = vunpack.c.h.b16 %v4154
    %v5541 = vunpack.c.l.b16 %v4155
    %v5542 = vunpack.c.h.b16 %v4155
    %v5543 = vunpack.c.l.b16 %v4156
    %v5544 = vunpack.c.h.b16 %v4156
    %v5545 = vunpack.c.l.b16 %v4157
    %v5546 = vunpack.c.h.b16 %v4157
    %v5547 = vunpack.c.l.b16 %v4158
    %v5548 = vunpack.c.h.b16 %v4158
    %v5549 = vunpack.c.l.b16 %v4159
    %v5550 = vunpack.c.h.b16 %v4159
    %v5551 = vunpack.c.l.b16 %v4160
    %v5552 = vunpack.c.h.b16 %v4160
    %v5553 = vunpack.c.l.b16 %v4161
    %v5554 = vunpack.c.h.b16 %v4161
    %v5555 = vunpack.c.l.b16 %v4162
    %v5556 = vunpack.c.h.b16 %v4162
    %v5557 = vunpack.c.l.b16 %v4163
    %v5558 = vunpack.c.h.b16 %v4163
    %v5559 = vunpack.c.l.b16 %v4164
    %v5560 = vunpack.c.h.b16 %v4164
    %v5561 = vunpack.c.l.b16 %v4165
    %v5562 = vunpack.c.h.b16 %v4165
    %v5563 = vunpack.c.l.b16 %v4166
    %v5564 = vunpack.c.h.b16 %v4166
    %v5565 = vunpack.c.l.b16 %v4167
    %v5566 = vunpack.c.h.b16 %v4167
    %v5567 = vunpack.c.l.b16 %v4168
    %v5568 = vunpack.c.h.b16 %v4168
    %v5569 = vunpack.c.l.b16 %v4169
    %v5570 = vunpack.c.h.b16 %v4169
    %v5571 = vunpack.c.l.b16 %v4170
    %v5572 = vunpack.c.h.b16 %v4170
    %v5573 = vunpack.c.l.b16 %v4171
    %v5574 = vunpack.c.h.b16 %v4171
    %v5575 = vunpack.c.l.b16 %v4172
    %v5576 = vunpack.c.h.b16 %v4172
    %v5577 = vunpack.c.l.b16 %v4173
    %v5578 = vunpack.c.h.b16 %v4173
    %v5579 = vunpack.c.l.b16 %v4174
    %v5580 = vunpack.c.h.b16 %v4174
    %v5581 = vunpack.c.l.b16 %v4175
    %v5582 = vunpack.c.h.b16 %v4175
    %v5583 = vunpack.c.l.b16 %v4176
    %v5584 = vunpack.c.h.b16 %v4176
    %v5585 = vunpack.c.l.b16 %v4177
    %v5586 = vunpack.c.h.b16 %v4177
    %v5587 = vunpack.c.l.b16 %v4178
    %v5588 = vunpack.c.h.b16 %v4178
    %v5589 = vunpack.c.l.b16 %v4179
    %v5590 = vunpack.c.h.b16 %v4179
    %v5591 = vunpack.c.l.b16 %v4180
    %v5592 = vunpack.c.h.b16 %v4180
    %v5593 = vunpack.c.l.b16 %v4181
    %v5594 = vunpack.c.h.b16 %v4181
    %v5595 = vunpack.c.l.b16 %v4182
    %v5596 = vunpack.c.h.b16 %v4182
    %v5597 = vunpack.c.l.b16 %v4183
    %v5598 = vunpack.c.h.b16 %v4183
    %v5599 = vunpack.c.l.b16 %v4184
    %v5600 = vunpack.c.h.b16 %v4184
    %v5601 = vunpack.c.l.b16 %v4185
    %v5602 = vunpack.c.h.b16 %v4185
    %v5603 = vunpack.c.l.b16 %v4186
    %v5604 = vunpack.c.h.b16 %v4186
    %v5605 = vunpack.c.l.b16 %v4187
    %v5606 = vunpack.c.h.b16 %v4187
    %v5607 = vunpack.c.l.b16 %v4188
    %v5608 = vunpack.c.h.b16 %v4188
    %v5609 = vunpack.c.l.b16 %v4189
    %v5610 = vunpack.c.h.b16 %v4189
    %v5611 = vunpack.c.l.b16 %v4190
    %v5612 = vunpack.c.h.b16 %v4190
    %v5613 = vunpack.c.l.b16 %v4191
    %v5614 = vunpack.c.h.b16 %v4191
    %v5615 = vunpack.c.l.b16 %v4192
    %v5616 = vunpack.c.h.b16 %v4192
    %v5617 = vunpack.c.l.b16 %v4193
    %v5618 = vunpack.c.h.b16 %v4193
    %v5619 = vunpack.c.l.b16 %v4194
    %v5620 = vunpack.c.h.b16 %v4194
    %v5621 = vunpack.c.l.b16 %v4195
    %v5622 = vunpack.c.h.b16 %v4195
    %v5623 = vunpack.c.l.b16 %v4196
    %v5624 = vunpack.c.h.b16 %v4196
    %v5625 = vunpack.c.l.b16 %v4197
    %v5626 = vunpack.c.h.b16 %v4197
    %v5627 = vunpack.c.l.b16 %v4198
    %v5628 = vunpack.c.h.b16 %v4198
    %v5629 = vunpack.c.l.b16 %v4199
    %v5630 = vunpack.c.h.b16 %v4199
    %v5631 = vunpack.c.l.b16 %v4200
    %v5632 = vunpack.c.h.b16 %v4200
    %v5633 = vunpack.c.l.b16 %v4201
    %v5634 = vunpack.c.h.b16 %v4201
    %v5635 = vunpack.c.l.b16 %v4202
    %v5636 = vunpack.c.h.b16 %v4202
    %v5637 = vunpack.c.l.b16 %v4203
    %v5638 = vunpack.c.h.b16 %v4203
    %v5639 = vunpack.c.l.b16 %v4204
    %v5640 = vunpack.c.h.b16 %v4204
    %v5641 = vunpack.c.l.b16 %v4205
    %v5642 = vunpack.c.h.b16 %v4205
    %v5643 = vunpack.c.l.b16 %v4206
    %v5644 = vunpack.c.h.b16 %v4206
    %v5645 = vunpack.c.l.b16 %v4207
    %v5646 = vunpack.c.h.b16 %v4207
    %v5647 = vunpack.c.l.b16 %v4208
    %v5648 = vunpack.c.h.b16 %v4208
    %v5649 = vunpack.c.l.b16 %v4209
    %v5650 = vunpack.c.h.b16 %v4209
    %v5651 = vunpack.c.l.b16 %v4210
    %v5652 = vunpack.c.h.b16 %v4210
    %v5653 = vunpack.c.l.b16 %v4211
    %v5654 = vunpack.c.h.b16 %v4211
    %v5655 = vunpack.c.l.b16 %v4212
    %v5656 = vunpack.c.h.b16 %v4212
    %v5657 = vunpack.c.l.b16 %v4213
    %v5658 = vunpack.c.h.b16 %v4213
    %v5659 = vunpack.c.l.b16 %v4214
    %v5660 = vunpack.c.h.b16 %v4214
    %v5661 = vunpack.c.l.b16 %v4215
    %v5662 = vunpack.c.h.b16 %v4215
    %v5663 = vunpack.c.l.b16 %v4216
    %v5664 = vunpack.c.h.b16 %v4216
    %v5665 = vunpack.c.l.b16 %v4217
    %v5666 = vunpack.c.h.b16 %v4217
    %v5667 = vunpack.c.l.b16 %v4218
    %v5668 = vunpack.c.h.b16 %v4218
    %v5669 = vunpack.c.l.b16 %v4219
    %v5670 = vunpack.c.h.b16 %v4219
    %v5671 = vunpack.c.l.b16 %v4220
    %v5672 = vunpack.c.h.b16 %v4220
    %v5673 = vunpack.c.l.b16 %v4221
    %v5674 = vunpack.c.h.b16 %v4221
    %v5675 = vunpack.c.l.b16 %v4222
    %v5676 = vunpack.c.h.b16 %v4222
    %v5677 = vunpack.c.l.b16 %v4223
    %v5678 = vunpack.c.h.b16 %v4223
    %v5679 = vunpack.c.l.b16 %v4224
    %v5680 = vunpack.c.h.b16 %v4224
    %v5681 = vunpack.c.l.b16 %v4225
    %v5682 = vunpack.c.h.b16 %v4225
    %v5683 = vunpack.c.l.b16 %v4226
    %v5684 = vunpack.c.h.b16 %v4226
    %v5685 = vunpack.c.l.b16 %v4227
    %v5686 = vunpack.c.h.b16 %v4227
    %v5687 = vunpack.c.l.b16 %v4228
    %v5688 = vunpack.c.h.b16 %v4228
    %v5689 = vunpack.c.l.b16 %v4229
    %v5690 = vunpack.c.h.b16 %v4229
    %v5691 = vunpack.c.l.b16 %v4230
    %v5692 = vunpack.c.h.b16 %v4230
    %v5693 = vunpack.c.l.b16 %v4231
    %v5694 = vunpack.c.h.b16 %v4231
    %v5695 = vunpack.c.l.b16 %v4232
    %v5696 = vunpack.c.h.b16 %v4232
    %v5697 = vunpack.c.l.b16 %v4233
    %v5698 = vunpack.c.h.b16 %v4233
    %v5699 = vunpack.c.l.b16 %v4234
    %v5700 = vunpack.c.h.b16 %v4234
    %v5701 = vunpack.c.l.b16 %v4235
    %v5702 = vunpack.c.h.b16 %v4235
    %v5703 = vunpack.c.l.b16 %v4236
    %v5704 = vunpack.c.h.b16 %v4236
    %v5705 = vunpack.c.l.b16 %v4237
    %v5706 = vunpack.c.h.b16 %v4237
    %v5707 = vunpack.c.l.b16 %v4238
    %v5708 = vunpack.c.h.b16 %v4238
    %v5709 = vunpack.c.l.b16 %v4239
    %v5710 = vunpack.c.h.b16 %v4239
    %v5711 = vunpack.c.l.b16 %v4240
    %v5712 = vunpack.c.h.b16 %v4240
    %v5713 = vunpack.c.l.b16 %v4241
    %v5714 = vunpack.c.h.b16 %v4241
    %v5715 = vunpack.c.l.b16 %v4242
    %v5716 = vunpack.c.h.b16 %v4242
    %v5717 = vunpack.c.l.b16 %v4243
    %v5718 = vunpack.c.h.b16 %v4243
    %v5719 = vunpack.c.l.b16 %v4244
    %v5720 = vunpack.c.h.b16 %v4244
    %v5721 = vunpack.c.l.b16 %v4245
    %v5722 = vunpack.c.h.b16 %v4245
    %v5723 = vunpack.c.l.b16 %v4246
    %v5724 = vunpack.c.h.b16 %v4246
    %v5725 = vunpack.c.l.b16 %v4247
    %v5726 = vunpack.c.h.b16 %v4247
    %v5727 = vunpack.c.l.b16 %v4248
    %v5728 = vunpack.c.h.b16 %v4248
    %v5729 = vunpack.c.l.b16 %v4249
    %v5730 = vunpack.c.h.b16 %v4249
    %v5731 = vunpack.c.l.b16 %v4250
    %v5732 = vunpack.c.h.b16 %v4250
    %v5733 = vunpack.c.l.b16 %v4251
    %v5734 = vunpack.c.h.b16 %v4251
    %v5735 = vunpack.c.l.b16 %v4252
    %v5736 = vunpack.c.h.b16 %v4252
    %v5737 = vunpack.c.l.b16 %v4253
    %v5738 = vunpack.c.h.b16 %v4253
    %v5739 = vunpack.c.l.b16 %v4254
    %v5740 = vunpack.c.h.b16 %v4254
    %v5741 = vunpack.c.l.b16 %v4255
    %v5742 = vunpack.c.h.b16 %v4255
    %v5743 = vunpack.c.l.b16 %v4256
    %v5744 = vunpack.c.h.b16 %v4256
    %v5745 = vunpack.c.l.b16 %v4257
    %v5746 = vunpack.c.h.b16 %v4257
    %v5747 = vunpack.c.l.b16 %v4258
    %v5748 = vunpack.c.h.b16 %v4258
    %v5749 = vunpack.c.l.b16 %v4259
    %v5750 = vunpack.c.h.b16 %v4259
    %v5751 = vunpack.c.l.b16 %v4260
    %v5752 = vunpack.c.h.b16 %v4260
    %v5753 = vunpack.c.l.b16 %v4261
    %v5754 = vunpack.c.h.b16 %v4261
    %v5755 = vunpack.c.l.b16 %v4262
    %v5756 = vunpack.c.h.b16 %v4262
    %v5757 = vunpack.c.l.b16 %v4263
    %v5758 = vunpack.c.h.b16 %v4263
    %v5759 = vunpack.c.l.b16 %v4264
    %v5760 = vunpack.c.h.b16 %v4264
    %v5761 = vunpack.c.l.b16 %v4265
    %v5762 = vunpack.c.h.b16 %v4265
    %v5763 = vunpack.c.l.b16 %v4266
    %v5764 = vunpack.c.h.b16 %v4266
    %v5765 = vunpack.c.l.b16 %v4267
    %v5766 = vunpack.c.h.b16 %v4267
    %v5767 = vunpack.c.l.b16 %v4268
    %v5768 = vunpack.c.h.b16 %v4268
    %v5769 = vunpack.c.l.b16 %v4269
    %v5770 = vunpack.c.h.b16 %v4269
    %v5771 = vunpack.c.l.b16 %v4270
    %v5772 = vunpack.c.h.b16 %v4270
    %v5773 = vunpack.c.l.b16 %v4271
    %v5774 = vunpack.c.h.b16 %v4271
    %v5775 = vunpack.c.l.b16 %v4272
    %v5776 = vunpack.c.h.b16 %v4272
    %v5777 = vunpack.c.l.b16 %v4273
    %v5778 = vunpack.c.h.b16 %v4273
    %v5779 = vunpack.c.l.b16 %v4274
    %v5780 = vunpack.c.h.b16 %v4274
    %v5781 = vunpack.c.l.b16 %v4275
    %v5782 = vunpack.c.h.b16 %v4275
    %v5783 = vunpack.c.l.b16 %v4276
    %v5784 = vunpack.c.h.b16 %v4276
    %v5785 = vunpack.c.l.b16 %v4277
    %v5786 = vunpack.c.h.b16 %v4277
    %v5787 = vunpack.c.l.b16 %v4278
    %v5788 = vunpack.c.h.b16 %v4278
    %v5789 = vunpack.c.l.b16 %v4279
    %v5790 = vunpack.c.h.b16 %v4279
    %v5791 = vunpack.c.l.b16 %v4280
    %v5792 = vunpack.c.h.b16 %v4280
    %v5793 = vunpack.c.l.b16 %v4281
    %v5794 = vunpack.c.h.b16 %v4281
    %v5795 = vunpack.c.l.b16 %v4282
    %v5796 = vunpack.c.h.b16 %v4282
    %v5797 = vunpack.c.l.b16 %v4283
    %v5798 = vunpack.c.h.b16 %v4283
    %v5799 = vunpack.c.l.b16 %v4284
    %v5800 = vunpack.c.h.b16 %v4284
    %v5801 = vunpack.c.l.b16 %v4285
    %v5802 = vunpack.c.h.b16 %v4285
    %v5803 = vunpack.c.l.b16 %v4286
    %v5804 = vunpack.c.h.b16 %v4286
    %v5805 = vunpack.c.l.b16 %v4287
    %v5806 = vunpack.c.h.b16 %v4287
    %v5807 = vunpack.c.l.b16 %v4288
    %v5808 = vunpack.c.h.b16 %v4288
    %v5809 = vunpack.c.l.b16 %v4289
    %v5810 = vunpack.c.h.b16 %v4289
    %v5811 = vunpack.c.l.b16 %v4290
    %v5812 = vunpack.c.h.b16 %v4290
    %v5813 = vunpack.c.l.b16 %v4291
    %v5814 = vunpack.c.h.b16 %v4291
    %v5815 = vunpack.c.l.b16 %v4292
    %v5816 = vunpack.c.h.b16 %v4292
    %v5817 = vunpack.c.l.b16 %v4293
    %v5818 = vunpack.c.h.b16 %v4293
    %v5819 = vunpack.c.l.b16 %v4294
    %v5820 = vunpack.c.h.b16 %v4294
    %v5821 = vunpack.c.l.b16 %v4295
    %v5822 = vunpack.c.h.b16 %v4295
    %v5823 = vunpack.c.l.b16 %v4296
    %v5824 = vunpack.c.h.b16 %v4296
    %v5825 = vunpack.c.l.b16 %v4297
    %v5826 = vunpack.c.h.b16 %v4297
    %v5827 = vunpack.c.l.b16 %v4298
    %v5828 = vunpack.c.h.b16 %v4298
    %v5829 = vunpack.c.l.b16 %v4299
    %v5830 = vunpack.c.h.b16 %v4299
    %v5831 = vunpack.c.l.b16 %v4300
    %v5832 = vunpack.c.h.b16 %v4300
    %v5833 = vunpack.c.l.b16 %v4301
    %v5834 = vunpack.c.h.b16 %v4301
    %v5835 = vunpack.c.l.b16 %v4302
    %v5836 = vunpack.c.h.b16 %v4302
    %v5837 = vunpack.c.l.b16 %v4303
    %v5838 = vunpack.c.h.b16 %v4303
    %v5839 = vunpack.c.l.b16 %v4304
    %v5840 = vunpack.c.h.b16 %v4304
    %v5841 = vunpack.c.l.b16 %v4305
    %v5842 = vunpack.c.h.b16 %v4305
    %v5843 = vunpack.c.l.b16 %v4306
    %v5844 = vunpack.c.h.b16 %v4306
    %v5845 = vunpack.c.l.b16 %v4307
    %v5846 = vunpack.c.h.b16 %v4307
    %v5847 = vunpack.c.l.b16 %v4308
    %v5848 = vunpack.c.h.b16 %v4308
    %v5849 = vunpack.c.l.b16 %v4309
    %v5850 = vunpack.c.h.b16 %v4309
    %v5851 = vunpack.c.l.b16 %v4310
    %v5852 = vunpack.c.h.b16 %v4310
    %v5853 = vunpack.c.l.b16 %v4311
    %v5854 = vunpack.c.h.b16 %v4311
    %v5855 = vunpack.c.l.b16 %v4312
    %v5856 = vunpack.c.h.b16 %v4312
    %v5857 = vunpack.c.l.b16 %v4313
    %v5858 = vunpack.c.h.b16 %v4313
    %v5859 = vunpack.c.l.b16 %v4314
    %v5860 = vunpack.c.h.b16 %v4314
    %v5861 = vunpack.c.l.b16 %v4315
    %v5862 = vunpack.c.h.b16 %v4315
    %v5863 = vunpack.c.l.b16 %v4316
    %v5864 = vunpack.c.h.b16 %v4316
    %v5865 = vunpack.c.l.b16 %v4317
    %v5866 = vunpack.c.h.b16 %v4317
    %v5867 = vunpack.c.l.b16 %v4318
    %v5868 = vunpack.c.h.b16 %v4318
    %v5869 = vunpack.c.l.b16 %v4319
    %v5870 = vunpack.c.h.b16 %v4319
    %v5871 = vunpack.c.l.b16 %v4320
    %v5872 = vunpack.c.h.b16 %v4320
    %v5873 = vunpack.c.l.b16 %v4321
    %v5874 = vunpack.c.h.b16 %v4321
    %v5875 = vunpack.c.l.b16 %v4322
    %v5876 = vunpack.c.h.b16 %v4322
    %v5877 = vunpack.c.l.b16 %v4323
    %v5878 = vunpack.c.h.b16 %v4323
    %v5879 = vunpack.c.l.b16 %v4324
    %v5880 = vunpack.c.h.b16 %v4324
    %v5881 = vunpack.c.l.b16 %v4325
    %v5882 = vunpack.c.h.b16 %v4325
    %v5883 = vunpack.c.l.b16 %v4326
    %v5884 = vunpack.c.h.b16 %v4326
    %v5885 = vunpack.c.l.b16 %v4327
    %v5886 = vunpack.c.h.b16 %v4327
    %v5887 = vunpack.c.l.b16 %v4328
    %v5888 = vunpack.c.h.b16 %v4328
    %v5889 = vunpack.c.l.b16 %v4329
    %v5890 = vunpack.c.h.b16 %v4329
    %v5891 = vunpack.c.l.b16 %v4330
    %v5892 = vunpack.c.h.b16 %v4330
    %v5893 = vunpack.c.l.b16 %v4331
    %v5894 = vunpack.c.h.b16 %v4331
    %v5895 = vunpack.c.l.b16 %v4332
    %v5896 = vunpack.c.h.b16 %v4332
    %v5897 = vunpack.c.l.b16 %v4333
    %v5898 = vunpack.c.h.b16 %v4333
    %v5899 = vunpack.c.l.b16 %v4334
    %v5900 = vunpack.c.h.b16 %v4334
    %v5901 = vunpack.c.l.b16 %v4335
    %v5902 = vunpack.c.h.b16 %v4335
    %v5903 = vunpack.c.l.b16 %v4336
    %v5904 = vunpack.c.h.b16 %v4336
    %v5905 = vunpack.c.l.b16 %v4337
    %v5906 = vunpack.c.h.b16 %v4337
    %v5907 = vunpack.c.l.b16 %v4338
    %v5908 = vunpack.c.h.b16 %v4338
    %v5909 = vunpack.c.l.b16 %v4339
    %v5910 = vunpack.c.h.b16 %v4339
    %v5911 = vunpack.c.l.b16 %v4340
    %v5912 = vunpack.c.h.b16 %v4340
    %v5913 = vunpack.c.l.b16 %v4341
    %v5914 = vunpack.c.h.b16 %v4341
    %v5915 = vunpack.c.l.b16 %v4342
    %v5916 = vunpack.c.h.b16 %v4342
    %v5917 = vunpack.c.l.b16 %v4343
    %v5918 = vunpack.c.h.b16 %v4343
    %v5919 = vunpack.c.l.b16 %v4344
    %v5920 = vunpack.c.h.b16 %v4344
    %v5921 = vunpack.c.l.b16 %v4345
    %v5922 = vunpack.c.h.b16 %v4345
    %v5923 = vunpack.c.l.b16 %v4346
    %v5924 = vunpack.c.h.b16 %v4346
    %v5925 = vpack.c.b16 %v4909, %v4901
    %v5926 = vpack.c.b16 %v4910, %v4902
    %v5927 = vpack.c.b16 %v4911, %v4903
    %v5928 = vpack.c.b16 %v4912, %v4904
    %v5929 = vpack.c.b16 %v4913, %v4905
    %v5930 = vpack.c.b16 %v4914, %v4906
    %v5931 = vpack.c.b16 %v4915, %v4907
    %v5932 = vpack.c.b16 %v4916, %v4908
    %v5933 = vpack.c.b16 %v4925, %v4917
    %v5934 = vpack.c.b16 %v4926, %v4918
    %v5935 = vpack.c.b16 %v4927, %v4919
    %v5936 = vpack.c.b16 %v4928, %v4920
    %v5937 = vpack.c.b16 %v4929, %v4921
    %v5938 = vpack.c.b16 %v4930, %v4922
    %v5939 = vpack.c.b16 %v4931, %v4923
    %v5940 = vpack.c.b16 %v4932, %v4924
    %v5941 = vpack.c.b16 %v4941, %v4933
    %v5942 = vpack.c.b16 %v4942, %v4934
    %v5943 = vpack.c.b16 %v4943, %v4935
    %v5944 = vpack.c.b16 %v4944, %v4936
    %v5945 = vpack.c.b16 %v4945, %v4937
    %v5946 = vpack.c.b16 %v4946, %v4938
    %v5947 = vpack.c.b16 %v4947, %v4939
    %v5948 = vpack.c.b16 %v4948, %v4940
    %v5949 = vpack.c.b16 %v4957, %v4949
    %v5950 = vpack.c.b16 %v4958, %v4950
    %v5951 = vpack.c.b16 %v4959, %v4951
    %v5952 = vpack.c.b16 %v4960, %v4952
    %v5953 = vpack.c.b16 %v4961, %v4953
    %v5954 = vpack.c.b16 %v4962, %v4954
    %v5955 = vpack.c.b16 %v4963, %v4955
    %v5956 = vpack.c.b16 %v4964, %v4956
    %v5957 = vpack.c.b16 %v4973, %v4965
    %v5958 = vpack.c.b16 %v4974, %v4966
    %v5959 = vpack.c.b16 %v4975, %v4967
    %v5960 = vpack.c.b16 %v4976, %v4968
    %v5961 = vpack.c.b16 %v4977, %v4969
    %v5962 = vpack.c.b16 %v4978, %v4970
    %v5963 = vpack.c.b16 %v4979, %v4971
    %v5964 = vpack.c.b16 %v4980, %v4972
    %v5965 = vpack.c.b16 %v4989, %v4981
    %v5966 = vpack.c.b16 %v4990, %v4982
    %v5967 = vpack.c.b16 %v4991, %v4983
    %v5968 = vpack.c.b16 %v4992, %v4984
    %v5969 = vpack.c.b16 %v4993, %v4985
    %v5970 = vpack.c.b16 %v4994, %v4986
    %v5971 = vpack.c.b16 %v4995, %v4987
    %v5972 = vpack.c.b16 %v4996, %v4988
    %v5973 = vpack.c.b16 %v5005, %v4997
    %v5974 = vpack.c.b16 %v5006, %v4998
    %v5975 = vpack.c.b16 %v5007, %v4999
    %v5976 = vpack.c.b16 %v5008, %v5000
    %v5977 = vpack.c.b16 %v5009, %v5001
    %v5978 = vpack.c.b16 %v5010, %v5002
    %v5979 = vpack.c.b16 %v5011, %v5003
    %v5980 = vpack.c.b16 %v5012, %v5004
    %v5981 = vpack.c.b16 %v5021, %v5013
    %v5982 = vpack.c.b16 %v5022, %v5014
    %v5983 = vpack.c.b16 %v5023, %v5015
    %v5984 = vpack.c.b16 %v5024, %v5016
    %v5985 = vpack.c.b16 %v5025, %v5017
    %v5986 = vpack.c.b16 %v5026, %v5018
    %v5987 = vpack.c.b16 %v5027, %v5019
    %v5988 = vpack.c.b16 %v5028, %v5020
    %v5989 = vpack.c.b16 %v5037, %v5029
    %v5990 = vpack.c.b16 %v5038, %v5030
    %v5991 = vpack.c.b16 %v5039, %v5031
    %v5992 = vpack.c.b16 %v5040, %v5032
    %v5993 = vpack.c.b16 %v5041, %v5033
    %v5994 = vpack.c.b16 %v5042, %v5034
    %v5995 = vpack.c.b16 %v5043, %v5035
    %v5996 = vpack.c.b16 %v5044, %v5036
    %v5997 = vpack.c.b16 %v5053, %v5045
    %v5998 = vpack.c.b16 %v5054, %v5046
    %v5999 = vpack.c.b16 %v5055, %v5047
    %v6000 = vpack.c.b16 %v5056, %v5048
    %v6001 = vpack.c.b16 %v5057, %v5049
    %v6002 = vpack.c.b16 %v5058, %v5050
    %v6003 = vpack.c.b16 %v5059, %v5051
    %v6004 = vpack.c.b16 %v5060, %v5052
    %v6005 = vpack.c.b16 %v5069, %v5061
    %v6006 = vpack.c.b16 %v5070, %v5062
    %v6007 = vpack.c.b16 %v5071, %v5063
    %v6008 = vpack.c.b16 %v5072, %v5064
    %v6009 = vpack.c.b16 %v5073, %v5065
    %v6010 = vpack.c.b16 %v5074, %v5066
    %v6011 = vpack.c.b16 %v5075, %v5067
    %v6012 = vpack.c.b16 %v5076, %v5068
    %v6013 = vpack.c.b16 %v5085, %v5077
    %v6014 = vpack.c.b16 %v5086, %v5078
    %v6015 = vpack.c.b16 %v5087, %v5079
    %v6016 = vpack.c.b16 %v5088, %v5080
    %v6017 = vpack.c.b16 %v5089, %v5081
    %v6018 = vpack.c.b16 %v5090, %v5082
    %v6019 = vpack.c.b16 %v5091, %v5083
    %v6020 = vpack.c.b16 %v5092, %v5084
    %v6021 = vpack.c.b16 %v5101, %v5093
    %v6022 = vpack.c.b16 %v5102, %v5094
    %v6023 = vpack.c.b16 %v5103, %v5095
    %v6024 = vpack.c.b16 %v5104, %v5096
    %v6025 = vpack.c.b16 %v5105, %v5097
    %v6026 = vpack.c.b16 %v5106, %v5098
    %v6027 = vpack.c.b16 %v5107, %v5099
    %v6028 = vpack.c.b16 %v5108, %v5100
    %v6029 = vpack.c.b16 %v5117, %v5109
    %v6030 = vpack.c.b16 %v5118, %v5110
    %v6031 = vpack.c.b16 %v5119, %v5111
    %v6032 = vpack.c.b16 %v5120, %v5112
    %v6033 = vpack.c.b16 %v5121, %v5113
    %v6034 = vpack.c.b16 %v5122, %v5114
    %v6035 = vpack.c.b16 %v5123, %v5115
    %v6036 = vpack.c.b16 %v5124, %v5116
    %v6037 = vpack.c.b16 %v5133, %v5125
    %v6038 = vpack.c.b16 %v5134, %v5126
    %v6039 = vpack.c.b16 %v5135, %v5127
    %v6040 = vpack.c.b16 %v5136, %v5128
    %v6041 = vpack.c.b16 %v5137, %v5129
    %v6042 = vpack.c.b16 %v5138, %v5130
    %v6043 = vpack.c.b16 %v5139, %v5131
    %v6044 = vpack.c.b16 %v5140, %v5132
    %v6045 = vpack.c.b16 %v5149, %v5141
    %v6046 = vpack.c.b16 %v5150, %v5142
    %v6047 = vpack.c.b16 %v5151, %v5143
    %v6048 = vpack.c.b16 %v5152, %v5144
    %v6049 = vpack.c.b16 %v5153, %v5145
    %v6050 = vpack.c.b16 %v5154, %v5146
    %v6051 = vpack.c.b16 %v5155, %v5147
    %v6052 = vpack.c.b16 %v5156, %v5148
    %v6053 = vpack.c.b16 %v5165, %v5157
    %v6054 = vpack.c.b16 %v5166, %v5158
    %v6055 = vpack.c.b16 %v5167, %v5159
    %v6056 = vpack.c.b16 %v5168, %v5160
    %v6057 = vpack.c.b16 %v5169, %v5161
    %v6058 = vpack.c.b16 %v5170, %v5162
    %v6059 = vpack.c.b16 %v5171, %v5163
    %v6060 = vpack.c.b16 %v5172, %v5164
    %v6061 = vpack.c.b16 %v5181, %v5173
    %v6062 = vpack.c.b16 %v5182, %v5174
    %v6063 = vpack.c.b16 %v5183, %v5175
    %v6064 = vpack.c.b16 %v5184, %v5176
    %v6065 = vpack.c.b16 %v5185, %v5177
    %v6066 = vpack.c.b16 %v5186, %v5178
    %v6067 = vpack.c.b16 %v5187, %v5179
    %v6068 = vpack.c.b16 %v5188, %v5180
    %v6069 = vpack.c.b16 %v5197, %v5189
    %v6070 = vpack.c.b16 %v5198, %v5190
    %v6071 = vpack.c.b16 %v5199, %v5191
    %v6072 = vpack.c.b16 %v5200, %v5192
    %v6073 = vpack.c.b16 %v5201, %v5193
    %v6074 = vpack.c.b16 %v5202, %v5194
    %v6075 = vpack.c.b16 %v5203, %v5195
    %v6076 = vpack.c.b16 %v5204, %v5196
    %v6077 = vpack.c.b16 %v5213, %v5205
    %v6078 = vpack.c.b16 %v5214, %v5206
    %v6079 = vpack.c.b16 %v5215, %v5207
    %v6080 = vpack.c.b16 %v5216, %v5208
    %v6081 = vpack.c.b16 %v5217, %v5209
    %v6082 = vpack.c.b16 %v5218, %v5210
    %v6083 = vpack.c.b16 %v5219, %v5211
    %v6084 = vpack.c.b16 %v5220, %v5212
    %v6085 = vpack.c.b16 %v5229, %v5221
    %v6086 = vpack.c.b16 %v5230, %v5222
    %v6087 = vpack.c.b16 %v5231, %v5223
    %v6088 = vpack.c.b16 %v5232, %v5224
    %v6089 = vpack.c.b16 %v5233, %v5225
    %v6090 = vpack.c.b16 %v5234, %v5226
    %v6091 = vpack.c.b16 %v5235, %v5227
    %v6092 = vpack.c.b16 %v5236, %v5228
    %v6093 = vpack.c.b16 %v5245, %v5237
    %v6094 = vpack.c.b16 %v5246, %v5238
    %v6095 = vpack.c.b16 %v5247, %v5239
    %v6096 = vpack.c.b16 %v5248, %v5240
    %v6097 = vpack.c.b16 %v5249, %v5241
    %v6098 = vpack.c.b16 %v5250, %v5242
    %v6099 = vpack.c.b16 %v5251, %v5243
    %v6100 = vpack.c.b16 %v5252, %v5244
    %v6101 = vpack.c.b16 %v5261, %v5253
    %v6102 = vpack.c.b16 %v5262, %v5254
    %v6103 = vpack.c.b16 %v5263, %v5255
    %v6104 = vpack.c.b16 %v5264, %v5256
    %v6105 = vpack.c.b16 %v5265, %v5257
    %v6106 = vpack.c.b16 %v5266, %v5258
    %v6107 = vpack.c.b16 %v5267, %v5259
    %v6108 = vpack.c.b16 %v5268, %v5260
    %v6109 = vpack.c.b16 %v5277, %v5269
    %v6110 = vpack.c.b16 %v5278, %v5270
    %v6111 = vpack.c.b16 %v5279, %v5271
    %v6112 = vpack.c.b16 %v5280, %v5272
    %v6113 = vpack.c.b16 %v5281, %v5273
    %v6114 = vpack.c.b16 %v5282, %v5274
    %v6115 = vpack.c.b16 %v5283, %v5275
    %v6116 = vpack.c.b16 %v5284, %v5276
    %v6117 = vpack.c.b16 %v5293, %v5285
    %v6118 = vpack.c.b16 %v5294, %v5286
    %v6119 = vpack.c.b16 %v5295, %v5287
    %v6120 = vpack.c.b16 %v5296, %v5288
    %v6121 = vpack.c.b16 %v5297, %v5289
    %v6122 = vpack.c.b16 %v5298, %v5290
    %v6123 = vpack.c.b16 %v5299, %v5291
    %v6124 = vpack.c.b16 %v5300, %v5292
    %v6125 = vpack.c.b16 %v5309, %v5301
    %v6126 = vpack.c.b16 %v5310, %v5302
    %v6127 = vpack.c.b16 %v5311, %v5303
    %v6128 = vpack.c.b16 %v5312, %v5304
    %v6129 = vpack.c.b16 %v5313, %v5305
    %v6130 = vpack.c.b16 %v5314, %v5306
    %v6131 = vpack.c.b16 %v5315, %v5307
    %v6132 = vpack.c.b16 %v5316, %v5308
    %v6133 = vpack.c.b16 %v5325, %v5317
    %v6134 = vpack.c.b16 %v5326, %v5318
    %v6135 = vpack.c.b16 %v5327, %v5319
    %v6136 = vpack.c.b16 %v5328, %v5320
    %v6137 = vpack.c.b16 %v5329, %v5321
    %v6138 = vpack.c.b16 %v5330, %v5322
    %v6139 = vpack.c.b16 %v5331, %v5323
    %v6140 = vpack.c.b16 %v5332, %v5324
    %v6141 = vpack.c.b16 %v5341, %v5333
    %v6142 = vpack.c.b16 %v5342, %v5334
    %v6143 = vpack.c.b16 %v5343, %v5335
    %v6144 = vpack.c.b16 %v5344, %v5336
    %v6145 = vpack.c.b16 %v5345, %v5337
    %v6146 = vpack.c.b16 %v5346, %v5338
    %v6147 = vpack.c.b16 %v5347, %v5339
    %v6148 = vpack.c.b16 %v5348, %v5340
    %v6149 = vpack.c.b16 %v5357, %v5349
    %v6150 = vpack.c.b16 %v5358, %v5350
    %v6151 = vpack.c.b16 %v5359, %v5351
    %v6152 = vpack.c.b16 %v5360, %v5352
    %v6153 = vpack.c.b16 %v5361, %v5353
    %v6154 = vpack.c.b16 %v5362, %v5354
    %v6155 = vpack.c.b16 %v5363, %v5355
    %v6156 = vpack.c.b16 %v5364, %v5356
    %v6157 = vpack.c.b16 %v5373, %v5365
    %v6158 = vpack.c.b16 %v5374, %v5366
    %v6159 = vpack.c.b16 %v5375, %v5367
    %v6160 = vpack.c.b16 %v5376, %v5368
    %v6161 = vpack.c.b16 %v5377, %v5369
    %v6162 = vpack.c.b16 %v5378, %v5370
    %v6163 = vpack.c.b16 %v5379, %v5371
    %v6164 = vpack.c.b16 %v5380, %v5372
    %v6165 = vpack.c.b16 %v5389, %v5381
    %v6166 = vpack.c.b16 %v5390, %v5382
    %v6167 = vpack.c.b16 %v5391, %v5383
    %v6168 = vpack.c.b16 %v5392, %v5384
    %v6169 = vpack.c.b16 %v5393, %v5385
    %v6170 = vpack.c.b16 %v5394, %v5386
    %v6171 = vpack.c.b16 %v5395, %v5387
    %v6172 = vpack.c.b16 %v5396, %v5388
    %v6173 = vpack.c.b16 %v5405, %v5397
    %v6174 = vpack.c.b16 %v5406, %v5398
    %v6175 = vpack.c.b16 %v5407, %v5399
    %v6176 = vpack.c.b16 %v5408, %v5400
    %v6177 = vpack.c.b16 %v5409, %v5401
    %v6178 = vpack.c.b16 %v5410, %v5402
    %v6179 = vpack.c.b16 %v5411, %v5403
    %v6180 = vpack.c.b16 %v5412, %v5404
    %v6181 = vpack.c.b16 %v5421, %v5413
    %v6182 = vpack.c.b16 %v5422, %v5414
    %v6183 = vpack.c.b16 %v5423, %v5415
    %v6184 = vpack.c.b16 %v5424, %v5416
    %v6185 = vpack.c.b16 %v5425, %v5417
    %v6186 = vpack.c.b16 %v5426, %v5418
    %v6187 = vpack.c.b16 %v5427, %v5419
    %v6188 = vpack.c.b16 %v5428, %v5420
    %v6189 = vpack.c.b16 %v5437, %v5429
    %v6190 = vpack.c.b16 %v5438, %v5430
    %v6191 = vpack.c.b16 %v5439, %v5431
    %v6192 = vpack.c.b16 %v5440, %v5432
    %v6193 = vpack.c.b16 %v5441, %v5433
    %v6194 = vpack.c.b16 %v5442, %v5434
    %v6195 = vpack.c.b16 %v5443, %v5435
    %v6196 = vpack.c.b16 %v5444, %v5436
    %v6197 = vpack.c.b16 %v5453, %v5445
    %v6198 = vpack.c.b16 %v5454, %v5446
    %v6199 = vpack.c.b16 %v5455, %v5447
    %v6200 = vpack.c.b16 %v5456, %v5448
    %v6201 = vpack.c.b16 %v5457, %v5449
    %v6202 = vpack.c.b16 %v5458, %v5450
    %v6203 = vpack.c.b16 %v5459, %v5451
    %v6204 = vpack.c.b16 %v5460, %v5452
    %v6205 = vpack.c.b16 %v5469, %v5461
    %v6206 = vpack.c.b16 %v5470, %v5462
    %v6207 = vpack.c.b16 %v5471, %v5463
    %v6208 = vpack.c.b16 %v5472, %v5464
    %v6209 = vpack.c.b16 %v5473, %v5465
    %v6210 = vpack.c.b16 %v5474, %v5466
    %v6211 = vpack.c.b16 %v5475, %v5467
    %v6212 = vpack.c.b16 %v5476, %v5468
    %v6213 = vpack.c.b16 %v5485, %v5477
    %v6214 = vpack.c.b16 %v5486, %v5478
    %v6215 = vpack.c.b16 %v5487, %v5479
    %v6216 = vpack.c.b16 %v5488, %v5480
    %v6217 = vpack.c.b16 %v5489, %v5481
    %v6218 = vpack.c.b16 %v5490, %v5482
    %v6219 = vpack.c.b16 %v5491, %v5483
    %v6220 = vpack.c.b16 %v5492, %v5484
    %v6221 = vpack.c.b16 %v5501, %v5493
    %v6222 = vpack.c.b16 %v5502, %v5494
    %v6223 = vpack.c.b16 %v5503, %v5495
    %v6224 = vpack.c.b16 %v5504, %v5496
    %v6225 = vpack.c.b16 %v5505, %v5497
    %v6226 = vpack.c.b16 %v5506, %v5498
    %v6227 = vpack.c.b16 %v5507, %v5499
    %v6228 = vpack.c.b16 %v5508, %v5500
    %v6229 = vpack.c.b16 %v5517, %v5509
    %v6230 = vpack.c.b16 %v5518, %v5510
    %v6231 = vpack.c.b16 %v5519, %v5511
    %v6232 = vpack.c.b16 %v5520, %v5512
    %v6233 = vpack.c.b16 %v5521, %v5513
    %v6234 = vpack.c.b16 %v5522, %v5514
    %v6235 = vpack.c.b16 %v5523, %v5515
    %v6236 = vpack.c.b16 %v5524, %v5516
    %v6237 = vpack.c.b16 %v5533, %v5525
    %v6238 = vpack.c.b16 %v5534, %v5526
    %v6239 = vpack.c.b16 %v5535, %v5527
    %v6240 = vpack.c.b16 %v5536, %v5528
    %v6241 = vpack.c.b16 %v5537, %v5529
    %v6242 = vpack.c.b16 %v5538, %v5530
    %v6243 = vpack.c.b16 %v5539, %v5531
    %v6244 = vpack.c.b16 %v5540, %v5532
    %v6245 = vpack.c.b16 %v5549, %v5541
    %v6246 = vpack.c.b16 %v5550, %v5542
    %v6247 = vpack.c.b16 %v5551, %v5543
    %v6248 = vpack.c.b16 %v5552, %v5544
    %v6249 = vpack.c.b16 %v5553, %v5545
    %v6250 = vpack.c.b16 %v5554, %v5546
    %v6251 = vpack.c.b16 %v5555, %v5547
    %v6252 = vpack.c.b16 %v5556, %v5548
    %v6253 = vpack.c.b16 %v5565, %v5557
    %v6254 = vpack.c.b16 %v5566, %v5558
    %v6255 = vpack.c.b16 %v5567, %v5559
    %v6256 = vpack.c.b16 %v5568, %v5560
    %v6257 = vpack.c.b16 %v5569, %v5561
    %v6258 = vpack.c.b16 %v5570, %v5562
    %v6259 = vpack.c.b16 %v5571, %v5563
    %v6260 = vpack.c.b16 %v5572, %v5564
    %v6261 = vpack.c.b16 %v5581, %v5573
    %v6262 = vpack.c.b16 %v5582, %v5574
    %v6263 = vpack.c.b16 %v5583, %v5575
    %v6264 = vpack.c.b16 %v5584, %v5576
    %v6265 = vpack.c.b16 %v5585, %v5577
    %v6266 = vpack.c.b16 %v5586, %v5578
    %v6267 = vpack.c.b16 %v5587, %v5579
    %v6268 = vpack.c.b16 %v5588, %v5580
    %v6269 = vpack.c.b16 %v5597, %v5589
    %v6270 = vpack.c.b16 %v5598, %v5590
    %v6271 = vpack.c.b16 %v5599, %v5591
    %v6272 = vpack.c.b16 %v5600, %v5592
    %v6273 = vpack.c.b16 %v5601, %v5593
    %v6274 = vpack.c.b16 %v5602, %v5594
    %v6275 = vpack.c.b16 %v5603, %v5595
    %v6276 = vpack.c.b16 %v5604, %v5596
    %v6277 = vpack.c.b16 %v5613, %v5605
    %v6278 = vpack.c.b16 %v5614, %v5606
    %v6279 = vpack.c.b16 %v5615, %v5607
    %v6280 = vpack.c.b16 %v5616, %v5608
    %v6281 = vpack.c.b16 %v5617, %v5609
    %v6282 = vpack.c.b16 %v5618, %v5610
    %v6283 = vpack.c.b16 %v5619, %v5611
    %v6284 = vpack.c.b16 %v5620, %v5612
    %v6285 = vpack.c.b16 %v5629, %v5621
    %v6286 = vpack.c.b16 %v5630, %v5622
    %v6287 = vpack.c.b16 %v5631, %v5623
    %v6288 = vpack.c.b16 %v5632, %v5624
    %v6289 = vpack.c.b16 %v5633, %v5625
    %v6290 = vpack.c.b16 %v5634, %v5626
    %v6291 = vpack.c.b16 %v5635, %v5627
    %v6292 = vpack.c.b16 %v5636, %v5628
    %v6293 = vpack.c.b16 %v5645, %v5637
    %v6294 = vpack.c.b16 %v5646, %v5638
    %v6295 = vpack.c.b16 %v5647, %v5639
    %v6296 = vpack.c.b16 %v5648, %v5640
    %v6297 = vpack.c.b16 %v5649, %v5641
    %v6298 = vpack.c.b16 %v5650, %v5642
    %v6299 = vpack.c.b16 %v5651, %v5643
    %v6300 = vpack.c.b16 %v5652, %v5644
    %v6301 = vpack.c.b16 %v5661, %v5653
    %v6302 = vpack.c.b16 %v5662, %v5654
    %v6303 = vpack.c.b16 %v5663, %v5655
    %v6304 = vpack.c.b16 %v5664, %v5656
    %v6305 = vpack.c.b16 %v5665, %v5657
    %v6306 = vpack.c.b16 %v5666, %v5658
    %v6307 = vpack.c.b16 %v5667, %v5659
    %v6308 = vpack.c.b16 %v5668, %v5660
    %v6309 = vpack.c.b16 %v5677, %v5669
    %v6310 = vpack.c.b16 %v5678, %v5670
    %v6311 = vpack.c.b16 %v5679, %v5671
    %v6312 = vpack.c.b16 %v5680, %v5672
    %v6313 = vpack.c.b16 %v5681, %v5673
    %v6314 = vpack.c.b16 %v5682, %v5674
    %v6315 = vpack.c.b16 %v5683, %v5675
    %v6316 = vpack.c.b16 %v5684, %v5676
    %v6317 = vpack.c.b16 %v5693, %v5685
    %v6318 = vpack.c.b16 %v5694, %v5686
    %v6319 = vpack.c.b16 %v5695, %v5687
    %v6320 = vpack.c.b16 %v5696, %v5688
    %v6321 = vpack.c.b16 %v5697, %v5689
    %v6322 = vpack.c.b16 %v5698, %v5690
    %v6323 = vpack.c.b16 %v5699, %v5691
    %v6324 = vpack.c.b16 %v5700, %v5692
    %v6325 = vpack.c.b16 %v5709, %v5701
    %v6326 = vpack.c.b16 %v5710, %v5702
    %v6327 = vpack.c.b16 %v5711, %v5703
    %v6328 = vpack.c.b16 %v5712, %v5704
    %v6329 = vpack.c.b16 %v5713, %v5705
    %v6330 = vpack.c.b16 %v5714, %v5706
    %v6331 = vpack.c.b16 %v5715, %v5707
    %v6332 = vpack.c.b16 %v5716, %v5708
    %v6333 = vpack.c.b16 %v5725, %v5717
    %v6334 = vpack.c.b16 %v5726, %v5718
    %v6335 = vpack.c.b16 %v5727, %v5719
    %v6336 = vpack.c.b16 %v5728, %v5720
    %v6337 = vpack.c.b16 %v5729, %v5721
    %v6338 = vpack.c.b16 %v5730, %v5722
    %v6339 = vpack.c.b16 %v5731, %v5723
    %v6340 = vpack.c.b16 %v5732, %v5724
    %v6341 = vpack.c.b16 %v5741, %v5733
    %v6342 = vpack.c.b16 %v5742, %v5734
    %v6343 = vpack.c.b16 %v5743, %v5735
    %v6344 = vpack.c.b16 %v5744, %v5736
    %v6345 = vpack.c.b16 %v5745, %v5737
    %v6346 = vpack.c.b16 %v5746, %v5738
    %v6347 = vpack.c.b16 %v5747, %v5739
    %v6348 = vpack.c.b16 %v5748, %v5740
    %v6349 = vpack.c.b16 %v5757, %v5749
    %v6350 = vpack.c.b16 %v5758, %v5750
    %v6351 = vpack.c.b16 %v5759, %v5751
    %v6352 = vpack.c.b16 %v5760, %v5752
    %v6353 = vpack.c.b16 %v5761, %v5753
    %v6354 = vpack.c.b16 %v5762, %v5754
    %v6355 = vpack.c.b16 %v5763, %v5755
    %v6356 = vpack.c.b16 %v5764, %v5756
    %v6357 = vpack.c.b16 %v5773, %v5765
    %v6358 = vpack.c.b16 %v5774, %v5766
    %v6359 = vpack.c.b16 %v5775, %v5767
    %v6360 = vpack.c.b16 %v5776, %v5768
    %v6361 = vpack.c.b16 %v5777, %v5769
    %v6362 = vpack.c.b16 %v5778, %v5770
    %v6363 = vpack.c.b16 %v5779, %v5771
    %v6364 = vpack.c.b16 %v5780, %v5772
    %v6365 = vpack.c.b16 %v5789, %v5781
    %v6366 = vpack.c.b16 %v5790, %v5782
    %v6367 = vpack.c.b16 %v5791, %v5783
    %v6368 = vpack.c.b16 %v5792, %v5784
    %v6369 = vpack.c.b16 %v5793, %v5785
    %v6370 = vpack.c.b16 %v5794, %v5786
    %v6371 = vpack.c.b16 %v5795, %v5787
    %v6372 = vpack.c.b16 %v5796, %v5788
    %v6373 = vpack.c.b16 %v5805, %v5797
    %v6374 = vpack.c.b16 %v5806, %v5798
    %v6375 = vpack.c.b16 %v5807, %v5799
    %v6376 = vpack.c.b16 %v5808, %v5800
    %v6377 = vpack.c.b16 %v5809, %v5801
    %v6378 = vpack.c.b16 %v5810, %v5802
    %v6379 = vpack.c.b16 %v5811, %v5803
    %v6380 = vpack.c.b16 %v5812, %v5804
    %v6381 = vpack.c.b16 %v5821, %v5813
    %v6382 = vpack.c.b16 %v5822, %v5814
    %v6383 = vpack.c.b16 %v5823, %v5815
    %v6384 = vpack.c.b16 %v5824, %v5816
    %v6385 = vpack.c.b16 %v5825, %v5817
    %v6386 = vpack.c.b16 %v5826, %v5818
    %v6387 = vpack.c.b16 %v5827, %v5819
    %v6388 = vpack.c.b16 %v5828, %v5820
    %v6389 = vpack.c.b16 %v5837, %v5829
    %v6390 = vpack.c.b16 %v5838, %v5830
    %v6391 = vpack.c.b16 %v5839, %v5831
    %v6392 = vpack.c.b16 %v5840, %v5832
    %v6393 = vpack.c.b16 %v5841, %v5833
    %v6394 = vpack.c.b16 %v5842, %v5834
    %v6395 = vpack.c.b16 %v5843, %v5835
    %v6396 = vpack.c.b16 %v5844, %v5836
    %v6397 = vpack.c.b16 %v5853, %v5845
    %v6398 = vpack.c.b16 %v5854, %v5846
    %v6399 = vpack.c.b16 %v5855, %v5847
    %v6400 = vpack.c.b16 %v5856, %v5848
    %v6401 = vpack.c.b16 %v5857, %v5849
    %v6402 = vpack.c.b16 %v5858, %v5850
    %v6403 = vpack.c.b16 %v5859, %v5851
    %v6404 = vpack.c.b16 %v5860, %v5852
    %v6405 = vpack.c.b16 %v5869, %v5861
    %v6406 = vpack.c.b16 %v5870, %v5862
    %v6407 = vpack.c.b16 %v5871, %v5863
    %v6408 = vpack.c.b16 %v5872, %v5864
    %v6409 = vpack.c.b16 %v5873, %v5865
    %v6410 = vpack.c.b16 %v5874, %v5866
    %v6411 = vpack.c.b16 %v5875, %v5867
    %v6412 = vpack.c.b16 %v5876, %v5868
    %v6413 = vpack.c.b16 %v5885, %v5877
    %v6414 = vpack.c.b16 %v5886, %v5878
    %v6415 = vpack.c.b16 %v5887, %v5879
    %v6416 = vpack.c.b16 %v5888, %v5880
    %v6417 = vpack.c.b16 %v5889, %v5881
    %v6418 = vpack.c.b16 %v5890, %v5882
    %v6419 = vpack.c.b16 %v5891, %v5883
    %v6420 = vpack.c.b16 %v5892, %v5884
    %v6421 = vpack.c.b16 %v5901, %v5893
    %v6422 = vpack.c.b16 %v5902, %v5894
    %v6423 = vpack.c.b16 %v5903, %v5895
    %v6424 = vpack.c.b16 %v5904, %v5896
    %v6425 = vpack.c.b16 %v5905, %v5897
    %v6426 = vpack.c.b16 %v5906, %v5898
    %v6427 = vpack.c.b16 %v5907, %v5899
    %v6428 = vpack.c.b16 %v5908, %v5900
    %v6429 = vpack.c.b16 %v5917, %v5909
    %v6430 = vpack.c.b16 %v5918, %v5910
    %v6431 = vpack.c.b16 %v5919, %v5911
    %v6432 = vpack.c.b16 %v5920, %v5912
    %v6433 = vpack.c.b16 %v5921, %v5913
    %v6434 = vpack.c.b16 %v5922, %v5914
    %v6435 = vpack.c.b16 %v5923, %v5915
    %v6436 = vpack.c.b16 %v5924, %v5916
    %6949 = vmatprep.subr.bf16.mxu0 %v5926
    %6950 = vmatpush1.bf16.msra.mxu0 %v5925
    %6951 = vmatprep.subr.bf16.mxu0 %v5934
    %6952 = vmatpush1.bf16.msra.mxu0 %v5933
    %6953 = vmatprep.subr.bf16.mxu0 %v5942
    %6954 = vmatpush1.bf16.msra.mxu0 %v5941
    %6955 = vmatprep.subr.bf16.mxu0 %v5950
    %6956 = vmatpush1.bf16.msra.mxu0 %v5949
    %6957 = vmatprep.subr.bf16.mxu0 %v5958
    %6958 = vmatpush1.bf16.msra.mxu0 %v5957
    %6959 = vmatprep.subr.bf16.mxu0 %v5966
    %6960 = vmatpush1.bf16.msra.mxu0 %v5965
    %6961 = vmatprep.subr.bf16.mxu0 %v5974
    %6962 = vmatpush1.bf16.msra.mxu0 %v5973
    %6963 = vmatprep.subr.bf16.mxu0 %v5982
    %6964 = vmatpush1.bf16.msra.mxu0 %v5981
    %6965 = vmatprep.subr.bf16.mxu0 %v5990
    %6966 = vmatpush1.bf16.msra.mxu0 %v5989
    %6967 = vmatprep.subr.bf16.mxu0 %v5998
    %6968 = vmatpush1.bf16.msra.mxu0 %v5997
    %6969 = vmatprep.subr.bf16.mxu0 %v6006
    %6970 = vmatpush1.bf16.msra.mxu0 %v6005
    %6971 = vmatprep.subr.bf16.mxu0 %v6014
    %6972 = vmatpush1.bf16.msra.mxu0 %v6013
    %6973 = vmatprep.subr.bf16.mxu0 %v6022
    %6974 = vmatpush1.bf16.msra.mxu0 %v6021
    %6975 = vmatprep.subr.bf16.mxu0 %v6030
    %6976 = vmatpush1.bf16.msra.mxu0 %v6029
    %6977 = vmatprep.subr.bf16.mxu0 %v6038
    %6978 = vmatpush1.bf16.msra.mxu0 %v6037
    %6979 = vmatprep.subr.bf16.mxu0 %v6046
    %6980 = vmatpush1.bf16.msra.mxu0 %v6045
    %6981 = vmatprep.mubr.bf16.mxu0 %v3828
    %6982 = vmatmul.mubr.bf16.gmra.mrb[0].mxu0 %v3827
    %v6983 = vpop.f32.mrb[0].mxu0
    %v6984 = vadd.f32 %v4352, %v6983
    %v6985 = vpop.f32.mrb[0].mxu0
    %v6986 = vadd.f32 %v4356, %v6985
    %v6987 = vpop.f32.mrb[0].mxu0
    %v6988 = vadd.f32 %v4352, %v6987
    %v6989 = vpop.f32.mrb[0].mxu0
    %v6990 = vadd.f32 %v4356, %v6989
    %6991 = vdwg.mxu0
    %6992 = vmatprep.subr.bf16.mxu0 %v6054
    %6993 = vmatpush1.bf16.msra.mxu0 %v6053
    %6994 = vmatprep.subr.bf16.mxu0 %v6062
    %6995 = vmatpush1.bf16.msra.mxu0 %v6061
    %6996 = vmatprep.subr.bf16.mxu0 %v6070
    %6997 = vmatpush1.bf16.msra.mxu0 %v6069
    %6998 = vmatprep.subr.bf16.mxu0 %v6078
    %6999 = vmatpush1.bf16.msra.mxu0 %v6077
    %7000 = vmatprep.subr.bf16.mxu0 %v6086
    %7001 = vmatpush1.bf16.msra.mxu0 %v6085
    %7002 = vmatprep.subr.bf16.mxu0 %v6094
    %7003 = vmatpush1.bf16.msra.mxu0 %v6093
    %7004 = vmatprep.subr.bf16.mxu0 %v6102
    %7005 = vmatpush1.bf16.msra.mxu0 %v6101
    %7006 = vmatprep.subr.bf16.mxu0 %v6110
    %7007 = vmatpush1.bf16.msra.mxu0 %v6109
    %7008 = vmatprep.subr.bf16.mxu0 %v6118
    %7009 = vmatpush1.bf16.msra.mxu0 %v6117
    %7010 = vmatprep.subr.bf16.mxu0 %v6126
    %7011 = vmatpush1.bf16.msra.mxu0 %v6125
    %7012 = vmatprep.subr.bf16.mxu0 %v6134
    %7013 = vmatpush1.bf16.msra.mxu0 %v6133
    %7014 = vmatprep.subr.bf16.mxu0 %v6142
    %7015 = vmatpush1.bf16.msra.mxu0 %v6141
    %7016 = vmatprep.subr.bf16.mxu0 %v6150
    %7017 = vmatpush1.bf16.msra.mxu0 %v6149
    %7018 = vmatprep.subr.bf16.mxu0 %v6158
    %7019 = vmatpush1.bf16.msra.mxu0 %v6157
    %7020 = vmatprep.subr.bf16.mxu0 %v6166
    %7021 = vmatpush1.bf16.msra.mxu0 %v6165
    %7022 = vmatprep.subr.bf16.mxu0 %v6174
    %7023 = vmatpush1.bf16.msra.mxu0 %v6173
    %7024 = vmatprep.mubr.bf16.mxu0 %v3830
    %7025 = vmatmul.mubr.bf16.gmra.mrb[0].mxu0 %v3829
    %v7026 = vpop.f32.mrb[0].mxu0
    %v7027 = vadd.f32 %v6984, %v7026
    %v7028 = vpop.f32.mrb[0].mxu0
    %v7029 = vadd.f32 %v6986, %v7028
    %v7030 = vpop.f32.mrb[0].mxu0
    %v7031 = vadd.f32 %v6988, %v7030
    %v7032 = vpop.f32.mrb[0].mxu0
    %v7033 = vadd.f32 %v6990, %v7032
    %7034 = vdwg.mxu0
    %7035 = vmatprep.subr.bf16.mxu0 %v6182
    %7036 = vmatpush1.bf16.msra.mxu0 %v6181
    %7037 = vmatprep.subr.bf16.mxu0 %v6190
    %7038 = vmatpush1.bf16.msra.mxu0 %v6189
    %7039 = vmatprep.subr.bf16.mxu0 %v6198
    %7040 = vmatpush1.bf16.msra.mxu0 %v6197
    %7041 = vmatprep.subr.bf16.mxu0 %v6206
    %7042 = vmatpush1.bf16.msra.mxu0 %v6205
    %7043 = vmatprep.subr.bf16.mxu0 %v6214
    %7044 = vmatpush1.bf16.msra.mxu0 %v6213
    %7045 = vmatprep.subr.bf16.mxu0 %v6222
    %7046 = vmatpush1.bf16.msra.mxu0 %v6221
    %7047 = vmatprep.subr.bf16.mxu0 %v6230
    %7048 = vmatpush1.bf16.msra.mxu0 %v6229
    %7049 = vmatprep.subr.bf16.mxu0 %v6238
    %7050 = vmatpush1.bf16.msra.mxu0 %v6237
    %7051 = vmatprep.subr.bf16.mxu0 %v6246
    %7052 = vmatpush1.bf16.msra.mxu0 %v6245
    %7053 = vmatprep.subr.bf16.mxu0 %v6254
    %7054 = vmatpush1.bf16.msra.mxu0 %v6253
    %7055 = vmatprep.subr.bf16.mxu0 %v6262
    %7056 = vmatpush1.bf16.msra.mxu0 %v6261
    %7057 = vmatprep.subr.bf16.mxu0 %v6270
    %7058 = vmatpush1.bf16.msra.mxu0 %v6269
    %7059 = vmatprep.subr.bf16.mxu0 %v6278
    %7060 = vmatpush1.bf16.msra.mxu0 %v6277
    %7061 = vmatprep.subr.bf16.mxu0 %v6286
    %7062 = vmatpush1.bf16.msra.mxu0 %v6285
    %7063 = vmatprep.subr.bf16.mxu0 %v6294
    %7064 = vmatpush1.bf16.msra.mxu0 %v6293
    %7065 = vmatprep.subr.bf16.mxu0 %v6302
    %7066 = vmatpush1.bf16.msra.mxu0 %v6301
    %7067 = vmatprep.mubr.bf16.mxu0 %v3832
    %7068 = vmatmul.mubr.bf16.gmra.mrb[0].mxu0 %v3831
    %v7069 = vpop.f32.mrb[0].mxu0
    %v7070 = vadd.f32 %v7027, %v7069
    %v7071 = vpop.f32.mrb[0].mxu0
    %v7072 = vadd.f32 %v7029, %v7071
    %v7073 = vpop.f32.mrb[0].mxu0
    %v7074 = vadd.f32 %v7031, %v7073
    %v7075 = vpop.f32.mrb[0].mxu0
    %v7076 = vadd.f32 %v7033, %v7075
    %7077 = vdwg.mxu0
    %7078 = vmatprep.subr.bf16.mxu0 %v6310
    %7079 = vmatpush1.bf16.msra.mxu0 %v6309
    %7080 = vmatprep.subr.bf16.mxu0 %v6318
    %7081 = vmatpush1.bf16.msra.mxu0 %v6317
    %7082 = vmatprep.subr.bf16.mxu0 %v6326
    %7083 = vmatpush1.bf16.msra.mxu0 %v6325
    %7084 = vmatprep.subr.bf16.mxu0 %v6334
    %7085 = vmatpush1.bf16.msra.mxu0 %v6333
    %7086 = vmatprep.subr.bf16.mxu0 %v6342
    %7087 = vmatpush1.bf16.msra.mxu0 %v6341
    %7088 = vmatprep.subr.bf16.mxu0 %v6350
    %7089 = vmatpush1.bf16.msra.mxu0 %v6349
    %7090 = vmatprep.subr.bf16.mxu0 %v6358
    %7091 = vmatpush1.bf16.msra.mxu0 %v6357
    %7092 = vmatprep.subr.bf16.mxu0 %v6366
    %7093 = vmatpush1.bf16.msra.mxu0 %v6365
    %7094 = vmatprep.subr.bf16.mxu0 %v6374
    %7095 = vmatpush1.bf16.msra.mxu0 %v6373
    %7096 = vmatprep.subr.bf16.mxu0 %v6382
    %7097 = vmatpush1.bf16.msra.mxu0 %v6381
    %7098 = vmatprep.subr.bf16.mxu0 %v6390
    %7099 = vmatpush1.bf16.msra.mxu0 %v6389
    %7100 = vmatprep.subr.bf16.mxu0 %v6398
    %7101 = vmatpush1.bf16.msra.mxu0 %v6397
    %7102 = vmatprep.subr.bf16.mxu0 %v6406
    %7103 = vmatpush1.bf16.msra.mxu0 %v6405
    %7104 = vmatprep.subr.bf16.mxu0 %v6414
    %7105 = vmatpush1.bf16.msra.mxu0 %v6413
    %7106 = vmatprep.subr.bf16.mxu0 %v6422
    %7107 = vmatpush1.bf16.msra.mxu0 %v6421
    %7108 = vmatprep.subr.bf16.mxu0 %v6430
    %7109 = vmatpush1.bf16.msra.mxu0 %v6429
    %7110 = vmatprep.mubr.bf16.mxu0 %v3834
    %7111 = vmatmul.mubr.bf16.gmra.mrb[0].mxu0 %v3833
    %v7112 = vpop.f32.mrb[0].mxu0
    %v7113 = vadd.f32 %v7070, %v7112
    %v7114 = vpop.f32.mrb[0].mxu0
    %v7115 = vadd.f32 %v7072, %v7114
    %v7116 = vpop.f32.mrb[0].mxu0
    %v7117 = vadd.f32 %v7074, %v7116
    %v7118 = vpop.f32.mrb[0].mxu0
    %v7119 = vadd.f32 %v7076, %v7118
    %7120 = vdwg.mxu0
    %7121 = vmatprep.subr.bf16.mxu0 %v5928
    %7122 = vmatpush1.bf16.msra.mxu0 %v5927
    %7123 = vmatprep.subr.bf16.mxu0 %v5936
    %7124 = vmatpush1.bf16.msra.mxu0 %v5935
    %7125 = vmatprep.subr.bf16.mxu0 %v5944
    %7126 = vmatpush1.bf16.msra.mxu0 %v5943
    %7127 = vmatprep.subr.bf16.mxu0 %v5952
    %7128 = vmatpush1.bf16.msra.mxu0 %v5951
    %7129 = vmatprep.subr.bf16.mxu0 %v5960
    %7130 = vmatpush1.bf16.msra.mxu0 %v5959
    %7131 = vmatprep.subr.bf16.mxu0 %v5968
    %7132 = vmatpush1.bf16.msra.mxu0 %v5967
    %7133 = vmatprep.subr.bf16.mxu0 %v5976
    %7134 = vmatpush1.bf16.msra.mxu0 %v5975
    %7135 = vmatprep.subr.bf16.mxu0 %v5984
    %7136 = vmatpush1.bf16.msra.mxu0 %v5983
    %7137 = vmatprep.subr.bf16.mxu0 %v5992
    %7138 = vmatpush1.bf16.msra.mxu0 %v5991
    %7139 = vmatprep.subr.bf16.mxu0 %v6000
    %7140 = vmatpush1.bf16.msra.mxu0 %v5999
    %7141 = vmatprep.subr.bf16.mxu0 %v6008
    %7142 = vmatpush1.bf16.msra.mxu0 %v6007
    %7143 = vmatprep.subr.bf16.mxu0 %v6016
    %7144 = vmatpush1.bf16.msra.mxu0 %v6015
    %7145 = vmatprep.subr.bf16.mxu0 %v6024
    %7146 = vmatpush1.bf16.msra.mxu0 %v6023
    %7147 = vmatprep.subr.bf16.mxu0 %v6032
    %7148 = vmatpush1.bf16.msra.mxu0 %v6031
    %7149 = vmatprep.subr.bf16.mxu0 %v6040
    %7150 = vmatpush1.bf16.msra.mxu0 %v6039
    %7151 = vmatprep.subr.bf16.mxu0 %v6048
    %7152 = vmatpush1.bf16.msra.mxu0 %v6047
    %7153 = vmatprep.mubr.bf16.mxu0 %v3828
    %7154 = vmatmul.mubr.bf16.gmra.mrb[0].mxu0 %v3827
    %v7155 = vpop.f32.mrb[0].mxu0
    %v7156 = vadd.f32 %v4360, %v7155
    %v7157 = vpop.f32.mrb[0].mxu0
    %v7158 = vadd.f32 %v4364, %v7157
    %v7159 = vpop.f32.mrb[0].mxu0
    %v7160 = vadd.f32 %v4360, %v7159
    %v7161 = vpop.f32.mrb[0].mxu0
    %v7162 = vadd.f32 %v4364, %v7161
    %7163 = vdwg.mxu0
    %7164 = vmatprep.subr.bf16.mxu0 %v6056
    %7165 = vmatpush1.bf16.msra.mxu0 %v6055
    %7166 = vmatprep.subr.bf16.mxu0 %v6064
    %7167 = vmatpush1.bf16.msra.mxu0 %v6063
    %7168 = vmatprep.subr.bf16.mxu0 %v6072
    %7169 = vmatpush1.bf16.msra.mxu0 %v6071
    %7170 = vmatprep.subr.bf16.mxu0 %v6080
    %7171 = vmatpush1.bf16.msra.mxu0 %v6079
    %7172 = vmatprep.subr.bf16.mxu0 %v6088
    %7173 = vmatpush1.bf16.msra.mxu0 %v6087
    %7174 = vmatprep.subr.bf16.mxu0 %v6096
    %7175 = vmatpush1.bf16.msra.mxu0 %v6095
    %7176 = vmatprep.subr.bf16.mxu0 %v6104
    %7177 = vmatpush1.bf16.msra.mxu0 %v6103
    %7178 = vmatprep.subr.bf16.mxu0 %v6112
    %7179 = vmatpush1.bf16.msra.mxu0 %v6111
    %7180 = vmatprep.subr.bf16.mxu0 %v6120
    %7181 = vmatpush1.bf16.msra.mxu0 %v6119
    %7182 = vmatprep.subr.bf16.mxu0 %v6128
    %7183 = vmatpush1.bf16.msra.mxu0 %v6127
    %7184 = vmatprep.subr.bf16.mxu0 %v6136
    %7185 = vmatpush1.bf16.msra.mxu0 %v6135
    %7186 = vmatprep.subr.bf16.mxu0 %v6144
    %7187 = vmatpush1.bf16.msra.mxu0 %v6143
    %7188 = vmatprep.subr.bf16.mxu0 %v6152
    %7189 = vmatpush1.bf16.msra.mxu0 %v6151
    %7190 = vmatprep.subr.bf16.mxu0 %v6160
    %7191 = vmatpush1.bf16.msra.mxu0 %v6159
    %7192 = vmatprep.subr.bf16.mxu0 %v6168
    %7193 = vmatpush1.bf16.msra.mxu0 %v6167
    %7194 = vmatprep.subr.bf16.mxu0 %v6176
    %7195 = vmatpush1.bf16.msra.mxu0 %v6175
    %7196 = vmatprep.mubr.bf16.mxu0 %v3830
    %7197 = vmatmul.mubr.bf16.gmra.mrb[0].mxu0 %v3829
    %v7198 = vpop.f32.mrb[0].mxu0
    %v7199 = vadd.f32 %v7156, %v7198
    %v7200 = vpop.f32.mrb[0].mxu0
    %v7201 = vadd.f32 %v7158, %v7200
    %v7202 = vpop.f32.mrb[0].mxu0
    %v7203 = vadd.f32 %v7160, %v7202
    %v7204 = vpop.f32.mrb[0].mxu0
    %v7205 = vadd.f32 %v7162, %v7204
    %7206 = vdwg.mxu0
    %7207 = vmatprep.subr.bf16.mxu0 %v6184
    %7208 = vmatpush1.bf16.msra.mxu0 %v6183
    %7209 = vmatprep.subr.bf16.mxu0 %v6192
    %7210 = vmatpush1.bf16.msra.mxu0 %v6191
    %7211 = vmatprep.subr.bf16.mxu0 %v6200
    %7212 = vmatpush1.bf16.msra.mxu0 %v6199
    %7213 = vmatprep.subr.bf16.mxu0 %v6208
    %7214 = vmatpush1.bf16.msra.mxu0 %v6207
    %7215 = vmatprep.subr.bf16.mxu0 %v6216
    %7216 = vmatpush1.bf16.msra.mxu0 %v6215
    %7217 = vmatprep.subr.bf16.mxu0 %v6224
    %7218 = vmatpush1.bf16.msra.mxu0 %v6223
    %7219 = vmatprep.subr.bf16.mxu0 %v6232
    %7220 = vmatpush1.bf16.msra.mxu0 %v6231
    %7221 = vmatprep.subr.bf16.mxu0 %v6240
    %7222 = vmatpush1.bf16.msra.mxu0 %v6239
    %7223 = vmatprep.subr.bf16.mxu0 %v6248
    %7224 = vmatpush1.bf16.msra.mxu0 %v6247
    %7225 = vmatprep.subr.bf16.mxu0 %v6256
    %7226 = vmatpush1.bf16.msra.mxu0 %v6255
    %7227 = vmatprep.subr.bf16.mxu0 %v6264
    %7228 = vmatpush1.bf16.msra.mxu0 %v6263
    %7229 = vmatprep.subr.bf16.mxu0 %v6272
    %7230 = vmatpush1.bf16.msra.mxu0 %v6271
    %7231 = vmatprep.subr.bf16.mxu0 %v6280
    %7232 = vmatpush1.bf16.msra.mxu0 %v6279
    %7233 = vmatprep.subr.bf16.mxu0 %v6288
    %7234 = vmatpush1.bf16.msra.mxu0 %v6287
    %7235 = vmatprep.subr.bf16.mxu0 %v6296
    %7236 = vmatpush1.bf16.msra.mxu0 %v6295
    %7237 = vmatprep.subr.bf16.mxu0 %v6304
    %7238 = vmatpush1.bf16.msra.mxu0 %v6303
    %7239 = vmatprep.mubr.bf16.mxu0 %v3832
    %7240 = vmatmul.mubr.bf16.gmra.mrb[0].mxu0 %v3831
    %v7241 = vpop.f32.mrb[0].mxu0
    %v7242 = vadd.f32 %v7199, %v7241
    %v7243 = vpop.f32.mrb[0].mxu0
    %v7244 = vadd.f32 %v7201, %v7243
    %v7245 = vpop.f32.mrb[0].mxu0
    %v7246 = vadd.f32 %v7203, %v7245
    %v7247 = vpop.f32.mrb[0].mxu0
    %v7248 = vadd.f32 %v7205, %v7247
    %7249 = vdwg.mxu0
    %7250 = vmatprep.subr.bf16.mxu0 %v6312
    %7251 = vmatpush1.bf16.msra.mxu0 %v6311
    %7252 = vmatprep.subr.bf16.mxu0 %v6320
    %7253 = vmatpush1.bf16.msra.mxu0 %v6319
    %7254 = vmatprep.subr.bf16.mxu0 %v6328
    %7255 = vmatpush1.bf16.msra.mxu0 %v6327
    %7256 = vmatprep.subr.bf16.mxu0 %v6336
    %7257 = vmatpush1.bf16.msra.mxu0 %v6335
    %7258 = vmatprep.subr.bf16.mxu0 %v6344
    %7259 = vmatpush1.bf16.msra.mxu0 %v6343
    %7260 = vmatprep.subr.bf16.mxu0 %v6352
    %7261 = vmatpush1.bf16.msra.mxu0 %v6351
    %7262 = vmatprep.subr.bf16.mxu0 %v6360
    %7263 = vmatpush1.bf16.msra.mxu0 %v6359
    %7264 = vmatprep.subr.bf16.mxu0 %v6368
    %7265 = vmatpush1.bf16.msra.mxu0 %v6367
    %7266 = vmatprep.subr.bf16.mxu0 %v6376
    %7267 = vmatpush1.bf16.msra.mxu0 %v6375
    %7268 = vmatprep.subr.bf16.mxu0 %v6384
    %7269 = vmatpush1.bf16.msra.mxu0 %v6383
    %7270 = vmatprep.subr.bf16.mxu0 %v6392
    %7271 = vmatpush1.bf16.msra.mxu0 %v6391
    %7272 = vmatprep.subr.bf16.mxu0 %v6400
    %7273 = vmatpush1.bf16.msra.mxu0 %v6399
    %7274 = vmatprep.subr.bf16.mxu0 %v6408
    %7275 = vmatpush1.bf16.msra.mxu0 %v6407
    %7276 = vmatprep.subr.bf16.mxu0 %v6416
    %7277 = vmatpush1.bf16.msra.mxu0 %v6415
    %7278 = vmatprep.subr.bf16.mxu0 %v6424
    %7279 = vmatpush1.bf16.msra.mxu0 %v6423
    %7280 = vmatprep.subr.bf16.mxu0 %v6432
    %7281 = vmatpush1.bf16.msra.mxu0 %v6431
    %7282 = vmatprep.mubr.bf16.mxu0 %v3834
    %7283 = vmatmul.mubr.bf16.gmra.mrb[0].mxu0 %v3833
    %v7284 = vpop.f32.mrb[0].mxu0
    %v7285 = vadd.f32 %v7242, %v7284
    %v7286 = vpop.f32.mrb[0].mxu0
    %v7287 = vadd.f32 %v7244, %v7286
    %v7288 = vpop.f32.mrb[0].mxu0
    %v7289 = vadd.f32 %v7246, %v7288
    %v7290 = vpop.f32.mrb[0].mxu0
    %v7291 = vadd.f32 %v7248, %v7290
    %7292 = vdwg.mxu0
    %7293 = vmatprep.subr.bf16.mxu0 %v5930
    %7294 = vmatpush1.bf16.msra.mxu0 %v5929
    %7295 = vmatprep.subr.bf16.mxu0 %v5938
    %7296 = vmatpush1.bf16.msra.mxu0 %v5937
    %7297 = vmatprep.subr.bf16.mxu0 %v5946
    %7298 = vmatpush1.bf16.msra.mxu0 %v5945
    %7299 = vmatprep.subr.bf16.mxu0 %v5954
    %7300 = vmatpush1.bf16.msra.mxu0 %v5953
    %7301 = vmatprep.subr.bf16.mxu0 %v5962
    %7302 = vmatpush1.bf16.msra.mxu0 %v5961
    %7303 = vmatprep.subr.bf16.mxu0 %v5970
    %7304 = vmatpush1.bf16.msra.mxu0 %v5969
    %7305 = vmatprep.subr.bf16.mxu0 %v5978
    %7306 = vmatpush1.bf16.msra.mxu0 %v5977
    %7307 = vmatprep.subr.bf16.mxu0 %v5986
    %7308 = vmatpush1.bf16.msra.mxu0 %v5985
    %7309 = vmatprep.subr.bf16.mxu0 %v5994
    %7310 = vmatpush1.bf16.msra.mxu0 %v5993
    %7311 = vmatprep.subr.bf16.mxu0 %v6002
    %7312 = vmatpush1.bf16.msra.mxu0 %v6001
    %7313 = vmatprep.subr.bf16.mxu0 %v6010
    %7314 = vmatpush1.bf16.msra.mxu0 %v6009
    %7315 = vmatprep.subr.bf16.mxu0 %v6018
    %7316 = vmatpush1.bf16.msra.mxu0 %v6017
    %7317 = vmatprep.subr.bf16.mxu0 %v6026
    %7318 = vmatpush1.bf16.msra.mxu0 %v6025
    %7319 = vmatprep.subr.bf16.mxu0 %v6034
    %7320 = vmatpush1.bf16.msra.mxu0 %v6033
    %7321 = vmatprep.subr.bf16.mxu0 %v6042
    %7322 = vmatpush1.bf16.msra.mxu0 %v6041
    %7323 = vmatprep.subr.bf16.mxu0 %v6050
    %7324 = vmatpush1.bf16.msra.mxu0 %v6049
    %7325 = vmatprep.mubr.bf16.mxu0 %v3828
    %7326 = vmatmul.mubr.bf16.gmra.mrb[0].mxu0 %v3827
    %v7327 = vpop.f32.mrb[0].mxu0
    %v7328 = vadd.f32 %v4368, %v7327
    %v7329 = vpop.f32.mrb[0].mxu0
    %v7330 = vadd.f32 %v4372, %v7329
    %v7331 = vpop.f32.mrb[0].mxu0
    %v7332 = vadd.f32 %v4368, %v7331
    %v7333 = vpop.f32.mrb[0].mxu0
    %v7334 = vadd.f32 %v4372, %v7333
    %7335 = vdwg.mxu0
    %7336 = vmatprep.subr.bf16.mxu0 %v6058
    %7337 = vmatpush1.bf16.msra.mxu0 %v6057
    %7338 = vmatprep.subr.bf16.mxu0 %v6066
    %7339 = vmatpush1.bf16.msra.mxu0 %v6065
    %7340 = vmatprep.subr.bf16.mxu0 %v6074
    %7341 = vmatpush1.bf16.msra.mxu0 %v6073
    %7342 = vmatprep.subr.bf16.mxu0 %v6082
    %7343 = vmatpush1.bf16.msra.mxu0 %v6081
    %7344 = vmatprep.subr.bf16.mxu0 %v6090
    %7345 = vmatpush1.bf16.msra.mxu0 %v6089
    %7346 = vmatprep.subr.bf16.mxu0 %v6098
    %7347 = vmatpush1.bf16.msra.mxu0 %v6097
    %7348 = vmatprep.subr.bf16.mxu0 %v6106
    %7349 = vmatpush1.bf16.msra.mxu0 %v6105
    %7350 = vmatprep.subr.bf16.mxu0 %v6114
    %7351 = vmatpush1.bf16.msra.mxu0 %v6113
    %7352 = vmatprep.subr.bf16.mxu0 %v6122
    %7353 = vmatpush1.bf16.msra.mxu0 %v6121
    %7354 = vmatprep.subr.bf16.mxu0 %v6130
    %7355 = vmatpush1.bf16.msra.mxu0 %v6129
    %7356 = vmatprep.subr.bf16.mxu0 %v6138
    %7357 = vmatpush1.bf16.msra.mxu0 %v6137
    %7358 = vmatprep.subr.bf16.mxu0 %v6146
    %7359 = vmatpush1.bf16.msra.mxu0 %v6145
    %7360 = vmatprep.subr.bf16.mxu0 %v6154
    %7361 = vmatpush1.bf16.msra.mxu0 %v6153
    %7362 = vmatprep.subr.bf16.mxu0 %v6162
    %7363 = vmatpush1.bf16.msra.mxu0 %v6161
    %7364 = vmatprep.subr.bf16.mxu0 %v6170
    %7365 = vmatpush1.bf16.msra.mxu0 %v6169
    %7366 = vmatprep.subr.bf16.mxu0 %v6178
    %7367 = vmatpush1.bf16.msra.mxu0 %v6177
    %7368 = vmatprep.mubr.bf16.mxu0 %v3830
    %7369 = vmatmul.mubr.bf16.gmra.mrb[0].mxu0 %v3829
    %v7370 = vpop.f32.mrb[0].mxu0
    %v7371 = vadd.f32 %v7328, %v7370
    %v7372 = vpop.f32.mrb[0].mxu0
    %v7373 = vadd.f32 %v7330, %v7372
    %v7374 = vpop.f32.mrb[0].mxu0
    %v7375 = vadd.f32 %v7332, %v7374
    %v7376 = vpop.f32.mrb[0].mxu0
    %v7377 = vadd.f32 %v7334, %v7376
    %7378 = vdwg.mxu0
    %7379 = vmatprep.subr.bf16.mxu0 %v6186
    %7380 = vmatpush1.bf16.msra.mxu0 %v6185
    %7381 = vmatprep.subr.bf16.mxu0 %v6194
    %7382 = vmatpush1.bf16.msra.mxu0 %v6193
    %7383 = vmatprep.subr.bf16.mxu0 %v6202
    %7384 = vmatpush1.bf16.msra.mxu0 %v6201
    %7385 = vmatprep.subr.bf16.mxu0 %v6210
    %7386 = vmatpush1.bf16.msra.mxu0 %v6209
    %7387 = vmatprep.subr.bf16.mxu0 %v6218
    %7388 = vmatpush1.bf16.msra.mxu0 %v6217
    %7389 = vmatprep.subr.bf16.mxu0 %v6226
    %7390 = vmatpush1.bf16.msra.mxu0 %v6225
    %7391 = vmatprep.subr.bf16.mxu0 %v6234
    %7392 = vmatpush1.bf16.msra.mxu0 %v6233
    %7393 = vmatprep.subr.bf16.mxu0 %v6242
    %7394 = vmatpush1.bf16.msra.mxu0 %v6241
    %7395 = vmatprep.subr.bf16.mxu0 %v6250
    %7396 = vmatpush1.bf16.msra.mxu0 %v6249
    %7397 = vmatprep.subr.bf16.mxu0 %v6258
    %7398 = vmatpush1.bf16.msra.mxu0 %v6257
    %7399 = vmatprep.subr.bf16.mxu0 %v6266
    %7400 = vmatpush1.bf16.msra.mxu0 %v6265
    %7401 = vmatprep.subr.bf16.mxu0 %v6274
    %7402 = vmatpush1.bf16.msra.mxu0 %v6273
    %7403 = vmatprep.subr.bf16.mxu0 %v6282
    %7404 = vmatpush1.bf16.msra.mxu0 %v6281
    %7405 = vmatprep.subr.bf16.mxu0 %v6290
    %7406 = vmatpush1.bf16.msra.mxu0 %v6289
    %7407 = vmatprep.subr.bf16.mxu0 %v6298
    %7408 = vmatpush1.bf16.msra.mxu0 %v6297
    %7409 = vmatprep.subr.bf16.mxu0 %v6306
    %7410 = vmatpush1.bf16.msra.mxu0 %v6305
    %7411 = vmatprep.mubr.bf16.mxu0 %v3832
    %7412 = vmatmul.mubr.bf16.gmra.mrb[0].mxu0 %v3831
    %v7413 = vpop.f32.mrb[0].mxu0
    %v7414 = vadd.f32 %v7371, %v7413
    %v7415 = vpop.f32.mrb[0].mxu0
    %v7416 = vadd.f32 %v7373, %v7415
    %v7417 = vpop.f32.mrb[0].mxu0
    %v7418 = vadd.f32 %v7375, %v7417
    %v7419 = vpop.f32.mrb[0].mxu0
    %v7420 = vadd.f32 %v7377, %v7419
    %7421 = vdwg.mxu0
    %7422 = vmatprep.subr.bf16.mxu0 %v6314
    %7423 = vmatpush1.bf16.msra.mxu0 %v6313
    %7424 = vmatprep.subr.bf16.mxu0 %v6322
    %7425 = vmatpush1.bf16.msra.mxu0 %v6321
    %7426 = vmatprep.subr.bf16.mxu0 %v6330
    %7427 = vmatpush1.bf16.msra.mxu0 %v6329
    %7428 = vmatprep.subr.bf16.mxu0 %v6338
    %7429 = vmatpush1.bf16.msra.mxu0 %v6337
    %7430 = vmatprep.subr.bf16.mxu0 %v6346
    %7431 = vmatpush1.bf16.msra.mxu0 %v6345
    %7432 = vmatprep.subr.bf16.mxu0 %v6354
    %7433 = vmatpush1.bf16.msra.mxu0 %v6353
    %7434 = vmatprep.subr.bf16.mxu0 %v6362
    %7435 = vmatpush1.bf16.msra.mxu0 %v6361
    %7436 = vmatprep.subr.bf16.mxu0 %v6370
    %7437 = vmatpush1.bf16.msra.mxu0 %v6369
    %7438 = vmatprep.subr.bf16.mxu0 %v6378
    %7439 = vmatpush1.bf16.msra.mxu0 %v6377
    %7440 = vmatprep.subr.bf16.mxu0 %v6386
    %7441 = vmatpush1.bf16.msra.mxu0 %v6385
    %7442 = vmatprep.subr.bf16.mxu0 %v6394
    %7443 = vmatpush1.bf16.msra.mxu0 %v6393
    %7444 = vmatprep.subr.bf16.mxu0 %v6402
    %7445 = vmatpush1.bf16.msra.mxu0 %v6401
    %7446 = vmatprep.subr.bf16.mxu0 %v6410
    %7447 = vmatpush1.bf16.msra.mxu0 %v6409
    %7448 = vmatprep.subr.bf16.mxu0 %v6418
    %7449 = vmatpush1.bf16.msra.mxu0 %v6417
    %7450 = vmatprep.subr.bf16.mxu0 %v6426
    %7451 = vmatpush1.bf16.msra.mxu0 %v6425
    %7452 = vmatprep.subr.bf16.mxu0 %v6434
    %7453 = vmatpush1.bf16.msra.mxu0 %v6433
    %7454 = vmatprep.mubr.bf16.mxu0 %v3834
    %7455 = vmatmul.mubr.bf16.gmra.mrb[0].mxu0 %v3833
    %v7456 = vpop.f32.mrb[0].mxu0
    %v7457 = vadd.f32 %v7414, %v7456
    %v7458 = vpop.f32.mrb[0].mxu0
    %v7459 = vadd.f32 %v7416, %v7458
    %v7460 = vpop.f32.mrb[0].mxu0
    %v7461 = vadd.f32 %v7418, %v7460
    %v7462 = vpop.f32.mrb[0].mxu0
    %v7463 = vadd.f32 %v7420, %v7462
    %7464 = vdwg.mxu0
    %7465 = vmatprep.subr.bf16.mxu0 %v5932
    %7466 = vmatpush1.bf16.msra.mxu0 %v5931
    %7467 = vmatprep.subr.bf16.mxu0 %v5940
    %7468 = vmatpush1.bf16.msra.mxu0 %v5939
    %7469 = vmatprep.subr.bf16.mxu0 %v5948
    %7470 = vmatpush1.bf16.msra.mxu0 %v5947
    %7471 = vmatprep.subr.bf16.mxu0 %v5956
    %7472 = vmatpush1.bf16.msra.mxu0 %v5955
    %7473 = vmatprep.subr.bf16.mxu0 %v5964
    %7474 = vmatpush1.bf16.msra.mxu0 %v5963
    %7475 = vmatprep.subr.bf16.mxu0 %v5972
    %7476 = vmatpush1.bf16.msra.mxu0 %v5971
    %7477 = vmatprep.subr.bf16.mxu0 %v5980
    %7478 = vmatpush1.bf16.msra.mxu0 %v5979
    %7479 = vmatprep.subr.bf16.mxu0 %v5988
    %7480 = vmatpush1.bf16.msra.mxu0 %v5987
    %7481 = vmatprep.subr.bf16.mxu0 %v5996
    %7482 = vmatpush1.bf16.msra.mxu0 %v5995
    %7483 = vmatprep.subr.bf16.mxu0 %v6004
    %7484 = vmatpush1.bf16.msra.mxu0 %v6003
    %7485 = vmatprep.subr.bf16.mxu0 %v6012
    %7486 = vmatpush1.bf16.msra.mxu0 %v6011
    %7487 = vmatprep.subr.bf16.mxu0 %v6020
    %7488 = vmatpush1.bf16.msra.mxu0 %v6019
    %7489 = vmatprep.subr.bf16.mxu0 %v6028
    %7490 = vmatpush1.bf16.msra.mxu0 %v6027
    %7491 = vmatprep.subr.bf16.mxu0 %v6036
    %7492 = vmatpush1.bf16.msra.mxu0 %v6035
    %7493 = vmatprep.subr.bf16.mxu0 %v6044
    %7494 = vmatpush1.bf16.msra.mxu0 %v6043
    %7495 = vmatprep.subr.bf16.mxu0 %v6052
    %7496 = vmatpush1.bf16.msra.mxu0 %v6051
    %7497 = vmatprep.mubr.bf16.mxu0 %v3828
    %7498 = vmatmul.mubr.bf16.gmra.mrb[0].mxu0 %v3827
    %v7499 = vpop.f32.mrb[0].mxu0
    %v7500 = vadd.f32 %v4376, %v7499
    %v7501 = vpop.f32.mrb[0].mxu0
    %v7502 = vadd.f32 %v4380, %v7501
    %v7503 = vpop.f32.mrb[0].mxu0
    %v7504 = vadd.f32 %v4376, %v7503
    %v7505 = vpop.f32.mrb[0].mxu0
    %v7506 = vadd.f32 %v4380, %v7505
    %7507 = vdwg.mxu0
    %7508 = vmatprep.subr.bf16.mxu0 %v6060
    %7509 = vmatpush1.bf16.msra.mxu0 %v6059
    %7510 = vmatprep.subr.bf16.mxu0 %v6068
    %7511 = vmatpush1.bf16.msra.mxu0 %v6067
    %7512 = vmatprep.subr.bf16.mxu0 %v6076
    %7513 = vmatpush1.bf16.msra.mxu0 %v6075
    %7514 = vmatprep.subr.bf16.mxu0 %v6084
    %7515 = vmatpush1.bf16.msra.mxu0 %v6083
    %7516 = vmatprep.subr.bf16.mxu0 %v6092
    %7517 = vmatpush1.bf16.msra.mxu0 %v6091
    %7518 = vmatprep.subr.bf16.mxu0 %v6100
    %7519 = vmatpush1.bf16.msra.mxu0 %v6099
    %7520 = vmatprep.subr.bf16.mxu0 %v6108
    %7521 = vmatpush1.bf16.msra.mxu0 %v6107
    %7522 = vmatprep.subr.bf16.mxu0 %v6116
    %7523 = vmatpush1.bf16.msra.mxu0 %v6115
    %7524 = vmatprep.subr.bf16.mxu0 %v6124
    %7525 = vmatpush1.bf16.msra.mxu0 %v6123
    %7526 = vmatprep.subr.bf16.mxu0 %v6132
    %7527 = vmatpush1.bf16.msra.mxu0 %v6131
    %7528 = vmatprep.subr.bf16.mxu0 %v6140
    %7529 = vmatpush1.bf16.msra.mxu0 %v6139
    %7530 = vmatprep.subr.bf16.mxu0 %v6148
    %7531 = vmatpush1.bf16.msra.mxu0 %v6147
    %7532 = vmatprep.subr.bf16.mxu0 %v6156
    %7533 = vmatpush1.bf16.msra.mxu0 %v6155
    %7534 = vmatprep.subr.bf16.mxu0 %v6164
    %7535 = vmatpush1.bf16.msra.mxu0 %v6163
    %7536 = vmatprep.subr.bf16.mxu0 %v6172
    %7537 = vmatpush1.bf16.msra.mxu0 %v6171
    %7538 = vmatprep.subr.bf16.mxu0 %v6180
    %7539 = vmatpush1.bf16.msra.mxu0 %v6179
    %7540 = vmatprep.mubr.bf16.mxu0 %v3830
    %7541 = vmatmul.mubr.bf16.gmra.mrb[0].mxu0 %v3829
    %v7542 = vpop.f32.mrb[0].mxu0
    %v7543 = vadd.f32 %v7500, %v7542
    %v7544 = vpop.f32.mrb[0].mxu0
    %v7545 = vadd.f32 %v7502, %v7544
    %v7546 = vpop.f32.mrb[0].mxu0
    %v7547 = vadd.f32 %v7504, %v7546
    %v7548 = vpop.f32.mrb[0].mxu0
    %v7549 = vadd.f32 %v7506, %v7548
    %7550 = vdwg.mxu0
    %7551 = vmatprep.subr.bf16.mxu0 %v6188
    %7552 = vmatpush1.bf16.msra.mxu0 %v6187
    %7553 = vmatprep.subr.bf16.mxu0 %v6196
    %7554 = vmatpush1.bf16.msra.mxu0 %v6195
    %7555 = vmatprep.subr.bf16.mxu0 %v6204
    %7556 = vmatpush1.bf16.msra.mxu0 %v6203
    %7557 = vmatprep.subr.bf16.mxu0 %v6212
    %7558 = vmatpush1.bf16.msra.mxu0 %v6211
    %7559 = vmatprep.subr.bf16.mxu0 %v6220
    %7560 = vmatpush1.bf16.msra.mxu0 %v6219
    %7561 = vmatprep.subr.bf16.mxu0 %v6228
    %7562 = vmatpush1.bf16.msra.mxu0 %v6227
    %7563 = vmatprep.subr.bf16.mxu0 %v6236
    %7564 = vmatpush1.bf16.msra.mxu0 %v6235
    %7565 = vmatprep.subr.bf16.mxu0 %v6244
    %7566 = vmatpush1.bf16.msra.mxu0 %v6243
    %7567 = vmatprep.subr.bf16.mxu0 %v6252
    %7568 = vmatpush1.bf16.msra.mxu0 %v6251
    %7569 = vmatprep.subr.bf16.mxu0 %v6260
    %7570 = vmatpush1.bf16.msra.mxu0 %v6259
    %7571 = vmatprep.subr.bf16.mxu0 %v6268
    %7572 = vmatpush1.bf16.msra.mxu0 %v6267
    %7573 = vmatprep.subr.bf16.mxu0 %v6276
    %7574 = vmatpush1.bf16.msra.mxu0 %v6275
    %7575 = vmatprep.subr.bf16.mxu0 %v6284
    %7576 = vmatpush1.bf16.msra.mxu0 %v6283
    %7577 = vmatprep.subr.bf16.mxu0 %v6292
    %7578 = vmatpush1.bf16.msra.mxu0 %v6291
    %7579 = vmatprep.subr.bf16.mxu0 %v6300
    %7580 = vmatpush1.bf16.msra.mxu0 %v6299
    %7581 = vmatprep.subr.bf16.mxu0 %v6308
    %7582 = vmatpush1.bf16.msra.mxu0 %v6307
    %7583 = vmatprep.mubr.bf16.mxu0 %v3832
    %7584 = vmatmul.mubr.bf16.gmra.mrb[0].mxu0 %v3831
    %v7585 = vpop.f32.mrb[0].mxu0
    %v7586 = vadd.f32 %v7543, %v7585
    %v7587 = vpop.f32.mrb[0].mxu0
    %v7588 = vadd.f32 %v7545, %v7587
    %v7589 = vpop.f32.mrb[0].mxu0
    %v7590 = vadd.f32 %v7547, %v7589
    %v7591 = vpop.f32.mrb[0].mxu0
    %v7592 = vadd.f32 %v7549, %v7591
    %7593 = vdwg.mxu0
    %7594 = vmatprep.subr.bf16.mxu0 %v6316
    %7595 = vmatpush1.bf16.msra.mxu0 %v6315
    %7596 = vmatprep.subr.bf16.mxu0 %v6324
    %7597 = vmatpush1.bf16.msra.mxu0 %v6323
    %7598 = vmatprep.subr.bf16.mxu0 %v6332
    %7599 = vmatpush1.bf16.msra.mxu0 %v6331
    %7600 = vmatprep.subr.bf16.mxu0 %v6340
    %7601 = vmatpush1.bf16.msra.mxu0 %v6339
    %7602 = vmatprep.subr.bf16.mxu0 %v6348
    %7603 = vmatpush1.bf16.msra.mxu0 %v6347
    %7604 = vmatprep.subr.bf16.mxu0 %v6356
    %7605 = vmatpush1.bf16.msra.mxu0 %v6355
    %7606 = vmatprep.subr.bf16.mxu0 %v6364
    %7607 = vmatpush1.bf16.msra.mxu0 %v6363
    %7608 = vmatprep.subr.bf16.mxu0 %v6372
    %7609 = vmatpush1.bf16.msra.mxu0 %v6371
    %7610 = vmatprep.subr.bf16.mxu0 %v6380
    %7611 = vmatpush1.bf16.msra.mxu0 %v6379
    %7612 = vmatprep.subr.bf16.mxu0 %v6388
    %7613 = vmatpush1.bf16.msra.mxu0 %v6387
    %7614 = vmatprep.subr.bf16.mxu0 %v6396
    %7615 = vmatpush1.bf16.msra.mxu0 %v6395
    %7616 = vmatprep.subr.bf16.mxu0 %v6404
    %7617 = vmatpush1.bf16.msra.mxu0 %v6403
    %7618 = vmatprep.subr.bf16.mxu0 %v6412
    %7619 = vmatpush1.bf16.msra.mxu0 %v6411
    %7620 = vmatprep.subr.bf16.mxu0 %v6420
    %7621 = vmatpush1.bf16.msra.mxu0 %v6419
    %7622 = vmatprep.subr.bf16.mxu0 %v6428
    %7623 = vmatpush1.bf16.msra.mxu0 %v6427
    %7624 = vmatprep.subr.bf16.mxu0 %v6436
    %7625 = vmatpush1.bf16.msra.mxu0 %v6435
    %7626 = vmatprep.mubr.bf16.mxu0 %v3834
    %7627 = vmatmul.mubr.bf16.gmra.mrb[0].mxu0 %v3833
    %v7628 = vpop.f32.mrb[0].mxu0
    %v7629 = vadd.f32 %v7586, %v7628
    %v7630 = vpop.f32.mrb[0].mxu0
    %v7631 = vadd.f32 %v7588, %v7630
    %v7632 = vpop.f32.mrb[0].mxu0
    %v7633 = vadd.f32 %v7590, %v7632
    %v7634 = vpop.f32.mrb[0].mxu0
    %v7635 = vadd.f32 %v7592, %v7634
    %7636 = vdwg.mxu0
    %v7637 = vtanh.pop %v7113
    %v7638 = vtanh.pop %v7115
    %v7639 = vtanh.pop %v7285
    %v7640 = vtanh.pop %v7287
    %v7641 = vtanh.pop %v7457
    %v7642 = vtanh.pop %v7459
    %v7643 = vtanh.pop %v7629
    %v7644 = vtanh.pop %v7631
    %v7645 = vtanh.pop %v7117
    %v7646 = vtanh.pop %v7119
    %v7647 = vtanh.pop %v7289
    %v7648 = vtanh.pop %v7291
    %v7649 = vtanh.pop %v7461
    %v7650 = vtanh.pop %v7463
    %v7651 = vtanh.pop %v7633
    %v7652 = vtanh.pop %v7635
    %7653 = vst [vmem:[#allocation20] sm:$0xff] %v7637
    %7654 = vst [vmem:[#allocation20 + $0x8] sm:$0xff] %v7638
    %7655 = vst [vmem:[#allocation20 + $0x10] sm:$0xff] %v7639
    %7656 = vst [vmem:[#allocation20 + $0x18] sm:$0xff] %v7640
    %7657 = vst [vmem:[#allocation20 + $0x20] sm:$0xff] %v7641
    %7658 = vst [vmem:[#allocation20 + $0x28] sm:$0xff] %v7642
    %7659 = vst [vmem:[#allocation20 + $0x30] sm:$0xff] %v7643
    %7660 = vst [vmem:[#allocation20 + $0x38] sm:$0xff] %v7644
    %7661 = vst [vmem:[#allocation20 + $0x40] sm:$0xff] %v7645
    %7662 = vst [vmem:[#allocation20 + $0x48] sm:$0xff] %v7646
    %7663 = vst [vmem:[#allocation20 + $0x50] sm:$0xff] %v7647
    %7664 = vst [vmem:[#allocation20 + $0x58] sm:$0xff] %v7648
    %7665 = vst [vmem:[#allocation20 + $0x60] sm:$0xff] %v7649
    %7666 = vst [vmem:[#allocation20 + $0x68] sm:$0xff] %v7650
    %7667 = vst [vmem:[#allocation20 + $0x70] sm:$0xff] %v7651
    %7668 = vst [vmem:[#allocation20 + $0x78] sm:$0xff] %v7652
    // Predicated region
    $region90: #{tpu_custom_call.1} parent=1 // pred_check
      _
    $region91: #{tpu_custom_call.1} parent=1 // pred_check_branch
      %7670 = sbr.rel (0) target = $region93
    $region92: #{tpu_custom_call.1} parent=1 // pred_region
      %s7672 = ssub.s32 2048, 2048
      %7673 = vsyncadd [#allocation4], %s7672
      %s7674 = sshll.u32 [#allocation20], 4
      %s7675 = int_to_ptr.vmem [resolvable:$true] %s7674
      %7680 = dma.vmem_to_hbm [thread:$0]  %s7675, 2048, %s11, [#allocation4], 1024, 1024, 64
    $region93: #{tpu_custom_call.1} parent=1 // pred_fallthru
      _
    // Predicated region
    $region94: #{tpu_custom_call.1} parent=1 // pred_check
      _
    $region95: #{tpu_custom_call.1} parent=1 // pred_check_branch
      %7682 = sbr.rel (0) target = $region97
    $region96: #{tpu_custom_call.1} parent=1 // pred_region
      %7683 = dma.done [#allocation4], 2048
    $region97: #{tpu_custom_call.1} parent=1 // pred_fallthru
      _
    %7684 = vsyncpa [#allocation3], 1
    %7685 = vsyncpa [#allocation6], 1
    %7686 = vsyncpa [#allocation9], 1
    %7687 = vsyncpa [#allocation12], 1
    %7688 = vsyncpa [#allocation15], 1
    %7689 = vsyncpa [#allocation18], 1
    %7690 = vsyncpa [#allocation4], 1

</llo_original>
